<compile_context>
chip_gen: v7x
topology: tpu7x:2x2x1
jax: 0.10.0
libtpu: 0.0.40
codegen_flags: <defaults>
</compile_context>

<pallas_src>
import functools
from typing import NamedTuple

import jax
import jax.numpy as jnp
from jax.experimental import pallas as pl
from jax.experimental.pallas import tpu as pltpu


def _round_up(x, m):
    return ((x + m - 1) // m) * m


def _leaky_relu(x, negative_slope=0.01):
    # matches torch.nn.functional.leaky_relu default slope
    return jnp.where(x > 0, x, negative_slope * x)


class ActorMeta(NamedTuple):
    """Static layout of the packed parameter buffer (Python ints only)."""
    state_dim: int
    subgoal_dim: int
    action_dim: int
    kin: int          # padded lanes of the packed [x | subgoal | 0] input
    lanes: int        # padded lanes of every layer output / the param buffer
    param_rows: int   # total rows of the packed parameter buffer
    r_w1: int
    r_w2: int
    r_w3a: int
    r_w3b: int
    r_w4: int
    r_b: int


def prepare_params(params, weights_dtype=jnp.float32):
    """One-time packing (hoisted out of the per-call path).

    Packs W1..W4 and b1..b4 into ONE lane-dense (param_rows, 128) buffer:
      rows [r_w1 , r_w1 +KIN): W1, laid out against the packed [x|g|0] input
      rows [r_w2 , r_w2 +L  ): W2 (zero rows beyond 64)
      rows [r_w3a, r_w3a+L  ): W3[:32]   (acts on h2)
      rows [r_w3b, r_w3b+KIN): W3[32:]   (acts on the subgoal lanes of [x|g|0])
      rows [r_w4 , r_w4 +L  ): W4 (zero rows beyond 32, zero cols beyond A)
      rows [r_b  , r_b  +4  ): b1..b4 (one bias per row)
    Zero padding keeps every matmul contraction exact.
    """
    (w1, b1, w2, b2, w3, b3, w4, b4) = params
    S, H1 = w1.shape
    H2 = w2.shape[1]
    G = w3.shape[0] - H2
    H3 = w3.shape[1]
    A = w4.shape[1]

    KIN = _round_up(S + G, 128)
    L = _round_up(max(H1, H2, H3, A, 128), 128)

    r_w1 = 0
    r_w2 = r_w1 + KIN
    r_w3a = r_w2 + L
    r_w3b = r_w3a + L
    r_w4 = r_w3b + KIN
    r_b = r_w4 + L
    param_rows = r_b + 8          # 4 bias rows + sublane padding

    P = jnp.zeros((param_rows, L), jnp.float32)
    P = P.at[r_w1:r_w1 + S, :H1].set(w1)
    P = P.at[r_w2:r_w2 + H1, :H2].set(w2)
    P = P.at[r_w3a:r_w3a + H2, :H3].set(w3[:H2])
    P = P.at[r_w3b + S:r_w3b + S + G, :H3].set(w3[H2:])
    P = P.at[r_w4:r_w4 + H3, :A].set(w4)
    P = P.at[r_b + 0, :H1].set(b1.reshape(-1))
    P = P.at[r_b + 1, :H2].set(b2.reshape(-1))
    P = P.at[r_b + 2, :H3].set(b3.reshape(-1))
    P = P.at[r_b + 3, :A].set(b4.reshape(-1))
    P = P.astype(weights_dtype)

    meta = ActorMeta(state_dim=S, subgoal_dim=G, action_dim=A,
                     kin=KIN, lanes=L, param_rows=param_rows,
                     r_w1=r_w1, r_w2=r_w2, r_w3a=r_w3a, r_w3b=r_w3b,
                     r_w4=r_w4, r_b=r_b)
    return P, meta


def _make_actor_kernel(meta: ActorMeta, batch: int):
    KIN, L = meta.kin, meta.lanes
    r_w1, r_w2, r_w3a, r_w3b = meta.r_w1, meta.r_w2, meta.r_w3a, meta.r_w3b
    r_w4, r_b = meta.r_w4, meta.r_b

    def kernel(xg_ref, p_ref, out_ref):
        f32 = jnp.float32
        wdt = p_ref.dtype                       # f32 or bf16 MXU operands
        xg = xg_ref[...].astype(wdt)            # (rows, KIN) stacked invocations

        def bias(i):                            # (1, L), zero beyond real width
            return p_ref[r_b + i:r_b + i + 1, :].astype(f32)

        # l1 + leaky_relu : [x|g|0] @ W1 (subgoal rows of packed W1 are zero)
        h1 = _leaky_relu(
            jnp.dot(xg, p_ref[r_w1:r_w1 + KIN, :],
                    preferred_element_type=f32) + bias(0))
        # l2 + leaky_relu
        h2 = _leaky_relu(
            jnp.dot(h1.astype(wdt), p_ref[r_w2:r_w2 + L, :],
                    preferred_element_type=f32) + bias(1))
        # l3 on cat([h2, subgoal]) == h2 @ W3[:32] + [x|g|0] @ W3b
        h3 = _leaky_relu(
            jnp.dot(h2.astype(wdt), p_ref[r_w3a:r_w3a + L, :],
                    preferred_element_type=f32)
            + jnp.dot(xg, p_ref[r_w3b:r_w3b + KIN, :],
                      preferred_element_type=f32)
            + bias(2))
        # l4 (lane-dense logits; columns >= action_dim are exactly zero)
        logits = jnp.dot(h3.astype(wdt), p_ref[r_w4:r_w4 + L, :],
                         preferred_element_type=f32) + bias(3)   # (rows, L)

        # softmax over axis=0 (the batch axis), separately per stacked
        # invocation — each invocation's full batch lives inside this block.
        n_inv = xg_ref.shape[0] // batch
        for j in range(n_inv):                  # static unroll
            lo = j * batch
            blk = logits[lo:lo + batch, :]
            m = jnp.max(blk, axis=0, keepdims=True)
            e = jnp.exp(blk - m)
            s = jnp.sum(e, axis=0, keepdims=True)
            # exact VPU divide; pl.reciprocal(approx=True) would hit the EUP
            # but its approximation error exceeds the 1e-5 check tolerance.
            out_ref[lo:lo + batch, :] = e / s

    return kernel


def _pick_invocations_per_block(n_inv, batch, rows_target=256):
    """Invocations stacked per grid step: aim for ~256 MXU rows while keeping
    each invocation whole (its axis-0 softmax must not be split)."""
    if batch % 8 != 0:
        return n_inv            # one full-array block (always a legal block)
    best = 1
    for d in range(1, n_inv + 1):
        if n_inv % d == 0 and d * batch <= rows_target:
            best = d
    return best


def actor_forward_batched(xs, subgoals, packed, *, meta: ActorMeta):
    """Run N independent Actor invocations in one gridded pallas_call.

    xs: (N, B, state_dim), subgoals: (N, B, subgoal_dim) -> (N, B, action_dim)
    """
    N, B, S = xs.shape
    G = subgoals.shape[-1]
    KIN, L, A = meta.kin, meta.lanes, meta.action_dim

    nb = _pick_invocations_per_block(N, B)
    blk_rows = nb * B

    # Pack [x | subgoal], zero-pad to 128 lanes, flatten to a lane-dense slab.
    xg = jnp.concatenate([xs, subgoals], axis=-1).astype(jnp.float32)
    pad = KIN - (S + G)
    if pad:
        xg = jnp.pad(xg, ((0, 0), (0, 0), (0, pad)))
    xg2 = xg.reshape(N * B, KIN)

    out2 = pl.pallas_call(
        _make_actor_kernel(meta, B),
        out_shape=jax.ShapeDtypeStruct((N * B, L), jnp.float32),
        grid=(N // nb,),
        in_specs=[
            pl.BlockSpec((blk_rows, KIN), lambda i: (i, 0)),
            # constant block index -> parameters DMA'd once, VMEM-resident
            pl.BlockSpec((meta.param_rows, L), lambda i: (0, 0)),
        ],
        out_specs=pl.BlockSpec((blk_rows, L), lambda i: (i, 0)),
        compiler_params=pltpu.CompilerParams(
            dimension_semantics=("parallel",)),
    )(xg2, packed)

    return out2.reshape(N, B, L)[..., :A]


def actor_forward(x, subgoal, packed, *, meta: ActorMeta):
    """Single Actor.forward(x, subgoal) — a grid of one."""
    return actor_forward_batched(x[None], subgoal[None], packed, meta=meta)[0]


def init_params(key, state_dim, subgoal_dim, action_dim):
    """Deterministic synthetic init (PyTorch-like uniform fan-in bounds)."""
    def linear(key, fan_in, fan_out):
        k1, k2 = jax.random.split(key)
        bound = 1.0 / jnp.sqrt(fan_in)
        w = jax.random.uniform(k1, (fan_in, fan_out), jnp.float32, -bound, bound)
        b = jax.random.uniform(k2, (1, fan_out), jnp.float32, -bound, bound)
        return w, b

    k1, k2, k3, k4 = jax.random.split(key, 4)
    w1, b1 = linear(k1, state_dim, 64)
    w2, b2 = linear(k2, 64, 32)
    w3, b3 = linear(k3, 32 + subgoal_dim, 32)
    w4, b4 = linear(k4, 32, action_dim)
    return (w1, b1, w2, b2, w3, b3, w4, b4)


def actor_reference(x, subgoal, params):
    """Pure-JAX reference mirroring the PyTorch forward."""
    (w1, b1, w2, b2, w3, b3, w4, b4) = params
    h = _leaky_relu(x @ w1 + b1)
    h = _leaky_relu(h @ w2 + b2)
    h = jnp.concatenate([h, subgoal], axis=1)
    h = _leaky_relu(h @ w3 + b3)
    logits = h @ w4 + b4
    return jax.nn.softmax(logits, axis=0)


if __name__ == "__main__":
    # NOTE: max_action is unused in the PyTorch forward, so it is omitted.
    B, state_dim, subgoal_dim, action_dim = 8, 16, 4, 6
    N = 64     # independent Actor invocations batched under one grid

    key = jax.random.PRNGKey(0)
    kx, kg, kp = jax.random.split(key, 3)

    xs = jax.random.normal(kx, (N, B, state_dim), jnp.float32)
    gs = jax.random.normal(kg, (N, B, subgoal_dim), jnp.float32)
    params = init_params(kp, state_dim, subgoal_dim, action_dim)

    # one-time parameter packing, hoisted out of the per-call path
    packed, meta = prepare_params(params)

    fwd = jax.jit(functools.partial(actor_forward_batched, meta=meta))
    out = jax.block_until_ready(fwd(xs, gs, packed))

    ref = jnp.stack([actor_reference(xs[i], gs[i], params) for i in range(N)])
    assert out.shape == (N, B, action_dim)
    assert jnp.allclose(out, ref, atol=1e-5, rtol=1e-5), "mismatch vs reference"
    # columns of an axis-0 softmax sum to 1 (per invocation)
    assert jnp.allclose(jnp.sum(out, axis=1),
                        jnp.ones((N, action_dim)), atol=1e-5)

    # single-invocation path (the module's forward signature)
    out1 = jax.block_until_ready(actor_forward(xs[0], gs[0], packed, meta=meta))
    assert jnp.allclose(out1, ref[0], atol=1e-5, rtol=1e-5)

    # bf16-stored weights (v6e/v7x MXU-native path): same kernel, looser check
    packed_bf16, meta_bf16 = prepare_params(params, weights_dtype=jnp.bfloat16)
    fwd_bf16 = jax.jit(functools.partial(actor_forward_batched, meta=meta_bf16))
    out_bf16 = jax.block_until_ready(fwd_bf16(xs, gs, packed_bf16))
    assert jnp.allclose(out_bf16, ref, atol=3e-2, rtol=3e-2), "bf16 mismatch"

    print("KERNEL_OK")
</pallas_src>

<mosaic_0001>
module attributes {stable_mosaic.version = 11 : i64} {
  func.func @kernel(%arg0: i32, %arg1: memref<256x128xf32, #tpu.memory_space<vmem>>, %arg2: memref<648x128xf32, #tpu.memory_space<vmem>>, %arg3: memref<256x128xf32, #tpu.memory_space<vmem>>) attributes {dimension_semantics = [#tpu.dimension_semantics<parallel>], iteration_bounds = array<i64: 2>, scalar_prefetch = 0 : i64, scratch_operands = 0 : i64, tpu.core_type = #tpu.core_type<tc>, window_params = [{transform_indices = @transform_0, window_bounds = array<i64: 256, 128>}, {pipeline_mode = #tpu.pipeline_mode<synchronous>, transform_indices = @transform_1, window_bounds = array<i64: 648, 128>}, {transform_indices = @transform_2, window_bounds = array<i64: 256, 128>}]} {
    %c0 = arith.constant 0 : index
    %c0_0 = arith.constant 0 : index
    %0 = vector.load %arg1[%c0, %c0_0] : memref<256x128xf32, #tpu.memory_space<vmem>>, vector<256x128xf32>
    %c0_1 = arith.constant 0 : index
    %c0_2 = arith.constant 0 : index
    %1 = vector.load %arg2[%c0_1, %c0_2] : memref<648x128xf32, #tpu.memory_space<vmem>>, vector<128x128xf32>
    %cst = arith.constant dense<0.000000e+00> : vector<256x128xf32>
    %2 = tpu.matmul %0, %1, %cst {dimension_numbers = #tpu.dot_dimension_numbers<[1], [0], [0], [1], [0, 0, 1, 1], [], []>} : vector<256x128xf32>, vector<128x128xf32>, vector<256x128xf32> -> vector<256x128xf32>
    %c640 = arith.constant 640 : index
    %c0_3 = arith.constant 0 : index
    %3 = vector.load %arg2[%c640, %c0_3] : memref<648x128xf32, #tpu.memory_space<vmem>>, vector<1x128xf32>
    %4 = vector.broadcast %3 : vector<1x128xf32> to vector<256x128xf32>
    %5 = arith.addf %2, %4 : vector<256x128xf32>
    %cst_4 = arith.constant 0.000000e+00 : f32
    %6 = vector.broadcast %cst_4 : f32 to vector<256x128xf32>
    %7 = arith.cmpf ogt, %5, %6 : vector<256x128xf32>
    %cst_5 = arith.constant 0.00999999977 : f32
    %8 = vector.broadcast %cst_5 : f32 to vector<256x128xf32>
    %9 = arith.mulf %8, %5 : vector<256x128xf32>
    %10 = arith.select %7, %5, %9 : vector<256x128xi1>, vector<256x128xf32>
    %c128 = arith.constant 128 : index
    %c0_6 = arith.constant 0 : index
    %11 = vector.load %arg2[%c128, %c0_6] : memref<648x128xf32, #tpu.memory_space<vmem>>, vector<128x128xf32>
    %cst_7 = arith.constant dense<0.000000e+00> : vector<256x128xf32>
    %12 = tpu.matmul %10, %11, %cst_7 {dimension_numbers = #tpu.dot_dimension_numbers<[1], [0], [0], [1], [0, 0, 1, 1], [], []>} : vector<256x128xf32>, vector<128x128xf32>, vector<256x128xf32> -> vector<256x128xf32>
    %c641 = arith.constant 641 : index
    %c0_8 = arith.constant 0 : index
    %13 = vector.load %arg2[%c641, %c0_8] : memref<648x128xf32, #tpu.memory_space<vmem>>, vector<1x128xf32>
    %14 = vector.broadcast %13 : vector<1x128xf32> to vector<256x128xf32>
    %15 = arith.addf %12, %14 : vector<256x128xf32>
    %cst_9 = arith.constant 0.000000e+00 : f32
    %16 = vector.broadcast %cst_9 : f32 to vector<256x128xf32>
    %17 = arith.cmpf ogt, %15, %16 : vector<256x128xf32>
    %cst_10 = arith.constant 0.00999999977 : f32
    %18 = vector.broadcast %cst_10 : f32 to vector<256x128xf32>
    %19 = arith.mulf %18, %15 : vector<256x128xf32>
    %20 = arith.select %17, %15, %19 : vector<256x128xi1>, vector<256x128xf32>
    %c256 = arith.constant 256 : index
    %c0_11 = arith.constant 0 : index
    %21 = vector.load %arg2[%c256, %c0_11] : memref<648x128xf32, #tpu.memory_space<vmem>>, vector<128x128xf32>
    %cst_12 = arith.constant dense<0.000000e+00> : vector<256x128xf32>
    %22 = tpu.matmul %20, %21, %cst_12 {dimension_numbers = #tpu.dot_dimension_numbers<[1], [0], [0], [1], [0, 0, 1, 1], [], []>} : vector<256x128xf32>, vector<128x128xf32>, vector<256x128xf32> -> vector<256x128xf32>
    %c384 = arith.constant 384 : index
    %c0_13 = arith.constant 0 : index
    %23 = vector.load %arg2[%c384, %c0_13] : memref<648x128xf32, #tpu.memory_space<vmem>>, vector<128x128xf32>
    %cst_14 = arith.constant dense<0.000000e+00> : vector<256x128xf32>
    %24 = tpu.matmul %0, %23, %cst_14 {dimension_numbers = #tpu.dot_dimension_numbers<[1], [0], [0], [1], [0, 0, 1, 1], [], []>} : vector<256x128xf32>, vector<128x128xf32>, vector<256x128xf32> -> vector<256x128xf32>
    %25 = arith.addf %22, %24 : vector<256x128xf32>
    %c642 = arith.constant 642 : index
    %c0_15 = arith.constant 0 : index
    %26 = vector.load %arg2[%c642, %c0_15] : memref<648x128xf32, #tpu.memory_space<vmem>>, vector<1x128xf32>
    %27 = vector.broadcast %26 : vector<1x128xf32> to vector<256x128xf32>
    %28 = arith.addf %25, %27 : vector<256x128xf32>
    %cst_16 = arith.constant 0.000000e+00 : f32
    %29 = vector.broadcast %cst_16 : f32 to vector<256x128xf32>
    %30 = arith.cmpf ogt, %28, %29 : vector<256x128xf32>
    %cst_17 = arith.constant 0.00999999977 : f32
    %31 = vector.broadcast %cst_17 : f32 to vector<256x128xf32>
    %32 = arith.mulf %31, %28 : vector<256x128xf32>
    %33 = arith.select %30, %28, %32 : vector<256x128xi1>, vector<256x128xf32>
    %c512 = arith.constant 512 : index
    %c0_18 = arith.constant 0 : index
    %34 = vector.load %arg2[%c512, %c0_18] : memref<648x128xf32, #tpu.memory_space<vmem>>, vector<128x128xf32>
    %cst_19 = arith.constant dense<0.000000e+00> : vector<256x128xf32>
    %35 = tpu.matmul %33, %34, %cst_19 {dimension_numbers = #tpu.dot_dimension_numbers<[1], [0], [0], [1], [0, 0, 1, 1], [], []>} : vector<256x128xf32>, vector<128x128xf32>, vector<256x128xf32> -> vector<256x128xf32>
    %c643 = arith.constant 643 : index
    %c0_20 = arith.constant 0 : index
    %36 = vector.load %arg2[%c643, %c0_20] : memref<648x128xf32, #tpu.memory_space<vmem>>, vector<1x128xf32>
    %37 = vector.broadcast %36 : vector<1x128xf32> to vector<256x128xf32>
    %38 = arith.addf %35, %37 : vector<256x128xf32>
    %39 = vector.extract_strided_slice %38 {offsets = [0, 0], sizes = [8, 128], strides = [1, 1]} : vector<256x128xf32> to vector<8x128xf32>
    %cst_21 = arith.constant dense<0xFF800000> : vector<128xf32>
    %40 = vector.multi_reduction <maximumf>, %39, %cst_21 [0] : vector<8x128xf32> to vector<128xf32>
    %41 = vector.shape_cast %40 : vector<128xf32> to vector<1x128xf32>
    %42 = vector.broadcast %41 : vector<1x128xf32> to vector<8x128xf32>
    %43 = arith.subf %39, %42 : vector<8x128xf32>
    %44 = math.exp %43 : vector<8x128xf32>
    %cst_22 = arith.constant dense<0.000000e+00> : vector<128xf32>
    %45 = vector.multi_reduction <add>, %44, %cst_22 [0] : vector<8x128xf32> to vector<128xf32>
    %46 = vector.shape_cast %45 : vector<128xf32> to vector<1x128xf32>
    %47 = vector.broadcast %46 : vector<1x128xf32> to vector<8x128xf32>
    %48 = arith.divf %44, %47 : vector<8x128xf32>
    %c0_23 = arith.constant 0 : index
    %c0_24 = arith.constant 0 : index
    %49 = vector.load %arg3[%c0_23, %c0_24] : memref<256x128xf32, #tpu.memory_space<vmem>>, vector<8x128xf32>
    tpu.vector_store %arg3[%c0_23, %c0_24], %48 {strides = array<i32>} : memref<256x128xf32, #tpu.memory_space<vmem>>, vector<8x128xf32>,
    %50 = vector.extract_strided_slice %38 {offsets = [8, 0], sizes = [8, 128], strides = [1, 1]} : vector<256x128xf32> to vector<8x128xf32>
    %cst_25 = arith.constant dense<0xFF800000> : vector<128xf32>
    %51 = vector.multi_reduction <maximumf>, %50, %cst_25 [0] : vector<8x128xf32> to vector<128xf32>
    %52 = vector.shape_cast %51 : vector<128xf32> to vector<1x128xf32>
    %53 = vector.broadcast %52 : vector<1x128xf32> to vector<8x128xf32>
    %54 = arith.subf %50, %53 : vector<8x128xf32>
    %55 = math.exp %54 : vector<8x128xf32>
    %cst_26 = arith.constant dense<0.000000e+00> : vector<128xf32>
    %56 = vector.multi_reduction <add>, %55, %cst_26 [0] : vector<8x128xf32> to vector<128xf32>
    %57 = vector.shape_cast %56 : vector<128xf32> to vector<1x128xf32>
    %58 = vector.broadcast %57 : vector<1x128xf32> to vector<8x128xf32>
    %59 = arith.divf %55, %58 : vector<8x128xf32>
    %c8 = arith.constant 8 : index
    %c0_27 = arith.constant 0 : index
    %60 = vector.load %arg3[%c8, %c0_27] : memref<256x128xf32, #tpu.memory_space<vmem>>, vector<8x128xf32>
    tpu.vector_store %arg3[%c8, %c0_27], %59 {strides = array<i32>} : memref<256x128xf32, #tpu.memory_space<vmem>>, vector<8x128xf32>,
    %61 = vector.extract_strided_slice %38 {offsets = [16, 0], sizes = [8, 128], strides = [1, 1]} : vector<256x128xf32> to vector<8x128xf32>
    %cst_28 = arith.constant dense<0xFF800000> : vector<128xf32>
    %62 = vector.multi_reduction <maximumf>, %61, %cst_28 [0] : vector<8x128xf32> to vector<128xf32>
    %63 = vector.shape_cast %62 : vector<128xf32> to vector<1x128xf32>
    %64 = vector.broadcast %63 : vector<1x128xf32> to vector<8x128xf32>
    %65 = arith.subf %61, %64 : vector<8x128xf32>
    %66 = math.exp %65 : vector<8x128xf32>
    %cst_29 = arith.constant dense<0.000000e+00> : vector<128xf32>
    %67 = vector.multi_reduction <add>, %66, %cst_29 [0] : vector<8x128xf32> to vector<128xf32>
    %68 = vector.shape_cast %67 : vector<128xf32> to vector<1x128xf32>
    %69 = vector.broadcast %68 : vector<1x128xf32> to vector<8x128xf32>
    %70 = arith.divf %66, %69 : vector<8x128xf32>
    %c16 = arith.constant 16 : index
    %c0_30 = arith.constant 0 : index
    %71 = vector.load %arg3[%c16, %c0_30] : memref<256x128xf32, #tpu.memory_space<vmem>>, vector<8x128xf32>
    tpu.vector_store %arg3[%c16, %c0_30], %70 {strides = array<i32>} : memref<256x128xf32, #tpu.memory_space<vmem>>, vector<8x128xf32>,
    %72 = vector.extract_strided_slice %38 {offsets = [24, 0], sizes = [8, 128], strides = [1, 1]} : vector<256x128xf32> to vector<8x128xf32>
    %cst_31 = arith.constant dense<0xFF800000> : vector<128xf32>
    %73 = vector.multi_reduction <maximumf>, %72, %cst_31 [0] : vector<8x128xf32> to vector<128xf32>
    %74 = vector.shape_cast %73 : vector<128xf32> to vector<1x128xf32>
    %75 = vector.broadcast %74 : vector<1x128xf32> to vector<8x128xf32>
    %76 = arith.subf %72, %75 : vector<8x128xf32>
    %77 = math.exp %76 : vector<8x128xf32>
    %cst_32 = arith.constant dense<0.000000e+00> : vector<128xf32>
    %78 = vector.multi_reduction <add>, %77, %cst_32 [0] : vector<8x128xf32> to vector<128xf32>
    %79 = vector.shape_cast %78 : vector<128xf32> to vector<1x128xf32>
    %80 = vector.broadcast %79 : vector<1x128xf32> to vector<8x128xf32>
    %81 = arith.divf %77, %80 : vector<8x128xf32>
    %c24 = arith.constant 24 : index
    %c0_33 = arith.constant 0 : index
    %82 = vector.load %arg3[%c24, %c0_33] : memref<256x128xf32, #tpu.memory_space<vmem>>, vector<8x128xf32>
    tpu.vector_store %arg3[%c24, %c0_33], %81 {strides = array<i32>} : memref<256x128xf32, #tpu.memory_space<vmem>>, vector<8x128xf32>,
    %83 = vector.extract_strided_slice %38 {offsets = [32, 0], sizes = [8, 128], strides = [1, 1]} : vector<256x128xf32> to vector<8x128xf32>
    %cst_34 = arith.constant dense<0xFF800000> : vector<128xf32>
    %84 = vector.multi_reduction <maximumf>, %83, %cst_34 [0] : vector<8x128xf32> to vector<128xf32>
    %85 = vector.shape_cast %84 : vector<128xf32> to vector<1x128xf32>
    %86 = vector.broadcast %85 : vector<1x128xf32> to vector<8x128xf32>
    %87 = arith.subf %83, %86 : vector<8x128xf32>
    %88 = math.exp %87 : vector<8x128xf32>
    %cst_35 = arith.constant dense<0.000000e+00> : vector<128xf32>
    %89 = vector.multi_reduction <add>, %88, %cst_35 [0] : vector<8x128xf32> to vector<128xf32>
    %90 = vector.shape_cast %89 : vector<128xf32> to vector<1x128xf32>
    %91 = vector.broadcast %90 : vector<1x128xf32> to vector<8x128xf32>
    %92 = arith.divf %88, %91 : vector<8x128xf32>
    %c32 = arith.constant 32 : index
    %c0_36 = arith.constant 0 : index
    %93 = vector.load %arg3[%c32, %c0_36] : memref<256x128xf32, #tpu.memory_space<vmem>>, vector<8x128xf32>
    tpu.vector_store %arg3[%c32, %c0_36], %92 {strides = array<i32>} : memref<256x128xf32, #tpu.memory_space<vmem>>, vector<8x128xf32>,
    %94 = vector.extract_strided_slice %38 {offsets = [40, 0], sizes = [8, 128], strides = [1, 1]} : vector<256x128xf32> to vector<8x128xf32>
    %cst_37 = arith.constant dense<0xFF800000> : vector<128xf32>
    %95 = vector.multi_reduction <maximumf>, %94, %cst_37 [0] : vector<8x128xf32> to vector<128xf32>
    %96 = vector.shape_cast %95 : vector<128xf32> to vector<1x128xf32>
    %97 = vector.broadcast %96 : vector<1x128xf32> to vector<8x128xf32>
    %98 = arith.subf %94, %97 : vector<8x128xf32>
    %99 = math.exp %98 : vector<8x128xf32>
    %cst_38 = arith.constant dense<0.000000e+00> : vector<128xf32>
    %100 = vector.multi_reduction <add>, %99, %cst_38 [0] : vector<8x128xf32> to vector<128xf32>
    %101 = vector.shape_cast %100 : vector<128xf32> to vector<1x128xf32>
    %102 = vector.broadcast %101 : vector<1x128xf32> to vector<8x128xf32>
    %103 = arith.divf %99, %102 : vector<8x128xf32>
    %c40 = arith.constant 40 : index
    %c0_39 = arith.constant 0 : index
    %104 = vector.load %arg3[%c40, %c0_39] : memref<256x128xf32, #tpu.memory_space<vmem>>, vector<8x128xf32>
    tpu.vector_store %arg3[%c40, %c0_39], %103 {strides = array<i32>} : memref<256x128xf32, #tpu.memory_space<vmem>>, vector<8x128xf32>,
    %105 = vector.extract_strided_slice %38 {offsets = [48, 0], sizes = [8, 128], strides = [1, 1]} : vector<256x128xf32> to vector<8x128xf32>
    %cst_40 = arith.constant dense<0xFF800000> : vector<128xf32>
    %106 = vector.multi_reduction <maximumf>, %105, %cst_40 [0] : vector<8x128xf32> to vector<128xf32>
    %107 = vector.shape_cast %106 : vector<128xf32> to vector<1x128xf32>
    %108 = vector.broadcast %107 : vector<1x128xf32> to vector<8x128xf32>
    %109 = arith.subf %105, %108 : vector<8x128xf32>
    %110 = math.exp %109 : vector<8x128xf32>
    %cst_41 = arith.constant dense<0.000000e+00> : vector<128xf32>
    %111 = vector.multi_reduction <add>, %110, %cst_41 [0] : vector<8x128xf32> to vector<128xf32>
    %112 = vector.shape_cast %111 : vector<128xf32> to vector<1x128xf32>
    %113 = vector.broadcast %112 : vector<1x128xf32> to vector<8x128xf32>
    %114 = arith.divf %110, %113 : vector<8x128xf32>
    %c48 = arith.constant 48 : index
    %c0_42 = arith.constant 0 : index
    %115 = vector.load %arg3[%c48, %c0_42] : memref<256x128xf32, #tpu.memory_space<vmem>>, vector<8x128xf32>
    tpu.vector_store %arg3[%c48, %c0_42], %114 {strides = array<i32>} : memref<256x128xf32, #tpu.memory_space<vmem>>, vector<8x128xf32>,
    %116 = vector.extract_strided_slice %38 {offsets = [56, 0], sizes = [8, 128], strides = [1, 1]} : vector<256x128xf32> to vector<8x128xf32>
    %cst_43 = arith.constant dense<0xFF800000> : vector<128xf32>
    %117 = vector.multi_reduction <maximumf>, %116, %cst_43 [0] : vector<8x128xf32> to vector<128xf32>
    %118 = vector.shape_cast %117 : vector<128xf32> to vector<1x128xf32>
    %119 = vector.broadcast %118 : vector<1x128xf32> to vector<8x128xf32>
    %120 = arith.subf %116, %119 : vector<8x128xf32>
    %121 = math.exp %120 : vector<8x128xf32>
    %cst_44 = arith.constant dense<0.000000e+00> : vector<128xf32>
    %122 = vector.multi_reduction <add>, %121, %cst_44 [0] : vector<8x128xf32> to vector<128xf32>
    %123 = vector.shape_cast %122 : vector<128xf32> to vector<1x128xf32>
    %124 = vector.broadcast %123 : vector<1x128xf32> to vector<8x128xf32>
    %125 = arith.divf %121, %124 : vector<8x128xf32>
    %c56 = arith.constant 56 : index
    %c0_45 = arith.constant 0 : index
    %126 = vector.load %arg3[%c56, %c0_45] : memref<256x128xf32, #tpu.memory_space<vmem>>, vector<8x128xf32>
    tpu.vector_store %arg3[%c56, %c0_45], %125 {strides = array<i32>} : memref<256x128xf32, #tpu.memory_space<vmem>>, vector<8x128xf32>,
    %127 = vector.extract_strided_slice %38 {offsets = [64, 0], sizes = [8, 128], strides = [1, 1]} : vector<256x128xf32> to vector<8x128xf32>
    %cst_46 = arith.constant dense<0xFF800000> : vector<128xf32>
    %128 = vector.multi_reduction <maximumf>, %127, %cst_46 [0] : vector<8x128xf32> to vector<128xf32>
    %129 = vector.shape_cast %128 : vector<128xf32> to vector<1x128xf32>
    %130 = vector.broadcast %129 : vector<1x128xf32> to vector<8x128xf32>
    %131 = arith.subf %127, %130 : vector<8x128xf32>
    %132 = math.exp %131 : vector<8x128xf32>
    %cst_47 = arith.constant dense<0.000000e+00> : vector<128xf32>
    %133 = vector.multi_reduction <add>, %132, %cst_47 [0] : vector<8x128xf32> to vector<128xf32>
    %134 = vector.shape_cast %133 : vector<128xf32> to vector<1x128xf32>
    %135 = vector.broadcast %134 : vector<1x128xf32> to vector<8x128xf32>
    %136 = arith.divf %132, %135 : vector<8x128xf32>
    %c64 = arith.constant 64 : index
    %c0_48 = arith.constant 0 : index
    %137 = vector.load %arg3[%c64, %c0_48] : memref<256x128xf32, #tpu.memory_space<vmem>>, vector<8x128xf32>
    tpu.vector_store %arg3[%c64, %c0_48], %136 {strides = array<i32>} : memref<256x128xf32, #tpu.memory_space<vmem>>, vector<8x128xf32>,
    %138 = vector.extract_strided_slice %38 {offsets = [72, 0], sizes = [8, 128], strides = [1, 1]} : vector<256x128xf32> to vector<8x128xf32>
    %cst_49 = arith.constant dense<0xFF800000> : vector<128xf32>
    %139 = vector.multi_reduction <maximumf>, %138, %cst_49 [0] : vector<8x128xf32> to vector<128xf32>
    %140 = vector.shape_cast %139 : vector<128xf32> to vector<1x128xf32>
    %141 = vector.broadcast %140 : vector<1x128xf32> to vector<8x128xf32>
    %142 = arith.subf %138, %141 : vector<8x128xf32>
    %143 = math.exp %142 : vector<8x128xf32>
    %cst_50 = arith.constant dense<0.000000e+00> : vector<128xf32>
    %144 = vector.multi_reduction <add>, %143, %cst_50 [0] : vector<8x128xf32> to vector<128xf32>
    %145 = vector.shape_cast %144 : vector<128xf32> to vector<1x128xf32>
    %146 = vector.broadcast %145 : vector<1x128xf32> to vector<8x128xf32>
    %147 = arith.divf %143, %146 : vector<8x128xf32>
    %c72 = arith.constant 72 : index
    %c0_51 = arith.constant 0 : index
    %148 = vector.load %arg3[%c72, %c0_51] : memref<256x128xf32, #tpu.memory_space<vmem>>, vector<8x128xf32>
    tpu.vector_store %arg3[%c72, %c0_51], %147 {strides = array<i32>} : memref<256x128xf32, #tpu.memory_space<vmem>>, vector<8x128xf32>,
    %149 = vector.extract_strided_slice %38 {offsets = [80, 0], sizes = [8, 128], strides = [1, 1]} : vector<256x128xf32> to vector<8x128xf32>
    %cst_52 = arith.constant dense<0xFF800000> : vector<128xf32>
    %150 = vector.multi_reduction <maximumf>, %149, %cst_52 [0] : vector<8x128xf32> to vector<128xf32>
    %151 = vector.shape_cast %150 : vector<128xf32> to vector<1x128xf32>
    %152 = vector.broadcast %151 : vector<1x128xf32> to vector<8x128xf32>
    %153 = arith.subf %149, %152 : vector<8x128xf32>
    %154 = math.exp %153 : vector<8x128xf32>
    %cst_53 = arith.constant dense<0.000000e+00> : vector<128xf32>
    %155 = vector.multi_reduction <add>, %154, %cst_53 [0] : vector<8x128xf32> to vector<128xf32>
    %156 = vector.shape_cast %155 : vector<128xf32> to vector<1x128xf32>
    %157 = vector.broadcast %156 : vector<1x128xf32> to vector<8x128xf32>
    %158 = arith.divf %154, %157 : vector<8x128xf32>
    %c80 = arith.constant 80 : index
    %c0_54 = arith.constant 0 : index
    %159 = vector.load %arg3[%c80, %c0_54] : memref<256x128xf32, #tpu.memory_space<vmem>>, vector<8x128xf32>
    tpu.vector_store %arg3[%c80, %c0_54], %158 {strides = array<i32>} : memref<256x128xf32, #tpu.memory_space<vmem>>, vector<8x128xf32>,
    %160 = vector.extract_strided_slice %38 {offsets = [88, 0], sizes = [8, 128], strides = [1, 1]} : vector<256x128xf32> to vector<8x128xf32>
    %cst_55 = arith.constant dense<0xFF800000> : vector<128xf32>
    %161 = vector.multi_reduction <maximumf>, %160, %cst_55 [0] : vector<8x128xf32> to vector<128xf32>
    %162 = vector.shape_cast %161 : vector<128xf32> to vector<1x128xf32>
    %163 = vector.broadcast %162 : vector<1x128xf32> to vector<8x128xf32>
    %164 = arith.subf %160, %163 : vector<8x128xf32>
    %165 = math.exp %164 : vector<8x128xf32>
    %cst_56 = arith.constant dense<0.000000e+00> : vector<128xf32>
    %166 = vector.multi_reduction <add>, %165, %cst_56 [0] : vector<8x128xf32> to vector<128xf32>
    %167 = vector.shape_cast %166 : vector<128xf32> to vector<1x128xf32>
    %168 = vector.broadcast %167 : vector<1x128xf32> to vector<8x128xf32>
    %169 = arith.divf %165, %168 : vector<8x128xf32>
    %c88 = arith.constant 88 : index
    %c0_57 = arith.constant 0 : index
    %170 = vector.load %arg3[%c88, %c0_57] : memref<256x128xf32, #tpu.memory_space<vmem>>, vector<8x128xf32>
    tpu.vector_store %arg3[%c88, %c0_57], %169 {strides = array<i32>} : memref<256x128xf32, #tpu.memory_space<vmem>>, vector<8x128xf32>,
    %171 = vector.extract_strided_slice %38 {offsets = [96, 0], sizes = [8, 128], strides = [1, 1]} : vector<256x128xf32> to vector<8x128xf32>
    %cst_58 = arith.constant dense<0xFF800000> : vector<128xf32>
    %172 = vector.multi_reduction <maximumf>, %171, %cst_58 [0] : vector<8x128xf32> to vector<128xf32>
    %173 = vector.shape_cast %172 : vector<128xf32> to vector<1x128xf32>
    %174 = vector.broadcast %173 : vector<1x128xf32> to vector<8x128xf32>
    %175 = arith.subf %171, %174 : vector<8x128xf32>
    %176 = math.exp %175 : vector<8x128xf32>
    %cst_59 = arith.constant dense<0.000000e+00> : vector<128xf32>
    %177 = vector.multi_reduction <add>, %176, %cst_59 [0] : vector<8x128xf32> to vector<128xf32>
    %178 = vector.shape_cast %177 : vector<128xf32> to vector<1x128xf32>
    %179 = vector.broadcast %178 : vector<1x128xf32> to vector<8x128xf32>
    %180 = arith.divf %176, %179 : vector<8x128xf32>
    %c96 = arith.constant 96 : index
    %c0_60 = arith.constant 0 : index
    %181 = vector.load %arg3[%c96, %c0_60] : memref<256x128xf32, #tpu.memory_space<vmem>>, vector<8x128xf32>
    tpu.vector_store %arg3[%c96, %c0_60], %180 {strides = array<i32>} : memref<256x128xf32, #tpu.memory_space<vmem>>, vector<8x128xf32>,
    %182 = vector.extract_strided_slice %38 {offsets = [104, 0], sizes = [8, 128], strides = [1, 1]} : vector<256x128xf32> to vector<8x128xf32>
    %cst_61 = arith.constant dense<0xFF800000> : vector<128xf32>
    %183 = vector.multi_reduction <maximumf>, %182, %cst_61 [0] : vector<8x128xf32> to vector<128xf32>
    %184 = vector.shape_cast %183 : vector<128xf32> to vector<1x128xf32>
    %185 = vector.broadcast %184 : vector<1x128xf32> to vector<8x128xf32>
    %186 = arith.subf %182, %185 : vector<8x128xf32>
    %187 = math.exp %186 : vector<8x128xf32>
    %cst_62 = arith.constant dense<0.000000e+00> : vector<128xf32>
    %188 = vector.multi_reduction <add>, %187, %cst_62 [0] : vector<8x128xf32> to vector<128xf32>
    %189 = vector.shape_cast %188 : vector<128xf32> to vector<1x128xf32>
    %190 = vector.broadcast %189 : vector<1x128xf32> to vector<8x128xf32>
    %191 = arith.divf %187, %190 : vector<8x128xf32>
    %c104 = arith.constant 104 : index
    %c0_63 = arith.constant 0 : index
    %192 = vector.load %arg3[%c104, %c0_63] : memref<256x128xf32, #tpu.memory_space<vmem>>, vector<8x128xf32>
    tpu.vector_store %arg3[%c104, %c0_63], %191 {strides = array<i32>} : memref<256x128xf32, #tpu.memory_space<vmem>>, vector<8x128xf32>,
    %193 = vector.extract_strided_slice %38 {offsets = [112, 0], sizes = [8, 128], strides = [1, 1]} : vector<256x128xf32> to vector<8x128xf32>
    %cst_64 = arith.constant dense<0xFF800000> : vector<128xf32>
    %194 = vector.multi_reduction <maximumf>, %193, %cst_64 [0] : vector<8x128xf32> to vector<128xf32>
    %195 = vector.shape_cast %194 : vector<128xf32> to vector<1x128xf32>
    %196 = vector.broadcast %195 : vector<1x128xf32> to vector<8x128xf32>
    %197 = arith.subf %193, %196 : vector<8x128xf32>
    %198 = math.exp %197 : vector<8x128xf32>
    %cst_65 = arith.constant dense<0.000000e+00> : vector<128xf32>
    %199 = vector.multi_reduction <add>, %198, %cst_65 [0] : vector<8x128xf32> to vector<128xf32>
    %200 = vector.shape_cast %199 : vector<128xf32> to vector<1x128xf32>
    %201 = vector.broadcast %200 : vector<1x128xf32> to vector<8x128xf32>
    %202 = arith.divf %198, %201 : vector<8x128xf32>
    %c112 = arith.constant 112 : index
    %c0_66 = arith.constant 0 : index
    %203 = vector.load %arg3[%c112, %c0_66] : memref<256x128xf32, #tpu.memory_space<vmem>>, vector<8x128xf32>
    tpu.vector_store %arg3[%c112, %c0_66], %202 {strides = array<i32>} : memref<256x128xf32, #tpu.memory_space<vmem>>, vector<8x128xf32>,
    %204 = vector.extract_strided_slice %38 {offsets = [120, 0], sizes = [8, 128], strides = [1, 1]} : vector<256x128xf32> to vector<8x128xf32>
    %cst_67 = arith.constant dense<0xFF800000> : vector<128xf32>
    %205 = vector.multi_reduction <maximumf>, %204, %cst_67 [0] : vector<8x128xf32> to vector<128xf32>
    %206 = vector.shape_cast %205 : vector<128xf32> to vector<1x128xf32>
    %207 = vector.broadcast %206 : vector<1x128xf32> to vector<8x128xf32>
    %208 = arith.subf %204, %207 : vector<8x128xf32>
    %209 = math.exp %208 : vector<8x128xf32>
    %cst_68 = arith.constant dense<0.000000e+00> : vector<128xf32>
    %210 = vector.multi_reduction <add>, %209, %cst_68 [0] : vector<8x128xf32> to vector<128xf32>
    %211 = vector.shape_cast %210 : vector<128xf32> to vector<1x128xf32>
    %212 = vector.broadcast %211 : vector<1x128xf32> to vector<8x128xf32>
    %213 = arith.divf %209, %212 : vector<8x128xf32>
    %c120 = arith.constant 120 : index
    %c0_69 = arith.constant 0 : index
    %214 = vector.load %arg3[%c120, %c0_69] : memref<256x128xf32, #tpu.memory_space<vmem>>, vector<8x128xf32>
    tpu.vector_store %arg3[%c120, %c0_69], %213 {strides = array<i32>} : memref<256x128xf32, #tpu.memory_space<vmem>>, vector<8x128xf32>,
    %215 = vector.extract_strided_slice %38 {offsets = [128, 0], sizes = [8, 128], strides = [1, 1]} : vector<256x128xf32> to vector<8x128xf32>
    %cst_70 = arith.constant dense<0xFF800000> : vector<128xf32>
    %216 = vector.multi_reduction <maximumf>, %215, %cst_70 [0] : vector<8x128xf32> to vector<128xf32>
    %217 = vector.shape_cast %216 : vector<128xf32> to vector<1x128xf32>
    %218 = vector.broadcast %217 : vector<1x128xf32> to vector<8x128xf32>
    %219 = arith.subf %215, %218 : vector<8x128xf32>
    %220 = math.exp %219 : vector<8x128xf32>
    %cst_71 = arith.constant dense<0.000000e+00> : vector<128xf32>
    %221 = vector.multi_reduction <add>, %220, %cst_71 [0] : vector<8x128xf32> to vector<128xf32>
    %222 = vector.shape_cast %221 : vector<128xf32> to vector<1x128xf32>
    %223 = vector.broadcast %222 : vector<1x128xf32> to vector<8x128xf32>
    %224 = arith.divf %220, %223 : vector<8x128xf32>
    %c128_72 = arith.constant 128 : index
    %c0_73 = arith.constant 0 : index
    %225 = vector.load %arg3[%c128_72, %c0_73] : memref<256x128xf32, #tpu.memory_space<vmem>>, vector<8x128xf32>
    tpu.vector_store %arg3[%c128_72, %c0_73], %224 {strides = array<i32>} : memref<256x128xf32, #tpu.memory_space<vmem>>, vector<8x128xf32>,
    %226 = vector.extract_strided_slice %38 {offsets = [136, 0], sizes = [8, 128], strides = [1, 1]} : vector<256x128xf32> to vector<8x128xf32>
    %cst_74 = arith.constant dense<0xFF800000> : vector<128xf32>
    %227 = vector.multi_reduction <maximumf>, %226, %cst_74 [0] : vector<8x128xf32> to vector<128xf32>
    %228 = vector.shape_cast %227 : vector<128xf32> to vector<1x128xf32>
    %229 = vector.broadcast %228 : vector<1x128xf32> to vector<8x128xf32>
    %230 = arith.subf %226, %229 : vector<8x128xf32>
    %231 = math.exp %230 : vector<8x128xf32>
    %cst_75 = arith.constant dense<0.000000e+00> : vector<128xf32>
    %232 = vector.multi_reduction <add>, %231, %cst_75 [0] : vector<8x128xf32> to vector<128xf32>
    %233 = vector.shape_cast %232 : vector<128xf32> to vector<1x128xf32>
    %234 = vector.broadcast %233 : vector<1x128xf32> to vector<8x128xf32>
    %235 = arith.divf %231, %234 : vector<8x128xf32>
    %c136 = arith.constant 136 : index
    %c0_76 = arith.constant 0 : index
    %236 = vector.load %arg3[%c136, %c0_76] : memref<256x128xf32, #tpu.memory_space<vmem>>, vector<8x128xf32>
    tpu.vector_store %arg3[%c136, %c0_76], %235 {strides = array<i32>} : memref<256x128xf32, #tpu.memory_space<vmem>>, vector<8x128xf32>,
    %237 = vector.extract_strided_slice %38 {offsets = [144, 0], sizes = [8, 128], strides = [1, 1]} : vector<256x128xf32> to vector<8x128xf32>
    %cst_77 = arith.constant dense<0xFF800000> : vector<128xf32>
    %238 = vector.multi_reduction <maximumf>, %237, %cst_77 [0] : vector<8x128xf32> to vector<128xf32>
    %239 = vector.shape_cast %238 : vector<128xf32> to vector<1x128xf32>
    %240 = vector.broadcast %239 : vector<1x128xf32> to vector<8x128xf32>
    %241 = arith.subf %237, %240 : vector<8x128xf32>
    %242 = math.exp %241 : vector<8x128xf32>
    %cst_78 = arith.constant dense<0.000000e+00> : vector<128xf32>
    %243 = vector.multi_reduction <add>, %242, %cst_78 [0] : vector<8x128xf32> to vector<128xf32>
    %244 = vector.shape_cast %243 : vector<128xf32> to vector<1x128xf32>
    %245 = vector.broadcast %244 : vector<1x128xf32> to vector<8x128xf32>
    %246 = arith.divf %242, %245 : vector<8x128xf32>
    %c144 = arith.constant 144 : index
    %c0_79 = arith.constant 0 : index
    %247 = vector.load %arg3[%c144, %c0_79] : memref<256x128xf32, #tpu.memory_space<vmem>>, vector<8x128xf32>
    tpu.vector_store %arg3[%c144, %c0_79], %246 {strides = array<i32>} : memref<256x128xf32, #tpu.memory_space<vmem>>, vector<8x128xf32>,
    %248 = vector.extract_strided_slice %38 {offsets = [152, 0], sizes = [8, 128], strides = [1, 1]} : vector<256x128xf32> to vector<8x128xf32>
    %cst_80 = arith.constant dense<0xFF800000> : vector<128xf32>
    %249 = vector.multi_reduction <maximumf>, %248, %cst_80 [0] : vector<8x128xf32> to vector<128xf32>
    %250 = vector.shape_cast %249 : vector<128xf32> to vector<1x128xf32>
    %251 = vector.broadcast %250 : vector<1x128xf32> to vector<8x128xf32>
    %252 = arith.subf %248, %251 : vector<8x128xf32>
    %253 = math.exp %252 : vector<8x128xf32>
    %cst_81 = arith.constant dense<0.000000e+00> : vector<128xf32>
    %254 = vector.multi_reduction <add>, %253, %cst_81 [0] : vector<8x128xf32> to vector<128xf32>
    %255 = vector.shape_cast %254 : vector<128xf32> to vector<1x128xf32>
    %256 = vector.broadcast %255 : vector<1x128xf32> to vector<8x128xf32>
    %257 = arith.divf %253, %256 : vector<8x128xf32>
    %c152 = arith.constant 152 : index
    %c0_82 = arith.constant 0 : index
    %258 = vector.load %arg3[%c152, %c0_82] : memref<256x128xf32, #tpu.memory_space<vmem>>, vector<8x128xf32>
    tpu.vector_store %arg3[%c152, %c0_82], %257 {strides = array<i32>} : memref<256x128xf32, #tpu.memory_space<vmem>>, vector<8x128xf32>,
    %259 = vector.extract_strided_slice %38 {offsets = [160, 0], sizes = [8, 128], strides = [1, 1]} : vector<256x128xf32> to vector<8x128xf32>
    %cst_83 = arith.constant dense<0xFF800000> : vector<128xf32>
    %260 = vector.multi_reduction <maximumf>, %259, %cst_83 [0] : vector<8x128xf32> to vector<128xf32>
    %261 = vector.shape_cast %260 : vector<128xf32> to vector<1x128xf32>
    %262 = vector.broadcast %261 : vector<1x128xf32> to vector<8x128xf32>
    %263 = arith.subf %259, %262 : vector<8x128xf32>
    %264 = math.exp %263 : vector<8x128xf32>
    %cst_84 = arith.constant dense<0.000000e+00> : vector<128xf32>
    %265 = vector.multi_reduction <add>, %264, %cst_84 [0] : vector<8x128xf32> to vector<128xf32>
    %266 = vector.shape_cast %265 : vector<128xf32> to vector<1x128xf32>
    %267 = vector.broadcast %266 : vector<1x128xf32> to vector<8x128xf32>
    %268 = arith.divf %264, %267 : vector<8x128xf32>
    %c160 = arith.constant 160 : index
    %c0_85 = arith.constant 0 : index
    %269 = vector.load %arg3[%c160, %c0_85] : memref<256x128xf32, #tpu.memory_space<vmem>>, vector<8x128xf32>
    tpu.vector_store %arg3[%c160, %c0_85], %268 {strides = array<i32>} : memref<256x128xf32, #tpu.memory_space<vmem>>, vector<8x128xf32>,
    %270 = vector.extract_strided_slice %38 {offsets = [168, 0], sizes = [8, 128], strides = [1, 1]} : vector<256x128xf32> to vector<8x128xf32>
    %cst_86 = arith.constant dense<0xFF800000> : vector<128xf32>
    %271 = vector.multi_reduction <maximumf>, %270, %cst_86 [0] : vector<8x128xf32> to vector<128xf32>
    %272 = vector.shape_cast %271 : vector<128xf32> to vector<1x128xf32>
    %273 = vector.broadcast %272 : vector<1x128xf32> to vector<8x128xf32>
    %274 = arith.subf %270, %273 : vector<8x128xf32>
    %275 = math.exp %274 : vector<8x128xf32>
    %cst_87 = arith.constant dense<0.000000e+00> : vector<128xf32>
    %276 = vector.multi_reduction <add>, %275, %cst_87 [0] : vector<8x128xf32> to vector<128xf32>
    %277 = vector.shape_cast %276 : vector<128xf32> to vector<1x128xf32>
    %278 = vector.broadcast %277 : vector<1x128xf32> to vector<8x128xf32>
    %279 = arith.divf %275, %278 : vector<8x128xf32>
    %c168 = arith.constant 168 : index
    %c0_88 = arith.constant 0 : index
    %280 = vector.load %arg3[%c168, %c0_88] : memref<256x128xf32, #tpu.memory_space<vmem>>, vector<8x128xf32>
    tpu.vector_store %arg3[%c168, %c0_88], %279 {strides = array<i32>} : memref<256x128xf32, #tpu.memory_space<vmem>>, vector<8x128xf32>,
    %281 = vector.extract_strided_slice %38 {offsets = [176, 0], sizes = [8, 128], strides = [1, 1]} : vector<256x128xf32> to vector<8x128xf32>
    %cst_89 = arith.constant dense<0xFF800000> : vector<128xf32>
    %282 = vector.multi_reduction <maximumf>, %281, %cst_89 [0] : vector<8x128xf32> to vector<128xf32>
    %283 = vector.shape_cast %282 : vector<128xf32> to vector<1x128xf32>
    %284 = vector.broadcast %283 : vector<1x128xf32> to vector<8x128xf32>
    %285 = arith.subf %281, %284 : vector<8x128xf32>
    %286 = math.exp %285 : vector<8x128xf32>
    %cst_90 = arith.constant dense<0.000000e+00> : vector<128xf32>
    %287 = vector.multi_reduction <add>, %286, %cst_90 [0] : vector<8x128xf32> to vector<128xf32>
    %288 = vector.shape_cast %287 : vector<128xf32> to vector<1x128xf32>
    %289 = vector.broadcast %288 : vector<1x128xf32> to vector<8x128xf32>
    %290 = arith.divf %286, %289 : vector<8x128xf32>
    %c176 = arith.constant 176 : index
    %c0_91 = arith.constant 0 : index
    %291 = vector.load %arg3[%c176, %c0_91] : memref<256x128xf32, #tpu.memory_space<vmem>>, vector<8x128xf32>
    tpu.vector_store %arg3[%c176, %c0_91], %290 {strides = array<i32>} : memref<256x128xf32, #tpu.memory_space<vmem>>, vector<8x128xf32>,
    %292 = vector.extract_strided_slice %38 {offsets = [184, 0], sizes = [8, 128], strides = [1, 1]} : vector<256x128xf32> to vector<8x128xf32>
    %cst_92 = arith.constant dense<0xFF800000> : vector<128xf32>
    %293 = vector.multi_reduction <maximumf>, %292, %cst_92 [0] : vector<8x128xf32> to vector<128xf32>
    %294 = vector.shape_cast %293 : vector<128xf32> to vector<1x128xf32>
    %295 = vector.broadcast %294 : vector<1x128xf32> to vector<8x128xf32>
    %296 = arith.subf %292, %295 : vector<8x128xf32>
    %297 = math.exp %296 : vector<8x128xf32>
    %cst_93 = arith.constant dense<0.000000e+00> : vector<128xf32>
    %298 = vector.multi_reduction <add>, %297, %cst_93 [0] : vector<8x128xf32> to vector<128xf32>
    %299 = vector.shape_cast %298 : vector<128xf32> to vector<1x128xf32>
    %300 = vector.broadcast %299 : vector<1x128xf32> to vector<8x128xf32>
    %301 = arith.divf %297, %300 : vector<8x128xf32>
    %c184 = arith.constant 184 : index
    %c0_94 = arith.constant 0 : index
    %302 = vector.load %arg3[%c184, %c0_94] : memref<256x128xf32, #tpu.memory_space<vmem>>, vector<8x128xf32>
    tpu.vector_store %arg3[%c184, %c0_94], %301 {strides = array<i32>} : memref<256x128xf32, #tpu.memory_space<vmem>>, vector<8x128xf32>,
    %303 = vector.extract_strided_slice %38 {offsets = [192, 0], sizes = [8, 128], strides = [1, 1]} : vector<256x128xf32> to vector<8x128xf32>
    %cst_95 = arith.constant dense<0xFF800000> : vector<128xf32>
    %304 = vector.multi_reduction <maximumf>, %303, %cst_95 [0] : vector<8x128xf32> to vector<128xf32>
    %305 = vector.shape_cast %304 : vector<128xf32> to vector<1x128xf32>
    %306 = vector.broadcast %305 : vector<1x128xf32> to vector<8x128xf32>
    %307 = arith.subf %303, %306 : vector<8x128xf32>
    %308 = math.exp %307 : vector<8x128xf32>
    %cst_96 = arith.constant dense<0.000000e+00> : vector<128xf32>
    %309 = vector.multi_reduction <add>, %308, %cst_96 [0] : vector<8x128xf32> to vector<128xf32>
    %310 = vector.shape_cast %309 : vector<128xf32> to vector<1x128xf32>
    %311 = vector.broadcast %310 : vector<1x128xf32> to vector<8x128xf32>
    %312 = arith.divf %308, %311 : vector<8x128xf32>
    %c192 = arith.constant 192 : index
    %c0_97 = arith.constant 0 : index
    %313 = vector.load %arg3[%c192, %c0_97] : memref<256x128xf32, #tpu.memory_space<vmem>>, vector<8x128xf32>
    tpu.vector_store %arg3[%c192, %c0_97], %312 {strides = array<i32>} : memref<256x128xf32, #tpu.memory_space<vmem>>, vector<8x128xf32>,
    %314 = vector.extract_strided_slice %38 {offsets = [200, 0], sizes = [8, 128], strides = [1, 1]} : vector<256x128xf32> to vector<8x128xf32>
    %cst_98 = arith.constant dense<0xFF800000> : vector<128xf32>
    %315 = vector.multi_reduction <maximumf>, %314, %cst_98 [0] : vector<8x128xf32> to vector<128xf32>
    %316 = vector.shape_cast %315 : vector<128xf32> to vector<1x128xf32>
    %317 = vector.broadcast %316 : vector<1x128xf32> to vector<8x128xf32>
    %318 = arith.subf %314, %317 : vector<8x128xf32>
    %319 = math.exp %318 : vector<8x128xf32>
    %cst_99 = arith.constant dense<0.000000e+00> : vector<128xf32>
    %320 = vector.multi_reduction <add>, %319, %cst_99 [0] : vector<8x128xf32> to vector<128xf32>
    %321 = vector.shape_cast %320 : vector<128xf32> to vector<1x128xf32>
    %322 = vector.broadcast %321 : vector<1x128xf32> to vector<8x128xf32>
    %323 = arith.divf %319, %322 : vector<8x128xf32>
    %c200 = arith.constant 200 : index
    %c0_100 = arith.constant 0 : index
    %324 = vector.load %arg3[%c200, %c0_100] : memref<256x128xf32, #tpu.memory_space<vmem>>, vector<8x128xf32>
    tpu.vector_store %arg3[%c200, %c0_100], %323 {strides = array<i32>} : memref<256x128xf32, #tpu.memory_space<vmem>>, vector<8x128xf32>,
    %325 = vector.extract_strided_slice %38 {offsets = [208, 0], sizes = [8, 128], strides = [1, 1]} : vector<256x128xf32> to vector<8x128xf32>
    %cst_101 = arith.constant dense<0xFF800000> : vector<128xf32>
    %326 = vector.multi_reduction <maximumf>, %325, %cst_101 [0] : vector<8x128xf32> to vector<128xf32>
    %327 = vector.shape_cast %326 : vector<128xf32> to vector<1x128xf32>
    %328 = vector.broadcast %327 : vector<1x128xf32> to vector<8x128xf32>
    %329 = arith.subf %325, %328 : vector<8x128xf32>
    %330 = math.exp %329 : vector<8x128xf32>
    %cst_102 = arith.constant dense<0.000000e+00> : vector<128xf32>
    %331 = vector.multi_reduction <add>, %330, %cst_102 [0] : vector<8x128xf32> to vector<128xf32>
    %332 = vector.shape_cast %331 : vector<128xf32> to vector<1x128xf32>
    %333 = vector.broadcast %332 : vector<1x128xf32> to vector<8x128xf32>
    %334 = arith.divf %330, %333 : vector<8x128xf32>
    %c208 = arith.constant 208 : index
    %c0_103 = arith.constant 0 : index
    %335 = vector.load %arg3[%c208, %c0_103] : memref<256x128xf32, #tpu.memory_space<vmem>>, vector<8x128xf32>
    tpu.vector_store %arg3[%c208, %c0_103], %334 {strides = array<i32>} : memref<256x128xf32, #tpu.memory_space<vmem>>, vector<8x128xf32>,
    %336 = vector.extract_strided_slice %38 {offsets = [216, 0], sizes = [8, 128], strides = [1, 1]} : vector<256x128xf32> to vector<8x128xf32>
    %cst_104 = arith.constant dense<0xFF800000> : vector<128xf32>
    %337 = vector.multi_reduction <maximumf>, %336, %cst_104 [0] : vector<8x128xf32> to vector<128xf32>
    %338 = vector.shape_cast %337 : vector<128xf32> to vector<1x128xf32>
    %339 = vector.broadcast %338 : vector<1x128xf32> to vector<8x128xf32>
    %340 = arith.subf %336, %339 : vector<8x128xf32>
    %341 = math.exp %340 : vector<8x128xf32>
    %cst_105 = arith.constant dense<0.000000e+00> : vector<128xf32>
    %342 = vector.multi_reduction <add>, %341, %cst_105 [0] : vector<8x128xf32> to vector<128xf32>
    %343 = vector.shape_cast %342 : vector<128xf32> to vector<1x128xf32>
    %344 = vector.broadcast %343 : vector<1x128xf32> to vector<8x128xf32>
    %345 = arith.divf %341, %344 : vector<8x128xf32>
    %c216 = arith.constant 216 : index
    %c0_106 = arith.constant 0 : index
    %346 = vector.load %arg3[%c216, %c0_106] : memref<256x128xf32, #tpu.memory_space<vmem>>, vector<8x128xf32>
    tpu.vector_store %arg3[%c216, %c0_106], %345 {strides = array<i32>} : memref<256x128xf32, #tpu.memory_space<vmem>>, vector<8x128xf32>,
    %347 = vector.extract_strided_slice %38 {offsets = [224, 0], sizes = [8, 128], strides = [1, 1]} : vector<256x128xf32> to vector<8x128xf32>
    %cst_107 = arith.constant dense<0xFF800000> : vector<128xf32>
    %348 = vector.multi_reduction <maximumf>, %347, %cst_107 [0] : vector<8x128xf32> to vector<128xf32>
    %349 = vector.shape_cast %348 : vector<128xf32> to vector<1x128xf32>
    %350 = vector.broadcast %349 : vector<1x128xf32> to vector<8x128xf32>
    %351 = arith.subf %347, %350 : vector<8x128xf32>
    %352 = math.exp %351 : vector<8x128xf32>
    %cst_108 = arith.constant dense<0.000000e+00> : vector<128xf32>
    %353 = vector.multi_reduction <add>, %352, %cst_108 [0] : vector<8x128xf32> to vector<128xf32>
    %354 = vector.shape_cast %353 : vector<128xf32> to vector<1x128xf32>
    %355 = vector.broadcast %354 : vector<1x128xf32> to vector<8x128xf32>
    %356 = arith.divf %352, %355 : vector<8x128xf32>
    %c224 = arith.constant 224 : index
    %c0_109 = arith.constant 0 : index
    %357 = vector.load %arg3[%c224, %c0_109] : memref<256x128xf32, #tpu.memory_space<vmem>>, vector<8x128xf32>
    tpu.vector_store %arg3[%c224, %c0_109], %356 {strides = array<i32>} : memref<256x128xf32, #tpu.memory_space<vmem>>, vector<8x128xf32>,
    %358 = vector.extract_strided_slice %38 {offsets = [232, 0], sizes = [8, 128], strides = [1, 1]} : vector<256x128xf32> to vector<8x128xf32>
    %cst_110 = arith.constant dense<0xFF800000> : vector<128xf32>
    %359 = vector.multi_reduction <maximumf>, %358, %cst_110 [0] : vector<8x128xf32> to vector<128xf32>
    %360 = vector.shape_cast %359 : vector<128xf32> to vector<1x128xf32>
    %361 = vector.broadcast %360 : vector<1x128xf32> to vector<8x128xf32>
    %362 = arith.subf %358, %361 : vector<8x128xf32>
    %363 = math.exp %362 : vector<8x128xf32>
    %cst_111 = arith.constant dense<0.000000e+00> : vector<128xf32>
    %364 = vector.multi_reduction <add>, %363, %cst_111 [0] : vector<8x128xf32> to vector<128xf32>
    %365 = vector.shape_cast %364 : vector<128xf32> to vector<1x128xf32>
    %366 = vector.broadcast %365 : vector<1x128xf32> to vector<8x128xf32>
    %367 = arith.divf %363, %366 : vector<8x128xf32>
    %c232 = arith.constant 232 : index
    %c0_112 = arith.constant 0 : index
    %368 = vector.load %arg3[%c232, %c0_112] : memref<256x128xf32, #tpu.memory_space<vmem>>, vector<8x128xf32>
    tpu.vector_store %arg3[%c232, %c0_112], %367 {strides = array<i32>} : memref<256x128xf32, #tpu.memory_space<vmem>>, vector<8x128xf32>,
    %369 = vector.extract_strided_slice %38 {offsets = [240, 0], sizes = [8, 128], strides = [1, 1]} : vector<256x128xf32> to vector<8x128xf32>
    %cst_113 = arith.constant dense<0xFF800000> : vector<128xf32>
    %370 = vector.multi_reduction <maximumf>, %369, %cst_113 [0] : vector<8x128xf32> to vector<128xf32>
    %371 = vector.shape_cast %370 : vector<128xf32> to vector<1x128xf32>
    %372 = vector.broadcast %371 : vector<1x128xf32> to vector<8x128xf32>
    %373 = arith.subf %369, %372 : vector<8x128xf32>
    %374 = math.exp %373 : vector<8x128xf32>
    %cst_114 = arith.constant dense<0.000000e+00> : vector<128xf32>
    %375 = vector.multi_reduction <add>, %374, %cst_114 [0] : vector<8x128xf32> to vector<128xf32>
    %376 = vector.shape_cast %375 : vector<128xf32> to vector<1x128xf32>
    %377 = vector.broadcast %376 : vector<1x128xf32> to vector<8x128xf32>
    %378 = arith.divf %374, %377 : vector<8x128xf32>
    %c240 = arith.constant 240 : index
    %c0_115 = arith.constant 0 : index
    %379 = vector.load %arg3[%c240, %c0_115] : memref<256x128xf32, #tpu.memory_space<vmem>>, vector<8x128xf32>
    tpu.vector_store %arg3[%c240, %c0_115], %378 {strides = array<i32>} : memref<256x128xf32, #tpu.memory_space<vmem>>, vector<8x128xf32>,
    %380 = vector.extract_strided_slice %38 {offsets = [248, 0], sizes = [8, 128], strides = [1, 1]} : vector<256x128xf32> to vector<8x128xf32>
    %cst_116 = arith.constant dense<0xFF800000> : vector<128xf32>
    %381 = vector.multi_reduction <maximumf>, %380, %cst_116 [0] : vector<8x128xf32> to vector<128xf32>
    %382 = vector.shape_cast %381 : vector<128xf32> to vector<1x128xf32>
    %383 = vector.broadcast %382 : vector<1x128xf32> to vector<8x128xf32>
    %384 = arith.subf %380, %383 : vector<8x128xf32>
    %385 = math.exp %384 : vector<8x128xf32>
    %cst_117 = arith.constant dense<0.000000e+00> : vector<128xf32>
    %386 = vector.multi_reduction <add>, %385, %cst_117 [0] : vector<8x128xf32> to vector<128xf32>
    %387 = vector.shape_cast %386 : vector<128xf32> to vector<1x128xf32>
    %388 = vector.broadcast %387 : vector<1x128xf32> to vector<8x128xf32>
    %389 = arith.divf %385, %388 : vector<8x128xf32>
    %c248 = arith.constant 248 : index
    %c0_118 = arith.constant 0 : index
    %390 = vector.load %arg3[%c248, %c0_118] : memref<256x128xf32, #tpu.memory_space<vmem>>, vector<8x128xf32>
    tpu.vector_store %arg3[%c248, %c0_118], %389 {strides = array<i32>} : memref<256x128xf32, #tpu.memory_space<vmem>>, vector<8x128xf32>,
    return
  }
  func.func @transform_0(%arg0: i32) -> (i32, i32) {
    %c0_i32 = arith.constant 0 : i32
    %c0_i32_0 = arith.constant 0 : i32
    return %arg0, %c0_i32 : i32, i32
  }
  func.func @transform_1(%arg0: i32) -> (i32, i32) {
    %c0_i32 = arith.constant 0 : i32
    %c0_i32_0 = arith.constant 0 : i32
    %c0_i32_1 = arith.constant 0 : i32
    return %c0_i32, %c0_i32_0 : i32, i32
  }
  func.func @transform_2(%arg0: i32) -> (i32, i32) {
    %c0_i32 = arith.constant 0 : i32
    %c0_i32_0 = arith.constant 0 : i32
    return %arg0, %c0_i32 : i32, i32
  }
}

</mosaic_0001>

<llo_original>
// kernel: actor_forward_batched.1
$region0: #{actor_forward_batched.1}
  #allocation0 [shape = 'u32[]', space=smem, size = 0x4, offset = 0x4, fixed_abs, tag = 'smem constant byte address 0x4 - core index']
  #allocation1 [shape = 'u32[144,128]{1,0:T(1,128)}', space=vmem, size = 0x12000, scoped, tag = 'internal scratch']
  %s0 = inlined_call_operand.vmem [shape: f32[512,128], index: 0, kind: input, shape index: {}]
  %s1 = inlined_call_operand.vmem [shape: f32[648,128], index: 1, kind: input, shape index: {}]
  %s2 = inlined_call_operand.vmem [shape: f32[512,128], index: 2, kind: output, shape index: {}]
  %s3 = sld [smem:[#allocation0]]
  $region41: #{actor_forward_batched.1} parent=0
    _
  %s5 = ssub.s32 1, %s3
  %s6 = scalar_select 0, %s5, %s3
  loop: start=0, step=1, limit=4
  $region2: #{actor_forward_batched.1} parent=0 // loop_pre_header
    _
  $region3: #{actor_forward_batched.1} parent=0 // loop_header
    %s8 = sphi 0, %s12
    %p9 = scmp.ge.s32.totalorder %s8, 4
    %s18 = sphi 0, %s20
    %s21 = sphi 0, %s18
    %s22 = sphi 0, %s21
    %s38 = sphi 0, %s22
    %s42 = sphi 0, %s42
    %s44 = sphi 0, %s42
    %s45 = sphi 0, %s44
    %s59 = sphi 0, %s45
    %s65 = sphi 0, %s67
    %s68 = sphi 0, %s65
    %s69 = sphi 0, %s68
    %s85 = sphi 0, %s69
  $region4: #{actor_forward_batched.1} parent=0 // loop_header_branch
    %11 = sbr.rel (%p9) target = $region8
  $region5: #{actor_forward_batched.1} parent=0 // loop_body
    %s13 = ssub.s32 %s8, 1
    %s14 = ssub.s32 %s8, 2
    %s15 = sadd.s32 %s8, 1
    %s16 = ssub.s32 %s8, %s15
    %p17 = scmp.eq.s32.totalorder %s16, 0
    %s19 = sadd.s32 %s18, 1
    %s20 = scalar_select %p17, %s18, %s19
    %p23 = pneg %p17
    %p24 = scmp.eq.s32.totalorder %s8, 1
    %p25 = por %p23, %p24
    %p26 = scmp.ne.s32.totalorder %s18, %s21
    %p27 = scmp.eq.s32.totalorder %s8, 0
    %p28 = por %p26, %p27
    %p29 = scmp.ne.s32.totalorder %s18, %s21
    %p30 = scmp.eq.s32.totalorder %s13, 1
    %p31 = por %p29, %p30
    %p32 = scmp.ne.s32.totalorder %s21, %s22
    %p33 = scmp.eq.s32.totalorder %s13, 0
    %p34 = por %p32, %p33
    %p35 = scmp.ne.s32.totalorder %s21, %s22
    %p36 = scmp.eq.s32.totalorder %s14, 1
    %p37 = por %p35, %p36
    %p39 = scmp.ne.s32.totalorder %s22, %s38
    %p40 = scmp.eq.s32.totalorder %s14, 0
    %p41 = por %p39, %p40
    %s43 = sadd.s32 %s42, 1
    %p46 = scmp.eq.s32.totalorder %s8, 1
    %p47 = scmp.ne.s32.totalorder %s42, %s44
    %p48 = scmp.eq.s32.totalorder %s8, 0
    %p49 = por %p47, %p48
    %p50 = scmp.ne.s32.totalorder %s42, %s44
    %p51 = scmp.eq.s32.totalorder %s13, 1
    %p52 = por %p50, %p51
    %p53 = scmp.ne.s32.totalorder %s44, %s45
    %p54 = scmp.eq.s32.totalorder %s13, 0
    %p55 = por %p53, %p54
    %p56 = scmp.ne.s32.totalorder %s44, %s45
    %p57 = scmp.eq.s32.totalorder %s14, 1
    %p58 = por %p56, %p57
    %p60 = scmp.ne.s32.totalorder %s45, %s59
    %p61 = scmp.eq.s32.totalorder %s14, 0
    %p62 = por %p60, %p61
    %s63 = ssub.s32 %s8, %s15
    %p64 = scmp.eq.s32.totalorder %s63, 0
    %s66 = sadd.s32 %s65, 1
    %s67 = scalar_select %p64, %s65, %s66
    %p70 = pneg %p64
    %p71 = scmp.eq.s32.totalorder %s8, 1
    %p72 = por %p70, %p71
    %p73 = scmp.ne.s32.totalorder %s65, %s68
    %p74 = scmp.eq.s32.totalorder %s8, 0
    %p75 = por %p73, %p74
    %p76 = scmp.ne.s32.totalorder %s65, %s68
    %p77 = scmp.eq.s32.totalorder %s13, 1
    %p78 = por %p76, %p77
    %p79 = scmp.ne.s32.totalorder %s68, %s69
    %p80 = scmp.eq.s32.totalorder %s13, 0
    %p81 = por %p79, %p80
    %p82 = scmp.ne.s32.totalorder %s68, %s69
    %p83 = scmp.eq.s32.totalorder %s14, 1
    %p84 = por %p82, %p83
    %p86 = scmp.ne.s32.totalorder %s69, %s85
    %p87 = scmp.eq.s32.totalorder %s14, 0
    %p88 = por %p86, %p87
    %p89 = scmp.le.s32.totalorder 1, %s8
    %p90 = scmp.lt.s32.totalorder %s8, 3
    %p91 = pnand %p89, %p90
    %p92 = pneg %p91
    // Predicated region
    $region9: #{actor_forward_batched.1} parent=5 // pred_check
      _
    $region10: #{actor_forward_batched.1} parent=5 // pred_check_branch
      %94 = sbr.rel (%p91) target = $region12
    $region11: #{actor_forward_batched.1} parent=5 // pred_region
      %s95 = ssub.s32 %s8, 1
      // Predicated region
      $region13: #{actor_forward_batched.1} parent=11 // pred_check
        %p96 = pneg %p55
      $region14: #{actor_forward_batched.1} parent=11 // pred_check_branch
        %98 = sbr.rel (%p96) target = $region16
      $region15: #{actor_forward_batched.1} parent=11 // pred_region
        _
      $region16: #{actor_forward_batched.1} parent=11 // pred_fallthru
        _
    $region12: #{actor_forward_batched.1} parent=5 // pred_fallthru
      _
    %p99 = scmp.lt.s32.totalorder %s8, 2
    // Predicated region
    $region17: #{actor_forward_batched.1} parent=5 // pred_check
      %p100 = pneg %p99
    $region18: #{actor_forward_batched.1} parent=5 // pred_check_branch
      %102 = sbr.rel (%p100) target = $region20
    $region19: #{actor_forward_batched.1} parent=5 // pred_region
      // Predicated region
      $region21: #{actor_forward_batched.1} parent=19 // pred_check
        %p103 = pneg %p28
      $region22: #{actor_forward_batched.1} parent=19 // pred_check_branch
        %105 = sbr.rel (%p103) target = $region24
      $region23: #{actor_forward_batched.1} parent=19 // pred_region
        %s106 = smul.u32 32, %s8
        %p107 = scmp.lt.s32.totalorder %s106, 63
        %s108 = scalar_select %p107, %s106, 63
        %s109 = smul.addr %s108, 8
        %s110 = scalar_lea.vmem %s0, %s109
        %s111 = smul.u32 32, %s8
      $region24: #{actor_forward_batched.1} parent=19 // pred_fallthru
        _
    $region20: #{actor_forward_batched.1} parent=5 // pred_fallthru
      _
    %p112 = scmp.le.s32.totalorder 1, %s8
    %p113 = scmp.lt.s32.totalorder %s8, 3
    %p114 = pnand %p112, %p113
    %p115 = pneg %p114
    // Predicated region
    $region25: #{actor_forward_batched.1} parent=5 // pred_check
      _
    $region26: #{actor_forward_batched.1} parent=5 // pred_check_branch
      %117 = sbr.rel (%p114) target = $region28
    $region27: #{actor_forward_batched.1} parent=5 // pred_region
      %s118 = ssub.s32 %s8, 1
      %s119 = smul.u32 32, %s13
      %p120 = scmp.lt.s32.totalorder %s119, 63
      %s121 = scalar_select %p120, %s119, 63
      %s122 = smul.addr %s121, 8
      %s123 = scalar_lea.vmem %s0, %s122
      %p124 = pneg %p34
      %p125 = pneg %p31
      %p126 = pneg %p55
      %p127 = pneg %p52
      %p128 = pneg %p81
      %p129 = pneg %p78
      %s130 = smul.u32 32, %s13
      %p131 = scmp.lt.s32.totalorder %s130, 63
      %s132 = scalar_select %p131, %s130, 63
      %s133 = smul.addr %s132, 8
      %s134 = scalar_lea.vmem %s2, %s133
      %s135 = smul.u32 32, %s13
      %p136 = scmp.lt.s32.totalorder %s135, 63
      %s137 = scalar_select %p136, %s135, 63
      %s138 = smul.addr %s137, 8
      %s139 = scalar_lea.vmem %s0, %s138
      %s140 = smul.u32 32, %s13
      %s141 = smul.u32 32, %s13
      %p142 = scmp.lt.s32.totalorder %s141, 63
      %s143 = scalar_select %p142, %s141, 63
      %s144 = smul.addr %s143, 8
      %s145 = scalar_lea.vmem %s2, %s144
      %s146 = smul.u32 32, %s13
      %v147 = vld [vmem:[%s139] sm:$0xff]
      %v148 = vld [vmem:[%s139 + $0x8] sm:$0xff]
      %v149 = vld [vmem:[%s139 + $0x10] sm:$0xff]
      %v150 = vld [vmem:[%s139 + $0x18] sm:$0xff]
      %v151 = vld [vmem:[%s139 + $0x20] sm:$0xff]
      %v152 = vld [vmem:[%s139 + $0x28] sm:$0xff]
      %v153 = vld [vmem:[%s139 + $0x30] sm:$0xff]
      %v154 = vld [vmem:[%s139 + $0x38] sm:$0xff]
      %v155 = vld [vmem:[%s139 + $0x40] sm:$0xff]
      %v156 = vld [vmem:[%s139 + $0x48] sm:$0xff]
      %v157 = vld [vmem:[%s139 + $0x50] sm:$0xff]
      %v158 = vld [vmem:[%s139 + $0x58] sm:$0xff]
      %v159 = vld [vmem:[%s139 + $0x60] sm:$0xff]
      %v160 = vld [vmem:[%s139 + $0x68] sm:$0xff]
      %v161 = vld [vmem:[%s139 + $0x70] sm:$0xff]
      %v162 = vld [vmem:[%s139 + $0x78] sm:$0xff]
      %v163 = vld [vmem:[%s139 + $0x80] sm:$0xff]
      %v164 = vld [vmem:[%s139 + $0x88] sm:$0xff]
      %v165 = vld [vmem:[%s139 + $0x90] sm:$0xff]
      %v166 = vld [vmem:[%s139 + $0x98] sm:$0xff]
      %v167 = vld [vmem:[%s139 + $0xa0] sm:$0xff]
      %v168 = vld [vmem:[%s139 + $0xa8] sm:$0xff]
      %v169 = vld [vmem:[%s139 + $0xb0] sm:$0xff]
      %v170 = vld [vmem:[%s139 + $0xb8] sm:$0xff]
      %v171 = vld [vmem:[%s139 + $0xc0] sm:$0xff]
      %v172 = vld [vmem:[%s139 + $0xc8] sm:$0xff]
      %v173 = vld [vmem:[%s139 + $0xd0] sm:$0xff]
      %v174 = vld [vmem:[%s139 + $0xd8] sm:$0xff]
      %v175 = vld [vmem:[%s139 + $0xe0] sm:$0xff]
      %v176 = vld [vmem:[%s139 + $0xe8] sm:$0xff]
      %v177 = vld [vmem:[%s139 + $0xf0] sm:$0xff]
      %v178 = vld [vmem:[%s139 + $0xf8] sm:$0xff]
      %v179 = vld [vmem:[%s1] sm:$0xff]
      %v180 = vld [vmem:[%s1 + $0x8] sm:$0xff]
      %v181 = vld [vmem:[%s1 + $0x10] sm:$0xff]
      %v182 = vld [vmem:[%s1 + $0x18] sm:$0xff]
      %v183 = vld [vmem:[%s1 + $0x20] sm:$0xff]
      %v184 = vld [vmem:[%s1 + $0x28] sm:$0xff]
      %v185 = vld [vmem:[%s1 + $0x30] sm:$0xff]
      %v186 = vld [vmem:[%s1 + $0x38] sm:$0xff]
      %v187 = vld [vmem:[%s1 + $0x40] sm:$0xff]
      %v188 = vld [vmem:[%s1 + $0x48] sm:$0xff]
      %v189 = vld [vmem:[%s1 + $0x50] sm:$0xff]
      %v190 = vld [vmem:[%s1 + $0x58] sm:$0xff]
      %v191 = vld [vmem:[%s1 + $0x60] sm:$0xff]
      %v192 = vld [vmem:[%s1 + $0x68] sm:$0xff]
      %v193 = vld [vmem:[%s1 + $0x70] sm:$0xff]
      %v194 = vld [vmem:[%s1 + $0x78] sm:$0xff]
      %v195 = vld [vmem:[%s1 + $0x280] sm:$0x1]
      %v196 = vlaneseq
      %v197 = vshrl.u32 %v196, 7
      %v198 = vsub.s32 0, %v197
      %v199 = vrot.slane %v195, %v198
      %200 = vmatprep.subr.mxu0 0.0
      %201 = vmatpush1.msra.mxu0 %v179
      %202 = vmatprep.subr.mxu0 0.0
      %203 = vmatpush1.msra.mxu0 %v180
      %204 = vmatprep.subr.mxu0 0.0
      %205 = vmatpush1.msra.mxu0 %v181
      %206 = vmatprep.subr.mxu0 0.0
      %207 = vmatpush1.msra.mxu0 %v182
      %208 = vmatprep.subr.mxu0 0.0
      %209 = vmatpush1.msra.mxu0 %v183
      %210 = vmatprep.subr.mxu0 0.0
      %211 = vmatpush1.msra.mxu0 %v184
      %212 = vmatprep.subr.mxu0 0.0
      %213 = vmatpush1.msra.mxu0 %v185
      %214 = vmatprep.subr.mxu0 0.0
      %215 = vmatpush1.msra.mxu0 %v186
      %216 = vmatprep.subr.mxu0 0.0
      %217 = vmatpush1.msra.mxu0 %v187
      %218 = vmatprep.subr.mxu0 0.0
      %219 = vmatpush1.msra.mxu0 %v188
      %220 = vmatprep.subr.mxu0 0.0
      %221 = vmatpush1.msra.mxu0 %v189
      %222 = vmatprep.subr.mxu0 0.0
      %223 = vmatpush1.msra.mxu0 %v190
      %224 = vmatprep.subr.mxu0 0.0
      %225 = vmatpush1.msra.mxu0 %v191
      %226 = vmatprep.subr.mxu0 0.0
      %227 = vmatpush1.msra.mxu0 %v192
      %228 = vmatprep.subr.mxu0 0.0
      %229 = vmatpush1.msra.mxu0 %v193
      %230 = vmatprep.subr.mxu0 0.0
      %231 = vmatpush1.msra.mxu0 %v194
      %232 = vmatprep.subr.mxu0 0.0
      %233 = vmatpush1.msra.mxu0 0.0
      %234 = vmatprep.subr.mxu0 0.0
      %235 = vmatpush1.msra.mxu0 0.0
      %236 = vmatprep.subr.mxu0 0.0
      %237 = vmatpush1.msra.mxu0 0.0
      %238 = vmatprep.subr.mxu0 0.0
      %239 = vmatpush1.msra.mxu0 0.0
      %240 = vmatprep.subr.mxu0 0.0
      %241 = vmatpush1.msra.mxu0 0.0
      %242 = vmatprep.subr.mxu0 0.0
      %243 = vmatpush1.msra.mxu0 0.0
      %244 = vmatprep.subr.mxu0 0.0
      %245 = vmatpush1.msra.mxu0 0.0
      %246 = vmatprep.subr.mxu0 0.0
      %247 = vmatpush1.msra.mxu0 0.0
      %248 = vmatprep.subr.mxu0 0.0
      %249 = vmatpush1.msra.mxu0 0.0
      %250 = vmatprep.subr.mxu0 0.0
      %251 = vmatpush1.msra.mxu0 0.0
      %252 = vmatprep.subr.mxu0 0.0
      %253 = vmatpush1.msra.mxu0 0.0
      %254 = vmatprep.subr.mxu0 0.0
      %255 = vmatpush1.msra.mxu0 0.0
      %256 = vmatprep.subr.mxu0 0.0
      %257 = vmatpush1.msra.mxu0 0.0
      %258 = vmatprep.subr.mxu0 0.0
      %259 = vmatpush1.msra.mxu0 0.0
      %260 = vmatprep.subr.mxu0 0.0
      %261 = vmatpush1.msra.mxu0 0.0
      %262 = vmatprep.subr.mxu0 0.0
      %263 = vmatpush1.msra.mxu0 0.0
      %264 = vmatprep.mubr.f32.mxu0 0.0
      %265 = vmatmul.mubr.f32.gmra.mrb[0].mxu0 %v147
      %v266 = vpop.f32.mrb[0].mxu0
      %v267 = vadd.f32 %v199, %v266
      %v268 = vpop.f32.mrb[0].mxu0
      %269 = vmatprep.mubr.f32.mxu0 0.0
      %270 = vmatmul.mubr.f32.gmra.mrb[0].mxu0 %v148
      %v271 = vpop.f32.mrb[0].mxu0
      %v272 = vadd.f32 %v199, %v271
      %v273 = vpop.f32.mrb[0].mxu0
      %274 = vmatprep.mubr.f32.mxu0 0.0
      %275 = vmatmul.mubr.f32.gmra.mrb[0].mxu0 %v149
      %v276 = vpop.f32.mrb[0].mxu0
      %v277 = vadd.f32 %v199, %v276
      %v278 = vpop.f32.mrb[0].mxu0
      %279 = vmatprep.mubr.f32.mxu0 0.0
      %280 = vmatmul.mubr.f32.gmra.mrb[0].mxu0 %v150
      %v281 = vpop.f32.mrb[0].mxu0
      %v282 = vadd.f32 %v199, %v281
      %v283 = vpop.f32.mrb[0].mxu0
      %284 = vmatprep.mubr.f32.mxu0 0.0
      %285 = vmatmul.mubr.f32.gmra.mrb[0].mxu0 %v151
      %v286 = vpop.f32.mrb[0].mxu0
      %v287 = vadd.f32 %v199, %v286
      %v288 = vpop.f32.mrb[0].mxu0
      %289 = vmatprep.mubr.f32.mxu0 0.0
      %290 = vmatmul.mubr.f32.gmra.mrb[0].mxu0 %v152
      %v291 = vpop.f32.mrb[0].mxu0
      %v292 = vadd.f32 %v199, %v291
      %v293 = vpop.f32.mrb[0].mxu0
      %294 = vmatprep.mubr.f32.mxu0 0.0
      %295 = vmatmul.mubr.f32.gmra.mrb[0].mxu0 %v153
      %v296 = vpop.f32.mrb[0].mxu0
      %v297 = vadd.f32 %v199, %v296
      %v298 = vpop.f32.mrb[0].mxu0
      %299 = vmatprep.mubr.f32.mxu0 0.0
      %300 = vmatmul.mubr.f32.gmra.mrb[0].mxu0 %v154
      %v301 = vpop.f32.mrb[0].mxu0
      %v302 = vadd.f32 %v199, %v301
      %v303 = vpop.f32.mrb[0].mxu0
      %304 = vmatprep.mubr.f32.mxu0 0.0
      %305 = vmatmul.mubr.f32.gmra.mrb[0].mxu0 %v155
      %v306 = vpop.f32.mrb[0].mxu0
      %v307 = vadd.f32 %v199, %v306
      %v308 = vpop.f32.mrb[0].mxu0
      %309 = vmatprep.mubr.f32.mxu0 0.0
      %310 = vmatmul.mubr.f32.gmra.mrb[0].mxu0 %v156
      %v311 = vpop.f32.mrb[0].mxu0
      %v312 = vadd.f32 %v199, %v311
      %v313 = vpop.f32.mrb[0].mxu0
      %314 = vmatprep.mubr.f32.mxu0 0.0
      %315 = vmatmul.mubr.f32.gmra.mrb[0].mxu0 %v157
      %v316 = vpop.f32.mrb[0].mxu0
      %v317 = vadd.f32 %v199, %v316
      %v318 = vpop.f32.mrb[0].mxu0
      %319 = vmatprep.mubr.f32.mxu0 0.0
      %320 = vmatmul.mubr.f32.gmra.mrb[0].mxu0 %v158
      %v321 = vpop.f32.mrb[0].mxu0
      %v322 = vadd.f32 %v199, %v321
      %v323 = vpop.f32.mrb[0].mxu0
      %324 = vmatprep.mubr.f32.mxu0 0.0
      %325 = vmatmul.mubr.f32.gmra.mrb[0].mxu0 %v159
      %v326 = vpop.f32.mrb[0].mxu0
      %v327 = vadd.f32 %v199, %v326
      %v328 = vpop.f32.mrb[0].mxu0
      %329 = vmatprep.mubr.f32.mxu0 0.0
      %330 = vmatmul.mubr.f32.gmra.mrb[0].mxu0 %v160
      %v331 = vpop.f32.mrb[0].mxu0
      %v332 = vadd.f32 %v199, %v331
      %v333 = vpop.f32.mrb[0].mxu0
      %334 = vmatprep.mubr.f32.mxu0 0.0
      %335 = vmatmul.mubr.f32.gmra.mrb[0].mxu0 %v161
      %v336 = vpop.f32.mrb[0].mxu0
      %v337 = vadd.f32 %v199, %v336
      %v338 = vpop.f32.mrb[0].mxu0
      %339 = vmatprep.mubr.f32.mxu0 0.0
      %340 = vmatmul.mubr.f32.gmra.mrb[0].mxu0 %v162
      %v341 = vpop.f32.mrb[0].mxu0
      %v342 = vadd.f32 %v199, %v341
      %v343 = vpop.f32.mrb[0].mxu0
      %344 = vmatprep.mubr.f32.mxu0 0.0
      %345 = vmatmul.mubr.f32.gmra.mrb[0].mxu0 %v163
      %v346 = vpop.f32.mrb[0].mxu0
      %v347 = vadd.f32 %v199, %v346
      %v348 = vpop.f32.mrb[0].mxu0
      %349 = vmatprep.mubr.f32.mxu0 0.0
      %350 = vmatmul.mubr.f32.gmra.mrb[0].mxu0 %v164
      %v351 = vpop.f32.mrb[0].mxu0
      %v352 = vadd.f32 %v199, %v351
      %v353 = vpop.f32.mrb[0].mxu0
      %354 = vmatprep.mubr.f32.mxu0 0.0
      %355 = vmatmul.mubr.f32.gmra.mrb[0].mxu0 %v165
      %v356 = vpop.f32.mrb[0].mxu0
      %v357 = vadd.f32 %v199, %v356
      %v358 = vpop.f32.mrb[0].mxu0
      %359 = vmatprep.mubr.f32.mxu0 0.0
      %360 = vmatmul.mubr.f32.gmra.mrb[0].mxu0 %v166
      %v361 = vpop.f32.mrb[0].mxu0
      %v362 = vadd.f32 %v199, %v361
      %v363 = vpop.f32.mrb[0].mxu0
      %364 = vmatprep.mubr.f32.mxu0 0.0
      %365 = vmatmul.mubr.f32.gmra.mrb[0].mxu0 %v167
      %v366 = vpop.f32.mrb[0].mxu0
      %v367 = vadd.f32 %v199, %v366
      %v368 = vpop.f32.mrb[0].mxu0
      %369 = vmatprep.mubr.f32.mxu0 0.0
      %370 = vmatmul.mubr.f32.gmra.mrb[0].mxu0 %v168
      %v371 = vpop.f32.mrb[0].mxu0
      %v372 = vadd.f32 %v199, %v371
      %v373 = vpop.f32.mrb[0].mxu0
      %374 = vmatprep.mubr.f32.mxu0 0.0
      %375 = vmatmul.mubr.f32.gmra.mrb[0].mxu0 %v169
      %v376 = vpop.f32.mrb[0].mxu0
      %v377 = vadd.f32 %v199, %v376
      %v378 = vpop.f32.mrb[0].mxu0
      %379 = vmatprep.mubr.f32.mxu0 0.0
      %380 = vmatmul.mubr.f32.gmra.mrb[0].mxu0 %v170
      %v381 = vpop.f32.mrb[0].mxu0
      %v382 = vadd.f32 %v199, %v381
      %v383 = vpop.f32.mrb[0].mxu0
      %384 = vmatprep.mubr.f32.mxu0 0.0
      %385 = vmatmul.mubr.f32.gmra.mrb[0].mxu0 %v171
      %v386 = vpop.f32.mrb[0].mxu0
      %v387 = vadd.f32 %v199, %v386
      %v388 = vpop.f32.mrb[0].mxu0
      %389 = vmatprep.mubr.f32.mxu0 0.0
      %390 = vmatmul.mubr.f32.gmra.mrb[0].mxu0 %v172
      %v391 = vpop.f32.mrb[0].mxu0
      %v392 = vadd.f32 %v199, %v391
      %v393 = vpop.f32.mrb[0].mxu0
      %394 = vmatprep.mubr.f32.mxu0 0.0
      %395 = vmatmul.mubr.f32.gmra.mrb[0].mxu0 %v173
      %v396 = vpop.f32.mrb[0].mxu0
      %v397 = vadd.f32 %v199, %v396
      %v398 = vpop.f32.mrb[0].mxu0
      %399 = vmatprep.mubr.f32.mxu0 0.0
      %400 = vmatmul.mubr.f32.gmra.mrb[0].mxu0 %v174
      %v401 = vpop.f32.mrb[0].mxu0
      %v402 = vadd.f32 %v199, %v401
      %v403 = vpop.f32.mrb[0].mxu0
      %404 = vmatprep.mubr.f32.mxu0 0.0
      %405 = vmatmul.mubr.f32.gmra.mrb[0].mxu0 %v175
      %v406 = vpop.f32.mrb[0].mxu0
      %v407 = vadd.f32 %v199, %v406
      %v408 = vpop.f32.mrb[0].mxu0
      %409 = vmatprep.mubr.f32.mxu0 0.0
      %410 = vmatmul.mubr.f32.gmra.mrb[0].mxu0 %v176
      %v411 = vpop.f32.mrb[0].mxu0
      %v412 = vadd.f32 %v199, %v411
      %v413 = vpop.f32.mrb[0].mxu0
      %414 = vmatprep.mubr.f32.mxu0 0.0
      %415 = vmatmul.mubr.f32.gmra.mrb[0].mxu0 %v177
      %v416 = vpop.f32.mrb[0].mxu0
      %v417 = vadd.f32 %v199, %v416
      %v418 = vpop.f32.mrb[0].mxu0
      %419 = vmatprep.mubr.f32.mxu0 0.0
      %420 = vmatmul.mubr.f32.gmra.mrb[0].mxu0 %v178
      %v421 = vpop.f32.mrb[0].mxu0
      %v422 = vadd.f32 %v199, %v421
      %v423 = vpop.f32.mrb[0].mxu0
      %424 = vdwg.mxu0
      %vm425 = vcmp.gt.f32.partialorder %v267, 0.0
      %vm426 = vcmp.gt.f32.partialorder %v272, 0.0
      %vm427 = vcmp.gt.f32.partialorder %v277, 0.0
      %vm428 = vcmp.gt.f32.partialorder %v282, 0.0
      %vm429 = vcmp.gt.f32.partialorder %v287, 0.0
      %vm430 = vcmp.gt.f32.partialorder %v292, 0.0
      %vm431 = vcmp.gt.f32.partialorder %v297, 0.0
      %vm432 = vcmp.gt.f32.partialorder %v302, 0.0
      %vm433 = vcmp.gt.f32.partialorder %v307, 0.0
      %vm434 = vcmp.gt.f32.partialorder %v312, 0.0
      %vm435 = vcmp.gt.f32.partialorder %v317, 0.0
      %vm436 = vcmp.gt.f32.partialorder %v322, 0.0
      %vm437 = vcmp.gt.f32.partialorder %v327, 0.0
      %vm438 = vcmp.gt.f32.partialorder %v332, 0.0
      %vm439 = vcmp.gt.f32.partialorder %v337, 0.0
      %vm440 = vcmp.gt.f32.partialorder %v342, 0.0
      %vm441 = vcmp.gt.f32.partialorder %v347, 0.0
      %vm442 = vcmp.gt.f32.partialorder %v352, 0.0
      %vm443 = vcmp.gt.f32.partialorder %v357, 0.0
      %vm444 = vcmp.gt.f32.partialorder %v362, 0.0
      %vm445 = vcmp.gt.f32.partialorder %v367, 0.0
      %vm446 = vcmp.gt.f32.partialorder %v372, 0.0
      %vm447 = vcmp.gt.f32.partialorder %v377, 0.0
      %vm448 = vcmp.gt.f32.partialorder %v382, 0.0
      %vm449 = vcmp.gt.f32.partialorder %v387, 0.0
      %vm450 = vcmp.gt.f32.partialorder %v392, 0.0
      %vm451 = vcmp.gt.f32.partialorder %v397, 0.0
      %vm452 = vcmp.gt.f32.partialorder %v402, 0.0
      %vm453 = vcmp.gt.f32.partialorder %v407, 0.0
      %vm454 = vcmp.gt.f32.partialorder %v412, 0.0
      %vm455 = vcmp.gt.f32.partialorder %v417, 0.0
      %vm456 = vcmp.gt.f32.partialorder %v422, 0.0
      %v457 = vmul.f32 %v267, 0.01
      %v458 = vmul.f32 %v272, 0.01
      %v459 = vmul.f32 %v277, 0.01
      %v460 = vmul.f32 %v282, 0.01
      %v461 = vmul.f32 %v287, 0.01
      %v462 = vmul.f32 %v292, 0.01
      %v463 = vmul.f32 %v297, 0.01
      %v464 = vmul.f32 %v302, 0.01
      %v465 = vmul.f32 %v307, 0.01
      %v466 = vmul.f32 %v312, 0.01
      %v467 = vmul.f32 %v317, 0.01
      %v468 = vmul.f32 %v322, 0.01
      %v469 = vmul.f32 %v327, 0.01
      %v470 = vmul.f32 %v332, 0.01
      %v471 = vmul.f32 %v337, 0.01
      %v472 = vmul.f32 %v342, 0.01
      %v473 = vmul.f32 %v347, 0.01
      %v474 = vmul.f32 %v352, 0.01
      %v475 = vmul.f32 %v357, 0.01
      %v476 = vmul.f32 %v362, 0.01
      %v477 = vmul.f32 %v367, 0.01
      %v478 = vmul.f32 %v372, 0.01
      %v479 = vmul.f32 %v377, 0.01
      %v480 = vmul.f32 %v382, 0.01
      %v481 = vmul.f32 %v387, 0.01
      %v482 = vmul.f32 %v392, 0.01
      %v483 = vmul.f32 %v397, 0.01
      %v484 = vmul.f32 %v402, 0.01
      %v485 = vmul.f32 %v407, 0.01
      %v486 = vmul.f32 %v412, 0.01
      %v487 = vmul.f32 %v417, 0.01
      %v488 = vmul.f32 %v422, 0.01
      %v489 = vsel %vm425, %v267, %v457
      %v490 = vsel %vm426, %v272, %v458
      %v491 = vsel %vm427, %v277, %v459
      %v492 = vsel %vm428, %v282, %v460
      %v493 = vsel %vm429, %v287, %v461
      %v494 = vsel %vm430, %v292, %v462
      %v495 = vsel %vm431, %v297, %v463
      %v496 = vsel %vm432, %v302, %v464
      %v497 = vsel %vm433, %v307, %v465
      %v498 = vsel %vm434, %v312, %v466
      %v499 = vsel %vm435, %v317, %v467
      %v500 = vsel %vm436, %v322, %v468
      %v501 = vsel %vm437, %v327, %v469
      %v502 = vsel %vm438, %v332, %v470
      %v503 = vsel %vm439, %v337, %v471
      %v504 = vsel %vm440, %v342, %v472
      %v505 = vsel %vm441, %v347, %v473
      %v506 = vsel %vm442, %v352, %v474
      %v507 = vsel %vm443, %v357, %v475
      %v508 = vsel %vm444, %v362, %v476
      %v509 = vsel %vm445, %v367, %v477
      %v510 = vsel %vm446, %v372, %v478
      %v511 = vsel %vm447, %v377, %v479
      %v512 = vsel %vm448, %v382, %v480
      %v513 = vsel %vm449, %v387, %v481
      %v514 = vsel %vm450, %v392, %v482
      %v515 = vsel %vm451, %v397, %v483
      %v516 = vsel %vm452, %v402, %v484
      %v517 = vsel %vm453, %v407, %v485
      %v518 = vsel %vm454, %v412, %v486
      %v519 = vsel %vm455, %v417, %v487
      %v520 = vsel %vm456, %v422, %v488
      %v521 = vld [vmem:[%s1 + $0x80] sm:$0xff]
      %v522 = vld [vmem:[%s1 + $0x88] sm:$0xff]
      %v523 = vld [vmem:[%s1 + $0x90] sm:$0xff]
      %v524 = vld [vmem:[%s1 + $0x98] sm:$0xff]
      %v525 = vld [vmem:[%s1 + $0xa0] sm:$0xff]
      %v526 = vld [vmem:[%s1 + $0xa8] sm:$0xff]
      %v527 = vld [vmem:[%s1 + $0xb0] sm:$0xff]
      %v528 = vld [vmem:[%s1 + $0xb8] sm:$0xff]
      %v529 = vld [vmem:[%s1 + $0xc0] sm:$0xff]
      %v530 = vld [vmem:[%s1 + $0xc8] sm:$0xff]
      %v531 = vld [vmem:[%s1 + $0xd0] sm:$0xff]
      %v532 = vld [vmem:[%s1 + $0xd8] sm:$0xff]
      %v533 = vld [vmem:[%s1 + $0xe0] sm:$0xff]
      %v534 = vld [vmem:[%s1 + $0xe8] sm:$0xff]
      %v535 = vld [vmem:[%s1 + $0xf0] sm:$0xff]
      %v536 = vld [vmem:[%s1 + $0xf8] sm:$0xff]
      %v537 = vld [vmem:[%s1 + $0x281] sm:$0x1]
      %v538 = vlaneseq
      %v539 = vshrl.u32 %v538, 7
      %v540 = vsub.s32 0, %v539
      %v541 = vrot.slane %v537, %v540
      %542 = vmatprep.subr.mxu0 0.0
      %543 = vmatpush1.msra.mxu0 %v521
      %544 = vmatprep.subr.mxu0 0.0
      %545 = vmatpush1.msra.mxu0 %v522
      %546 = vmatprep.subr.mxu0 0.0
      %547 = vmatpush1.msra.mxu0 %v523
      %548 = vmatprep.subr.mxu0 0.0
      %549 = vmatpush1.msra.mxu0 %v524
      %550 = vmatprep.subr.mxu0 0.0
      %551 = vmatpush1.msra.mxu0 %v525
      %552 = vmatprep.subr.mxu0 0.0
      %553 = vmatpush1.msra.mxu0 %v526
      %554 = vmatprep.subr.mxu0 0.0
      %555 = vmatpush1.msra.mxu0 %v527
      %556 = vmatprep.subr.mxu0 0.0
      %557 = vmatpush1.msra.mxu0 %v528
      %558 = vmatprep.subr.mxu0 0.0
      %559 = vmatpush1.msra.mxu0 %v529
      %560 = vmatprep.subr.mxu0 0.0
      %561 = vmatpush1.msra.mxu0 %v530
      %562 = vmatprep.subr.mxu0 0.0
      %563 = vmatpush1.msra.mxu0 %v531
      %564 = vmatprep.subr.mxu0 0.0
      %565 = vmatpush1.msra.mxu0 %v532
      %566 = vmatprep.subr.mxu0 0.0
      %567 = vmatpush1.msra.mxu0 %v533
      %568 = vmatprep.subr.mxu0 0.0
      %569 = vmatpush1.msra.mxu0 %v534
      %570 = vmatprep.subr.mxu0 0.0
      %571 = vmatpush1.msra.mxu0 %v535
      %572 = vmatprep.subr.mxu0 0.0
      %573 = vmatpush1.msra.mxu0 %v536
      %574 = vmatprep.subr.mxu0 0.0
      %575 = vmatpush1.msra.mxu0 0.0
      %576 = vmatprep.subr.mxu0 0.0
      %577 = vmatpush1.msra.mxu0 0.0
      %578 = vmatprep.subr.mxu0 0.0
      %579 = vmatpush1.msra.mxu0 0.0
      %580 = vmatprep.subr.mxu0 0.0
      %581 = vmatpush1.msra.mxu0 0.0
      %582 = vmatprep.subr.mxu0 0.0
      %583 = vmatpush1.msra.mxu0 0.0
      %584 = vmatprep.subr.mxu0 0.0
      %585 = vmatpush1.msra.mxu0 0.0
      %586 = vmatprep.subr.mxu0 0.0
      %587 = vmatpush1.msra.mxu0 0.0
      %588 = vmatprep.subr.mxu0 0.0
      %589 = vmatpush1.msra.mxu0 0.0
      %590 = vmatprep.subr.mxu0 0.0
      %591 = vmatpush1.msra.mxu0 0.0
      %592 = vmatprep.subr.mxu0 0.0
      %593 = vmatpush1.msra.mxu0 0.0
      %594 = vmatprep.subr.mxu0 0.0
      %595 = vmatpush1.msra.mxu0 0.0
      %596 = vmatprep.subr.mxu0 0.0
      %597 = vmatpush1.msra.mxu0 0.0
      %598 = vmatprep.subr.mxu0 0.0
      %599 = vmatpush1.msra.mxu0 0.0
      %600 = vmatprep.subr.mxu0 0.0
      %601 = vmatpush1.msra.mxu0 0.0
      %602 = vmatprep.subr.mxu0 0.0
      %603 = vmatpush1.msra.mxu0 0.0
      %604 = vmatprep.subr.mxu0 0.0
      %605 = vmatpush1.msra.mxu0 0.0
      %606 = vmatprep.mubr.f32.mxu0 0.0
      %607 = vmatmul.mubr.f32.gmra.mrb[0].mxu0 %v489
      %v608 = vpop.f32.mrb[0].mxu0
      %v609 = vadd.f32 %v541, %v608
      %v610 = vpop.f32.mrb[0].mxu0
      %611 = vmatprep.mubr.f32.mxu0 0.0
      %612 = vmatmul.mubr.f32.gmra.mrb[0].mxu0 %v490
      %v613 = vpop.f32.mrb[0].mxu0
      %v614 = vadd.f32 %v541, %v613
      %v615 = vpop.f32.mrb[0].mxu0
      %616 = vmatprep.mubr.f32.mxu0 0.0
      %617 = vmatmul.mubr.f32.gmra.mrb[0].mxu0 %v491
      %v618 = vpop.f32.mrb[0].mxu0
      %v619 = vadd.f32 %v541, %v618
      %v620 = vpop.f32.mrb[0].mxu0
      %621 = vmatprep.mubr.f32.mxu0 0.0
      %622 = vmatmul.mubr.f32.gmra.mrb[0].mxu0 %v492
      %v623 = vpop.f32.mrb[0].mxu0
      %v624 = vadd.f32 %v541, %v623
      %v625 = vpop.f32.mrb[0].mxu0
      %626 = vmatprep.mubr.f32.mxu0 0.0
      %627 = vmatmul.mubr.f32.gmra.mrb[0].mxu0 %v493
      %v628 = vpop.f32.mrb[0].mxu0
      %v629 = vadd.f32 %v541, %v628
      %v630 = vpop.f32.mrb[0].mxu0
      %631 = vmatprep.mubr.f32.mxu0 0.0
      %632 = vmatmul.mubr.f32.gmra.mrb[0].mxu0 %v494
      %v633 = vpop.f32.mrb[0].mxu0
      %v634 = vadd.f32 %v541, %v633
      %v635 = vpop.f32.mrb[0].mxu0
      %636 = vmatprep.mubr.f32.mxu0 0.0
      %637 = vmatmul.mubr.f32.gmra.mrb[0].mxu0 %v495
      %v638 = vpop.f32.mrb[0].mxu0
      %v639 = vadd.f32 %v541, %v638
      %v640 = vpop.f32.mrb[0].mxu0
      %641 = vmatprep.mubr.f32.mxu0 0.0
      %642 = vmatmul.mubr.f32.gmra.mrb[0].mxu0 %v496
      %v643 = vpop.f32.mrb[0].mxu0
      %v644 = vadd.f32 %v541, %v643
      %v645 = vpop.f32.mrb[0].mxu0
      %646 = vmatprep.mubr.f32.mxu0 0.0
      %647 = vmatmul.mubr.f32.gmra.mrb[0].mxu0 %v497
      %v648 = vpop.f32.mrb[0].mxu0
      %v649 = vadd.f32 %v541, %v648
      %v650 = vpop.f32.mrb[0].mxu0
      %651 = vmatprep.mubr.f32.mxu0 0.0
      %652 = vmatmul.mubr.f32.gmra.mrb[0].mxu0 %v498
      %v653 = vpop.f32.mrb[0].mxu0
      %v654 = vadd.f32 %v541, %v653
      %v655 = vpop.f32.mrb[0].mxu0
      %656 = vmatprep.mubr.f32.mxu0 0.0
      %657 = vmatmul.mubr.f32.gmra.mrb[0].mxu0 %v499
      %v658 = vpop.f32.mrb[0].mxu0
      %v659 = vadd.f32 %v541, %v658
      %v660 = vpop.f32.mrb[0].mxu0
      %661 = vmatprep.mubr.f32.mxu0 0.0
      %662 = vmatmul.mubr.f32.gmra.mrb[0].mxu0 %v500
      %v663 = vpop.f32.mrb[0].mxu0
      %v664 = vadd.f32 %v541, %v663
      %v665 = vpop.f32.mrb[0].mxu0
      %666 = vmatprep.mubr.f32.mxu0 0.0
      %667 = vmatmul.mubr.f32.gmra.mrb[0].mxu0 %v501
      %v668 = vpop.f32.mrb[0].mxu0
      %v669 = vadd.f32 %v541, %v668
      %v670 = vpop.f32.mrb[0].mxu0
      %671 = vmatprep.mubr.f32.mxu0 0.0
      %672 = vmatmul.mubr.f32.gmra.mrb[0].mxu0 %v502
      %v673 = vpop.f32.mrb[0].mxu0
      %v674 = vadd.f32 %v541, %v673
      %v675 = vpop.f32.mrb[0].mxu0
      %676 = vmatprep.mubr.f32.mxu0 0.0
      %677 = vmatmul.mubr.f32.gmra.mrb[0].mxu0 %v503
      %v678 = vpop.f32.mrb[0].mxu0
      %v679 = vadd.f32 %v541, %v678
      %v680 = vpop.f32.mrb[0].mxu0
      %681 = vmatprep.mubr.f32.mxu0 0.0
      %682 = vmatmul.mubr.f32.gmra.mrb[0].mxu0 %v504
      %v683 = vpop.f32.mrb[0].mxu0
      %v684 = vadd.f32 %v541, %v683
      %v685 = vpop.f32.mrb[0].mxu0
      %686 = vmatprep.mubr.f32.mxu0 0.0
      %687 = vmatmul.mubr.f32.gmra.mrb[0].mxu0 %v505
      %v688 = vpop.f32.mrb[0].mxu0
      %v689 = vadd.f32 %v541, %v688
      %v690 = vpop.f32.mrb[0].mxu0
      %691 = vmatprep.mubr.f32.mxu0 0.0
      %692 = vmatmul.mubr.f32.gmra.mrb[0].mxu0 %v506
      %v693 = vpop.f32.mrb[0].mxu0
      %v694 = vadd.f32 %v541, %v693
      %v695 = vpop.f32.mrb[0].mxu0
      %696 = vmatprep.mubr.f32.mxu0 0.0
      %697 = vmatmul.mubr.f32.gmra.mrb[0].mxu0 %v507
      %v698 = vpop.f32.mrb[0].mxu0
      %v699 = vadd.f32 %v541, %v698
      %v700 = vpop.f32.mrb[0].mxu0
      %701 = vmatprep.mubr.f32.mxu0 0.0
      %702 = vmatmul.mubr.f32.gmra.mrb[0].mxu0 %v508
      %v703 = vpop.f32.mrb[0].mxu0
      %v704 = vadd.f32 %v541, %v703
      %v705 = vpop.f32.mrb[0].mxu0
      %706 = vmatprep.mubr.f32.mxu0 0.0
      %707 = vmatmul.mubr.f32.gmra.mrb[0].mxu0 %v509
      %v708 = vpop.f32.mrb[0].mxu0
      %v709 = vadd.f32 %v541, %v708
      %v710 = vpop.f32.mrb[0].mxu0
      %711 = vmatprep.mubr.f32.mxu0 0.0
      %712 = vmatmul.mubr.f32.gmra.mrb[0].mxu0 %v510
      %v713 = vpop.f32.mrb[0].mxu0
      %v714 = vadd.f32 %v541, %v713
      %v715 = vpop.f32.mrb[0].mxu0
      %716 = vmatprep.mubr.f32.mxu0 0.0
      %717 = vmatmul.mubr.f32.gmra.mrb[0].mxu0 %v511
      %v718 = vpop.f32.mrb[0].mxu0
      %v719 = vadd.f32 %v541, %v718
      %v720 = vpop.f32.mrb[0].mxu0
      %721 = vmatprep.mubr.f32.mxu0 0.0
      %722 = vmatmul.mubr.f32.gmra.mrb[0].mxu0 %v512
      %v723 = vpop.f32.mrb[0].mxu0
      %v724 = vadd.f32 %v541, %v723
      %v725 = vpop.f32.mrb[0].mxu0
      %726 = vmatprep.mubr.f32.mxu0 0.0
      %727 = vmatmul.mubr.f32.gmra.mrb[0].mxu0 %v513
      %v728 = vpop.f32.mrb[0].mxu0
      %v729 = vadd.f32 %v541, %v728
      %v730 = vpop.f32.mrb[0].mxu0
      %731 = vmatprep.mubr.f32.mxu0 0.0
      %732 = vmatmul.mubr.f32.gmra.mrb[0].mxu0 %v514
      %v733 = vpop.f32.mrb[0].mxu0
      %v734 = vadd.f32 %v541, %v733
      %v735 = vpop.f32.mrb[0].mxu0
      %736 = vmatprep.mubr.f32.mxu0 0.0
      %737 = vmatmul.mubr.f32.gmra.mrb[0].mxu0 %v515
      %v738 = vpop.f32.mrb[0].mxu0
      %v739 = vadd.f32 %v541, %v738
      %v740 = vpop.f32.mrb[0].mxu0
      %741 = vmatprep.mubr.f32.mxu0 0.0
      %742 = vmatmul.mubr.f32.gmra.mrb[0].mxu0 %v516
      %v743 = vpop.f32.mrb[0].mxu0
      %v744 = vadd.f32 %v541, %v743
      %v745 = vpop.f32.mrb[0].mxu0
      %746 = vmatprep.mubr.f32.mxu0 0.0
      %747 = vmatmul.mubr.f32.gmra.mrb[0].mxu0 %v517
      %v748 = vpop.f32.mrb[0].mxu0
      %v749 = vadd.f32 %v541, %v748
      %v750 = vpop.f32.mrb[0].mxu0
      %751 = vmatprep.mubr.f32.mxu0 0.0
      %752 = vmatmul.mubr.f32.gmra.mrb[0].mxu0 %v518
      %v753 = vpop.f32.mrb[0].mxu0
      %v754 = vadd.f32 %v541, %v753
      %v755 = vpop.f32.mrb[0].mxu0
      %756 = vmatprep.mubr.f32.mxu0 0.0
      %757 = vmatmul.mubr.f32.gmra.mrb[0].mxu0 %v519
      %v758 = vpop.f32.mrb[0].mxu0
      %v759 = vadd.f32 %v541, %v758
      %v760 = vpop.f32.mrb[0].mxu0
      %761 = vmatprep.mubr.f32.mxu0 0.0
      %762 = vmatmul.mubr.f32.gmra.mrb[0].mxu0 %v520
      %v763 = vpop.f32.mrb[0].mxu0
      %v764 = vadd.f32 %v541, %v763
      %v765 = vpop.f32.mrb[0].mxu0
      %766 = vdwg.mxu0
      %vm767 = vcmp.gt.f32.partialorder %v609, 0.0
      %vm768 = vcmp.gt.f32.partialorder %v614, 0.0
      %vm769 = vcmp.gt.f32.partialorder %v619, 0.0
      %vm770 = vcmp.gt.f32.partialorder %v624, 0.0
      %vm771 = vcmp.gt.f32.partialorder %v629, 0.0
      %vm772 = vcmp.gt.f32.partialorder %v634, 0.0
      %vm773 = vcmp.gt.f32.partialorder %v639, 0.0
      %vm774 = vcmp.gt.f32.partialorder %v644, 0.0
      %vm775 = vcmp.gt.f32.partialorder %v649, 0.0
      %vm776 = vcmp.gt.f32.partialorder %v654, 0.0
      %vm777 = vcmp.gt.f32.partialorder %v659, 0.0
      %vm778 = vcmp.gt.f32.partialorder %v664, 0.0
      %vm779 = vcmp.gt.f32.partialorder %v669, 0.0
      %vm780 = vcmp.gt.f32.partialorder %v674, 0.0
      %vm781 = vcmp.gt.f32.partialorder %v679, 0.0
      %vm782 = vcmp.gt.f32.partialorder %v684, 0.0
      %vm783 = vcmp.gt.f32.partialorder %v689, 0.0
      %vm784 = vcmp.gt.f32.partialorder %v694, 0.0
      %vm785 = vcmp.gt.f32.partialorder %v699, 0.0
      %vm786 = vcmp.gt.f32.partialorder %v704, 0.0
      %vm787 = vcmp.gt.f32.partialorder %v709, 0.0
      %vm788 = vcmp.gt.f32.partialorder %v714, 0.0
      %vm789 = vcmp.gt.f32.partialorder %v719, 0.0
      %vm790 = vcmp.gt.f32.partialorder %v724, 0.0
      %vm791 = vcmp.gt.f32.partialorder %v729, 0.0
      %vm792 = vcmp.gt.f32.partialorder %v734, 0.0
      %vm793 = vcmp.gt.f32.partialorder %v739, 0.0
      %vm794 = vcmp.gt.f32.partialorder %v744, 0.0
      %vm795 = vcmp.gt.f32.partialorder %v749, 0.0
      %vm796 = vcmp.gt.f32.partialorder %v754, 0.0
      %vm797 = vcmp.gt.f32.partialorder %v759, 0.0
      %vm798 = vcmp.gt.f32.partialorder %v764, 0.0
      %v799 = vmul.f32 %v609, 0.01
      %v800 = vmul.f32 %v614, 0.01
      %v801 = vmul.f32 %v619, 0.01
      %v802 = vmul.f32 %v624, 0.01
      %v803 = vmul.f32 %v629, 0.01
      %v804 = vmul.f32 %v634, 0.01
      %v805 = vmul.f32 %v639, 0.01
      %v806 = vmul.f32 %v644, 0.01
      %v807 = vmul.f32 %v649, 0.01
      %v808 = vmul.f32 %v654, 0.01
      %v809 = vmul.f32 %v659, 0.01
      %v810 = vmul.f32 %v664, 0.01
      %v811 = vmul.f32 %v669, 0.01
      %v812 = vmul.f32 %v674, 0.01
      %v813 = vmul.f32 %v679, 0.01
      %v814 = vmul.f32 %v684, 0.01
      %v815 = vmul.f32 %v689, 0.01
      %v816 = vmul.f32 %v694, 0.01
      %v817 = vmul.f32 %v699, 0.01
      %v818 = vmul.f32 %v704, 0.01
      %v819 = vmul.f32 %v709, 0.01
      %v820 = vmul.f32 %v714, 0.01
      %v821 = vmul.f32 %v719, 0.01
      %v822 = vmul.f32 %v724, 0.01
      %v823 = vmul.f32 %v729, 0.01
      %v824 = vmul.f32 %v734, 0.01
      %v825 = vmul.f32 %v739, 0.01
      %v826 = vmul.f32 %v744, 0.01
      %v827 = vmul.f32 %v749, 0.01
      %v828 = vmul.f32 %v754, 0.01
      %v829 = vmul.f32 %v759, 0.01
      %v830 = vmul.f32 %v764, 0.01
      %v831 = vsel %vm767, %v609, %v799
      %v832 = vsel %vm768, %v614, %v800
      %v833 = vsel %vm769, %v619, %v801
      %v834 = vsel %vm770, %v624, %v802
      %v835 = vsel %vm771, %v629, %v803
      %v836 = vsel %vm772, %v634, %v804
      %v837 = vsel %vm773, %v639, %v805
      %v838 = vsel %vm774, %v644, %v806
      %v839 = vsel %vm775, %v649, %v807
      %v840 = vsel %vm776, %v654, %v808
      %v841 = vsel %vm777, %v659, %v809
      %v842 = vsel %vm778, %v664, %v810
      %v843 = vsel %vm779, %v669, %v811
      %v844 = vsel %vm780, %v674, %v812
      %v845 = vsel %vm781, %v679, %v813
      %v846 = vsel %vm782, %v684, %v814
      %v847 = vsel %vm783, %v689, %v815
      %v848 = vsel %vm784, %v694, %v816
      %v849 = vsel %vm785, %v699, %v817
      %v850 = vsel %vm786, %v704, %v818
      %v851 = vsel %vm787, %v709, %v819
      %v852 = vsel %vm788, %v714, %v820
      %v853 = vsel %vm789, %v719, %v821
      %v854 = vsel %vm790, %v724, %v822
      %v855 = vsel %vm791, %v729, %v823
      %v856 = vsel %vm792, %v734, %v824
      %v857 = vsel %vm793, %v739, %v825
      %v858 = vsel %vm794, %v744, %v826
      %v859 = vsel %vm795, %v749, %v827
      %v860 = vsel %vm796, %v754, %v828
      %v861 = vsel %vm797, %v759, %v829
      %v862 = vsel %vm798, %v764, %v830
      %v863 = vld [vmem:[%s1 + $0x100] sm:$0xff]
      %v864 = vld [vmem:[%s1 + $0x108] sm:$0xff]
      %v865 = vld [vmem:[%s1 + $0x110] sm:$0xff]
      %v866 = vld [vmem:[%s1 + $0x118] sm:$0xff]
      %v867 = vld [vmem:[%s1 + $0x120] sm:$0xff]
      %v868 = vld [vmem:[%s1 + $0x128] sm:$0xff]
      %v869 = vld [vmem:[%s1 + $0x130] sm:$0xff]
      %v870 = vld [vmem:[%s1 + $0x138] sm:$0xff]
      %v871 = vld [vmem:[%s1 + $0x140] sm:$0xff]
      %v872 = vld [vmem:[%s1 + $0x148] sm:$0xff]
      %v873 = vld [vmem:[%s1 + $0x150] sm:$0xff]
      %v874 = vld [vmem:[%s1 + $0x158] sm:$0xff]
      %v875 = vld [vmem:[%s1 + $0x160] sm:$0xff]
      %v876 = vld [vmem:[%s1 + $0x168] sm:$0xff]
      %v877 = vld [vmem:[%s1 + $0x170] sm:$0xff]
      %v878 = vld [vmem:[%s1 + $0x178] sm:$0xff]
      %v879 = vld [vmem:[%s1 + $0x180] sm:$0xff]
      %v880 = vld [vmem:[%s1 + $0x188] sm:$0xff]
      %v881 = vld [vmem:[%s1 + $0x190] sm:$0xff]
      %v882 = vld [vmem:[%s1 + $0x198] sm:$0xff]
      %v883 = vld [vmem:[%s1 + $0x1a0] sm:$0xff]
      %v884 = vld [vmem:[%s1 + $0x1a8] sm:$0xff]
      %v885 = vld [vmem:[%s1 + $0x1b0] sm:$0xff]
      %v886 = vld [vmem:[%s1 + $0x1b8] sm:$0xff]
      %v887 = vld [vmem:[%s1 + $0x1c0] sm:$0xff]
      %v888 = vld [vmem:[%s1 + $0x1c8] sm:$0xff]
      %v889 = vld [vmem:[%s1 + $0x1d0] sm:$0xff]
      %v890 = vld [vmem:[%s1 + $0x1d8] sm:$0xff]
      %v891 = vld [vmem:[%s1 + $0x1e0] sm:$0xff]
      %v892 = vld [vmem:[%s1 + $0x1e8] sm:$0xff]
      %v893 = vld [vmem:[%s1 + $0x1f0] sm:$0xff]
      %v894 = vld [vmem:[%s1 + $0x1f8] sm:$0xff]
      %895 = vmatprep.subr.mxu0 0.0
      %896 = vmatpush1.msra.mxu0 %v879
      %897 = vmatprep.subr.mxu0 0.0
      %898 = vmatpush1.msra.mxu0 %v880
      %899 = vmatprep.subr.mxu0 0.0
      %900 = vmatpush1.msra.mxu0 %v881
      %901 = vmatprep.subr.mxu0 0.0
      %902 = vmatpush1.msra.mxu0 %v882
      %903 = vmatprep.subr.mxu0 0.0
      %904 = vmatpush1.msra.mxu0 %v883
      %905 = vmatprep.subr.mxu0 0.0
      %906 = vmatpush1.msra.mxu0 %v884
      %907 = vmatprep.subr.mxu0 0.0
      %908 = vmatpush1.msra.mxu0 %v885
      %909 = vmatprep.subr.mxu0 0.0
      %910 = vmatpush1.msra.mxu0 %v886
      %911 = vmatprep.subr.mxu0 0.0
      %912 = vmatpush1.msra.mxu0 %v887
      %913 = vmatprep.subr.mxu0 0.0
      %914 = vmatpush1.msra.mxu0 %v888
      %915 = vmatprep.subr.mxu0 0.0
      %916 = vmatpush1.msra.mxu0 %v889
      %917 = vmatprep.subr.mxu0 0.0
      %918 = vmatpush1.msra.mxu0 %v890
      %919 = vmatprep.subr.mxu0 0.0
      %920 = vmatpush1.msra.mxu0 %v891
      %921 = vmatprep.subr.mxu0 0.0
      %922 = vmatpush1.msra.mxu0 %v892
      %923 = vmatprep.subr.mxu0 0.0
      %924 = vmatpush1.msra.mxu0 %v893
      %925 = vmatprep.subr.mxu0 0.0
      %926 = vmatpush1.msra.mxu0 %v894
      %927 = vmatprep.subr.mxu0 0.0
      %928 = vmatpush1.msra.mxu0 0.0
      %929 = vmatprep.subr.mxu0 0.0
      %930 = vmatpush1.msra.mxu0 0.0
      %931 = vmatprep.subr.mxu0 0.0
      %932 = vmatpush1.msra.mxu0 0.0
      %933 = vmatprep.subr.mxu0 0.0
      %934 = vmatpush1.msra.mxu0 0.0
      %935 = vmatprep.subr.mxu0 0.0
      %936 = vmatpush1.msra.mxu0 0.0
      %937 = vmatprep.subr.mxu0 0.0
      %938 = vmatpush1.msra.mxu0 0.0
      %939 = vmatprep.subr.mxu0 0.0
      %940 = vmatpush1.msra.mxu0 0.0
      %941 = vmatprep.subr.mxu0 0.0
      %942 = vmatpush1.msra.mxu0 0.0
      %943 = vmatprep.subr.mxu0 0.0
      %944 = vmatpush1.msra.mxu0 0.0
      %945 = vmatprep.subr.mxu0 0.0
      %946 = vmatpush1.msra.mxu0 0.0
      %947 = vmatprep.subr.mxu0 0.0
      %948 = vmatpush1.msra.mxu0 0.0
      %949 = vmatprep.subr.mxu0 0.0
      %950 = vmatpush1.msra.mxu0 0.0
      %951 = vmatprep.subr.mxu0 0.0
      %952 = vmatpush1.msra.mxu0 0.0
      %953 = vmatprep.subr.mxu0 0.0
      %954 = vmatpush1.msra.mxu0 0.0
      %955 = vmatprep.subr.mxu0 0.0
      %956 = vmatpush1.msra.mxu0 0.0
      %957 = vmatprep.subr.mxu0 0.0
      %958 = vmatpush1.msra.mxu0 0.0
      %959 = vmatprep.mubr.f32.mxu0 0.0
      %960 = vmatmul.mubr.f32.gmra.mrb[0].mxu0 %v147
      %v961 = vpop.f32.mrb[0].mxu0
      %v962 = vadd.f32 0.0, %v961
      %v963 = vpop.f32.mrb[0].mxu0
      %964 = vmatprep.mubr.f32.mxu0 0.0
      %965 = vmatmul.mubr.f32.gmra.mrb[0].mxu0 %v148
      %v966 = vpop.f32.mrb[0].mxu0
      %v967 = vadd.f32 0.0, %v966
      %v968 = vpop.f32.mrb[0].mxu0
      %969 = vmatprep.mubr.f32.mxu0 0.0
      %970 = vmatmul.mubr.f32.gmra.mrb[0].mxu0 %v149
      %v971 = vpop.f32.mrb[0].mxu0
      %v972 = vadd.f32 0.0, %v971
      %v973 = vpop.f32.mrb[0].mxu0
      %974 = vmatprep.mubr.f32.mxu0 0.0
      %975 = vmatmul.mubr.f32.gmra.mrb[0].mxu0 %v150
      %v976 = vpop.f32.mrb[0].mxu0
      %v977 = vadd.f32 0.0, %v976
      %v978 = vpop.f32.mrb[0].mxu0
      %979 = vmatprep.mubr.f32.mxu0 0.0
      %980 = vmatmul.mubr.f32.gmra.mrb[0].mxu0 %v151
      %v981 = vpop.f32.mrb[0].mxu0
      %v982 = vadd.f32 0.0, %v981
      %v983 = vpop.f32.mrb[0].mxu0
      %984 = vmatprep.mubr.f32.mxu0 0.0
      %985 = vmatmul.mubr.f32.gmra.mrb[0].mxu0 %v152
      %v986 = vpop.f32.mrb[0].mxu0
      %v987 = vadd.f32 0.0, %v986
      %v988 = vpop.f32.mrb[0].mxu0
      %989 = vmatprep.mubr.f32.mxu0 0.0
      %990 = vmatmul.mubr.f32.gmra.mrb[0].mxu0 %v153
      %v991 = vpop.f32.mrb[0].mxu0
      %v992 = vadd.f32 0.0, %v991
      %v993 = vpop.f32.mrb[0].mxu0
      %994 = vmatprep.mubr.f32.mxu0 0.0
      %995 = vmatmul.mubr.f32.gmra.mrb[0].mxu0 %v154
      %v996 = vpop.f32.mrb[0].mxu0
      %v997 = vadd.f32 0.0, %v996
      %v998 = vpop.f32.mrb[0].mxu0
      %999 = vmatprep.mubr.f32.mxu0 0.0
      %1000 = vmatmul.mubr.f32.gmra.mrb[0].mxu0 %v155
      %v1001 = vpop.f32.mrb[0].mxu0
      %v1002 = vadd.f32 0.0, %v1001
      %v1003 = vpop.f32.mrb[0].mxu0
      %1004 = vmatprep.mubr.f32.mxu0 0.0
      %1005 = vmatmul.mubr.f32.gmra.mrb[0].mxu0 %v156
      %v1006 = vpop.f32.mrb[0].mxu0
      %v1007 = vadd.f32 0.0, %v1006
      %v1008 = vpop.f32.mrb[0].mxu0
      %1009 = vmatprep.mubr.f32.mxu0 0.0
      %1010 = vmatmul.mubr.f32.gmra.mrb[0].mxu0 %v157
      %v1011 = vpop.f32.mrb[0].mxu0
      %v1012 = vadd.f32 0.0, %v1011
      %v1013 = vpop.f32.mrb[0].mxu0
      %1014 = vmatprep.mubr.f32.mxu0 0.0
      %1015 = vmatmul.mubr.f32.gmra.mrb[0].mxu0 %v158
      %v1016 = vpop.f32.mrb[0].mxu0
      %v1017 = vadd.f32 0.0, %v1016
      %v1018 = vpop.f32.mrb[0].mxu0
      %1019 = vmatprep.mubr.f32.mxu0 0.0
      %1020 = vmatmul.mubr.f32.gmra.mrb[0].mxu0 %v159
      %v1021 = vpop.f32.mrb[0].mxu0
      %v1022 = vadd.f32 0.0, %v1021
      %v1023 = vpop.f32.mrb[0].mxu0
      %1024 = vmatprep.mubr.f32.mxu0 0.0
      %1025 = vmatmul.mubr.f32.gmra.mrb[0].mxu0 %v160
      %v1026 = vpop.f32.mrb[0].mxu0
      %v1027 = vadd.f32 0.0, %v1026
      %v1028 = vpop.f32.mrb[0].mxu0
      %1029 = vmatprep.mubr.f32.mxu0 0.0
      %1030 = vmatmul.mubr.f32.gmra.mrb[0].mxu0 %v161
      %v1031 = vpop.f32.mrb[0].mxu0
      %v1032 = vadd.f32 0.0, %v1031
      %v1033 = vpop.f32.mrb[0].mxu0
      %1034 = vmatprep.mubr.f32.mxu0 0.0
      %1035 = vmatmul.mubr.f32.gmra.mrb[0].mxu0 %v162
      %v1036 = vpop.f32.mrb[0].mxu0
      %v1037 = vadd.f32 0.0, %v1036
      %v1038 = vpop.f32.mrb[0].mxu0
      %1039 = vmatprep.mubr.f32.mxu0 0.0
      %1040 = vmatmul.mubr.f32.gmra.mrb[0].mxu0 %v163
      %v1041 = vpop.f32.mrb[0].mxu0
      %v1042 = vadd.f32 0.0, %v1041
      %v1043 = vpop.f32.mrb[0].mxu0
      %1044 = vmatprep.mubr.f32.mxu0 0.0
      %1045 = vmatmul.mubr.f32.gmra.mrb[0].mxu0 %v164
      %v1046 = vpop.f32.mrb[0].mxu0
      %v1047 = vadd.f32 0.0, %v1046
      %v1048 = vpop.f32.mrb[0].mxu0
      %1049 = vmatprep.mubr.f32.mxu0 0.0
      %1050 = vmatmul.mubr.f32.gmra.mrb[0].mxu0 %v165
      %v1051 = vpop.f32.mrb[0].mxu0
      %v1052 = vadd.f32 0.0, %v1051
      %v1053 = vpop.f32.mrb[0].mxu0
      %1054 = vmatprep.mubr.f32.mxu0 0.0
      %1055 = vmatmul.mubr.f32.gmra.mrb[0].mxu0 %v166
      %v1056 = vpop.f32.mrb[0].mxu0
      %v1057 = vadd.f32 0.0, %v1056
      %v1058 = vpop.f32.mrb[0].mxu0
      %1059 = vmatprep.mubr.f32.mxu0 0.0
      %1060 = vmatmul.mubr.f32.gmra.mrb[0].mxu0 %v167
      %v1061 = vpop.f32.mrb[0].mxu0
      %v1062 = vadd.f32 0.0, %v1061
      %v1063 = vpop.f32.mrb[0].mxu0
      %1064 = vmatprep.mubr.f32.mxu0 0.0
      %1065 = vmatmul.mubr.f32.gmra.mrb[0].mxu0 %v168
      %v1066 = vpop.f32.mrb[0].mxu0
      %v1067 = vadd.f32 0.0, %v1066
      %v1068 = vpop.f32.mrb[0].mxu0
      %1069 = vmatprep.mubr.f32.mxu0 0.0
      %1070 = vmatmul.mubr.f32.gmra.mrb[0].mxu0 %v169
      %v1071 = vpop.f32.mrb[0].mxu0
      %v1072 = vadd.f32 0.0, %v1071
      %v1073 = vpop.f32.mrb[0].mxu0
      %1074 = vmatprep.mubr.f32.mxu0 0.0
      %1075 = vmatmul.mubr.f32.gmra.mrb[0].mxu0 %v170
      %v1076 = vpop.f32.mrb[0].mxu0
      %v1077 = vadd.f32 0.0, %v1076
      %v1078 = vpop.f32.mrb[0].mxu0
      %1079 = vmatprep.mubr.f32.mxu0 0.0
      %1080 = vmatmul.mubr.f32.gmra.mrb[0].mxu0 %v171
      %v1081 = vpop.f32.mrb[0].mxu0
      %v1082 = vadd.f32 0.0, %v1081
      %v1083 = vpop.f32.mrb[0].mxu0
      %1084 = vmatprep.mubr.f32.mxu0 0.0
      %1085 = vmatmul.mubr.f32.gmra.mrb[0].mxu0 %v172
      %v1086 = vpop.f32.mrb[0].mxu0
      %v1087 = vadd.f32 0.0, %v1086
      %v1088 = vpop.f32.mrb[0].mxu0
      %1089 = vmatprep.mubr.f32.mxu0 0.0
      %1090 = vmatmul.mubr.f32.gmra.mrb[0].mxu0 %v173
      %v1091 = vpop.f32.mrb[0].mxu0
      %v1092 = vadd.f32 0.0, %v1091
      %v1093 = vpop.f32.mrb[0].mxu0
      %1094 = vmatprep.mubr.f32.mxu0 0.0
      %1095 = vmatmul.mubr.f32.gmra.mrb[0].mxu0 %v174
      %v1096 = vpop.f32.mrb[0].mxu0
      %v1097 = vadd.f32 0.0, %v1096
      %v1098 = vpop.f32.mrb[0].mxu0
      %1099 = vmatprep.mubr.f32.mxu0 0.0
      %1100 = vmatmul.mubr.f32.gmra.mrb[0].mxu0 %v175
      %v1101 = vpop.f32.mrb[0].mxu0
      %v1102 = vadd.f32 0.0, %v1101
      %v1103 = vpop.f32.mrb[0].mxu0
      %1104 = vmatprep.mubr.f32.mxu0 0.0
      %1105 = vmatmul.mubr.f32.gmra.mrb[0].mxu0 %v176
      %v1106 = vpop.f32.mrb[0].mxu0
      %v1107 = vadd.f32 0.0, %v1106
      %v1108 = vpop.f32.mrb[0].mxu0
      %1109 = vmatprep.mubr.f32.mxu0 0.0
      %1110 = vmatmul.mubr.f32.gmra.mrb[0].mxu0 %v177
      %v1111 = vpop.f32.mrb[0].mxu0
      %v1112 = vadd.f32 0.0, %v1111
      %v1113 = vpop.f32.mrb[0].mxu0
      %1114 = vmatprep.mubr.f32.mxu0 0.0
      %1115 = vmatmul.mubr.f32.gmra.mrb[0].mxu0 %v178
      %v1116 = vpop.f32.mrb[0].mxu0
      %v1117 = vadd.f32 0.0, %v1116
      %v1118 = vpop.f32.mrb[0].mxu0
      %1119 = vdwg.mxu0
      %1120 = vmatprep.subr.mxu0 0.0
      %1121 = vmatpush1.msra.mxu0 %v863
      %1122 = vmatprep.subr.mxu0 0.0
      %1123 = vmatpush1.msra.mxu0 %v864
      %1124 = vmatprep.subr.mxu0 0.0
      %1125 = vmatpush1.msra.mxu0 %v865
      %1126 = vmatprep.subr.mxu0 0.0
      %1127 = vmatpush1.msra.mxu0 %v866
      %1128 = vmatprep.subr.mxu0 0.0
      %1129 = vmatpush1.msra.mxu0 %v867
      %1130 = vmatprep.subr.mxu0 0.0
      %1131 = vmatpush1.msra.mxu0 %v868
      %1132 = vmatprep.subr.mxu0 0.0
      %1133 = vmatpush1.msra.mxu0 %v869
      %1134 = vmatprep.subr.mxu0 0.0
      %1135 = vmatpush1.msra.mxu0 %v870
      %1136 = vmatprep.subr.mxu0 0.0
      %1137 = vmatpush1.msra.mxu0 %v871
      %1138 = vmatprep.subr.mxu0 0.0
      %1139 = vmatpush1.msra.mxu0 %v872
      %1140 = vmatprep.subr.mxu0 0.0
      %1141 = vmatpush1.msra.mxu0 %v873
      %1142 = vmatprep.subr.mxu0 0.0
      %1143 = vmatpush1.msra.mxu0 %v874
      %1144 = vmatprep.subr.mxu0 0.0
      %1145 = vmatpush1.msra.mxu0 %v875
      %1146 = vmatprep.subr.mxu0 0.0
      %1147 = vmatpush1.msra.mxu0 %v876
      %1148 = vmatprep.subr.mxu0 0.0
      %1149 = vmatpush1.msra.mxu0 %v877
      %1150 = vmatprep.subr.mxu0 0.0
      %1151 = vmatpush1.msra.mxu0 %v878
      %1152 = vmatprep.subr.mxu0 0.0
      %1153 = vmatpush1.msra.mxu0 0.0
      %1154 = vmatprep.subr.mxu0 0.0
      %1155 = vmatpush1.msra.mxu0 0.0
      %1156 = vmatprep.subr.mxu0 0.0
      %1157 = vmatpush1.msra.mxu0 0.0
      %1158 = vmatprep.subr.mxu0 0.0
      %1159 = vmatpush1.msra.mxu0 0.0
      %1160 = vmatprep.subr.mxu0 0.0
      %1161 = vmatpush1.msra.mxu0 0.0
      %1162 = vmatprep.subr.mxu0 0.0
      %1163 = vmatpush1.msra.mxu0 0.0
      %1164 = vmatprep.subr.mxu0 0.0
      %1165 = vmatpush1.msra.mxu0 0.0
      %1166 = vmatprep.subr.mxu0 0.0
      %1167 = vmatpush1.msra.mxu0 0.0
      %1168 = vmatprep.subr.mxu0 0.0
      %1169 = vmatpush1.msra.mxu0 0.0
      %1170 = vmatprep.subr.mxu0 0.0
      %1171 = vmatpush1.msra.mxu0 0.0
      %1172 = vmatprep.subr.mxu0 0.0
      %1173 = vmatpush1.msra.mxu0 0.0
      %1174 = vmatprep.subr.mxu0 0.0
      %1175 = vmatpush1.msra.mxu0 0.0
      %1176 = vmatprep.subr.mxu0 0.0
      %1177 = vmatpush1.msra.mxu0 0.0
      %1178 = vmatprep.subr.mxu0 0.0
      %1179 = vmatpush1.msra.mxu0 0.0
      %1180 = vmatprep.subr.mxu0 0.0
      %1181 = vmatpush1.msra.mxu0 0.0
      %1182 = vmatprep.subr.mxu0 0.0
      %1183 = vmatpush1.msra.mxu0 0.0
      %1184 = vmatprep.mubr.f32.mxu0 0.0
      %1185 = vmatmul.mubr.f32.gmra.mrb[0].mxu0 %v831
      %v1186 = vpop.f32.mrb[0].mxu0
      %v1187 = vadd.f32 %v962, %v1186
      %v1188 = vpop.f32.mrb[0].mxu0
      %1189 = vmatprep.mubr.f32.mxu0 0.0
      %1190 = vmatmul.mubr.f32.gmra.mrb[0].mxu0 %v832
      %v1191 = vpop.f32.mrb[0].mxu0
      %v1192 = vadd.f32 %v967, %v1191
      %v1193 = vpop.f32.mrb[0].mxu0
      %1194 = vmatprep.mubr.f32.mxu0 0.0
      %1195 = vmatmul.mubr.f32.gmra.mrb[0].mxu0 %v833
      %v1196 = vpop.f32.mrb[0].mxu0
      %v1197 = vadd.f32 %v972, %v1196
      %v1198 = vpop.f32.mrb[0].mxu0
      %1199 = vmatprep.mubr.f32.mxu0 0.0
      %1200 = vmatmul.mubr.f32.gmra.mrb[0].mxu0 %v834
      %v1201 = vpop.f32.mrb[0].mxu0
      %v1202 = vadd.f32 %v977, %v1201
      %v1203 = vpop.f32.mrb[0].mxu0
      %1204 = vmatprep.mubr.f32.mxu0 0.0
      %1205 = vmatmul.mubr.f32.gmra.mrb[0].mxu0 %v835
      %v1206 = vpop.f32.mrb[0].mxu0
      %v1207 = vadd.f32 %v982, %v1206
      %v1208 = vpop.f32.mrb[0].mxu0
      %1209 = vmatprep.mubr.f32.mxu0 0.0
      %1210 = vmatmul.mubr.f32.gmra.mrb[0].mxu0 %v836
      %v1211 = vpop.f32.mrb[0].mxu0
      %v1212 = vadd.f32 %v987, %v1211
      %v1213 = vpop.f32.mrb[0].mxu0
      %1214 = vmatprep.mubr.f32.mxu0 0.0
      %1215 = vmatmul.mubr.f32.gmra.mrb[0].mxu0 %v837
      %v1216 = vpop.f32.mrb[0].mxu0
      %v1217 = vadd.f32 %v992, %v1216
      %v1218 = vpop.f32.mrb[0].mxu0
      %1219 = vmatprep.mubr.f32.mxu0 0.0
      %1220 = vmatmul.mubr.f32.gmra.mrb[0].mxu0 %v838
      %v1221 = vpop.f32.mrb[0].mxu0
      %v1222 = vadd.f32 %v997, %v1221
      %v1223 = vpop.f32.mrb[0].mxu0
      %1224 = vmatprep.mubr.f32.mxu0 0.0
      %1225 = vmatmul.mubr.f32.gmra.mrb[0].mxu0 %v839
      %v1226 = vpop.f32.mrb[0].mxu0
      %v1227 = vadd.f32 %v1002, %v1226
      %v1228 = vpop.f32.mrb[0].mxu0
      %1229 = vmatprep.mubr.f32.mxu0 0.0
      %1230 = vmatmul.mubr.f32.gmra.mrb[0].mxu0 %v840
      %v1231 = vpop.f32.mrb[0].mxu0
      %v1232 = vadd.f32 %v1007, %v1231
      %v1233 = vpop.f32.mrb[0].mxu0
      %1234 = vmatprep.mubr.f32.mxu0 0.0
      %1235 = vmatmul.mubr.f32.gmra.mrb[0].mxu0 %v841
      %v1236 = vpop.f32.mrb[0].mxu0
      %v1237 = vadd.f32 %v1012, %v1236
      %v1238 = vpop.f32.mrb[0].mxu0
      %1239 = vmatprep.mubr.f32.mxu0 0.0
      %1240 = vmatmul.mubr.f32.gmra.mrb[0].mxu0 %v842
      %v1241 = vpop.f32.mrb[0].mxu0
      %v1242 = vadd.f32 %v1017, %v1241
      %v1243 = vpop.f32.mrb[0].mxu0
      %1244 = vmatprep.mubr.f32.mxu0 0.0
      %1245 = vmatmul.mubr.f32.gmra.mrb[0].mxu0 %v843
      %v1246 = vpop.f32.mrb[0].mxu0
      %v1247 = vadd.f32 %v1022, %v1246
      %v1248 = vpop.f32.mrb[0].mxu0
      %1249 = vmatprep.mubr.f32.mxu0 0.0
      %1250 = vmatmul.mubr.f32.gmra.mrb[0].mxu0 %v844
      %v1251 = vpop.f32.mrb[0].mxu0
      %v1252 = vadd.f32 %v1027, %v1251
      %v1253 = vpop.f32.mrb[0].mxu0
      %1254 = vmatprep.mubr.f32.mxu0 0.0
      %1255 = vmatmul.mubr.f32.gmra.mrb[0].mxu0 %v845
      %v1256 = vpop.f32.mrb[0].mxu0
      %v1257 = vadd.f32 %v1032, %v1256
      %v1258 = vpop.f32.mrb[0].mxu0
      %1259 = vmatprep.mubr.f32.mxu0 0.0
      %1260 = vmatmul.mubr.f32.gmra.mrb[0].mxu0 %v846
      %v1261 = vpop.f32.mrb[0].mxu0
      %v1262 = vadd.f32 %v1037, %v1261
      %v1263 = vpop.f32.mrb[0].mxu0
      %1264 = vmatprep.mubr.f32.mxu0 0.0
      %1265 = vmatmul.mubr.f32.gmra.mrb[0].mxu0 %v847
      %v1266 = vpop.f32.mrb[0].mxu0
      %v1267 = vadd.f32 %v1042, %v1266
      %v1268 = vpop.f32.mrb[0].mxu0
      %1269 = vmatprep.mubr.f32.mxu0 0.0
      %1270 = vmatmul.mubr.f32.gmra.mrb[0].mxu0 %v848
      %v1271 = vpop.f32.mrb[0].mxu0
      %v1272 = vadd.f32 %v1047, %v1271
      %v1273 = vpop.f32.mrb[0].mxu0
      %1274 = vmatprep.mubr.f32.mxu0 0.0
      %1275 = vmatmul.mubr.f32.gmra.mrb[0].mxu0 %v849
      %v1276 = vpop.f32.mrb[0].mxu0
      %v1277 = vadd.f32 %v1052, %v1276
      %v1278 = vpop.f32.mrb[0].mxu0
      %1279 = vmatprep.mubr.f32.mxu0 0.0
      %1280 = vmatmul.mubr.f32.gmra.mrb[0].mxu0 %v850
      %v1281 = vpop.f32.mrb[0].mxu0
      %v1282 = vadd.f32 %v1057, %v1281
      %v1283 = vpop.f32.mrb[0].mxu0
      %1284 = vmatprep.mubr.f32.mxu0 0.0
      %1285 = vmatmul.mubr.f32.gmra.mrb[0].mxu0 %v851
      %v1286 = vpop.f32.mrb[0].mxu0
      %v1287 = vadd.f32 %v1062, %v1286
      %v1288 = vpop.f32.mrb[0].mxu0
      %1289 = vmatprep.mubr.f32.mxu0 0.0
      %1290 = vmatmul.mubr.f32.gmra.mrb[0].mxu0 %v852
      %v1291 = vpop.f32.mrb[0].mxu0
      %v1292 = vadd.f32 %v1067, %v1291
      %v1293 = vpop.f32.mrb[0].mxu0
      %1294 = vmatprep.mubr.f32.mxu0 0.0
      %1295 = vmatmul.mubr.f32.gmra.mrb[0].mxu0 %v853
      %v1296 = vpop.f32.mrb[0].mxu0
      %v1297 = vadd.f32 %v1072, %v1296
      %v1298 = vpop.f32.mrb[0].mxu0
      %1299 = vmatprep.mubr.f32.mxu0 0.0
      %1300 = vmatmul.mubr.f32.gmra.mrb[0].mxu0 %v854
      %v1301 = vpop.f32.mrb[0].mxu0
      %v1302 = vadd.f32 %v1077, %v1301
      %v1303 = vpop.f32.mrb[0].mxu0
      %1304 = vmatprep.mubr.f32.mxu0 0.0
      %1305 = vmatmul.mubr.f32.gmra.mrb[0].mxu0 %v855
      %v1306 = vpop.f32.mrb[0].mxu0
      %v1307 = vadd.f32 %v1082, %v1306
      %v1308 = vpop.f32.mrb[0].mxu0
      %1309 = vmatprep.mubr.f32.mxu0 0.0
      %1310 = vmatmul.mubr.f32.gmra.mrb[0].mxu0 %v856
      %v1311 = vpop.f32.mrb[0].mxu0
      %v1312 = vadd.f32 %v1087, %v1311
      %v1313 = vpop.f32.mrb[0].mxu0
      %1314 = vmatprep.mubr.f32.mxu0 0.0
      %1315 = vmatmul.mubr.f32.gmra.mrb[0].mxu0 %v857
      %v1316 = vpop.f32.mrb[0].mxu0
      %v1317 = vadd.f32 %v1092, %v1316
      %v1318 = vpop.f32.mrb[0].mxu0
      %1319 = vmatprep.mubr.f32.mxu0 0.0
      %1320 = vmatmul.mubr.f32.gmra.mrb[0].mxu0 %v858
      %v1321 = vpop.f32.mrb[0].mxu0
      %v1322 = vadd.f32 %v1097, %v1321
      %v1323 = vpop.f32.mrb[0].mxu0
      %1324 = vmatprep.mubr.f32.mxu0 0.0
      %1325 = vmatmul.mubr.f32.gmra.mrb[0].mxu0 %v859
      %v1326 = vpop.f32.mrb[0].mxu0
      %v1327 = vadd.f32 %v1102, %v1326
      %v1328 = vpop.f32.mrb[0].mxu0
      %1329 = vmatprep.mubr.f32.mxu0 0.0
      %1330 = vmatmul.mubr.f32.gmra.mrb[0].mxu0 %v860
      %v1331 = vpop.f32.mrb[0].mxu0
      %v1332 = vadd.f32 %v1107, %v1331
      %v1333 = vpop.f32.mrb[0].mxu0
      %1334 = vmatprep.mubr.f32.mxu0 0.0
      %1335 = vmatmul.mubr.f32.gmra.mrb[0].mxu0 %v861
      %v1336 = vpop.f32.mrb[0].mxu0
      %v1337 = vadd.f32 %v1112, %v1336
      %v1338 = vpop.f32.mrb[0].mxu0
      %1339 = vmatprep.mubr.f32.mxu0 0.0
      %1340 = vmatmul.mubr.f32.gmra.mrb[0].mxu0 %v862
      %v1341 = vpop.f32.mrb[0].mxu0
      %v1342 = vadd.f32 %v1117, %v1341
      %v1343 = vpop.f32.mrb[0].mxu0
      %1344 = vdwg.mxu0
      %v1345 = vld [vmem:[%s1 + $0x282] sm:$0x1]
      %v1346 = vlaneseq
      %v1347 = vshrl.u32 %v1346, 7
      %v1348 = vsub.s32 0, %v1347
      %v1349 = vrot.slane %v1345, %v1348
      %v1350 = vadd.f32 %v1187, %v1349
      %v1351 = vadd.f32 %v1192, %v1349
      %v1352 = vadd.f32 %v1197, %v1349
      %v1353 = vadd.f32 %v1202, %v1349
      %v1354 = vadd.f32 %v1207, %v1349
      %v1355 = vadd.f32 %v1212, %v1349
      %v1356 = vadd.f32 %v1217, %v1349
      %v1357 = vadd.f32 %v1222, %v1349
      %v1358 = vadd.f32 %v1227, %v1349
      %v1359 = vadd.f32 %v1232, %v1349
      %v1360 = vadd.f32 %v1237, %v1349
      %v1361 = vadd.f32 %v1242, %v1349
      %v1362 = vadd.f32 %v1247, %v1349
      %v1363 = vadd.f32 %v1252, %v1349
      %v1364 = vadd.f32 %v1257, %v1349
      %v1365 = vadd.f32 %v1262, %v1349
      %v1366 = vadd.f32 %v1267, %v1349
      %v1367 = vadd.f32 %v1272, %v1349
      %v1368 = vadd.f32 %v1277, %v1349
      %v1369 = vadd.f32 %v1282, %v1349
      %v1370 = vadd.f32 %v1287, %v1349
      %v1371 = vadd.f32 %v1292, %v1349
      %v1372 = vadd.f32 %v1297, %v1349
      %v1373 = vadd.f32 %v1302, %v1349
      %v1374 = vadd.f32 %v1307, %v1349
      %v1375 = vadd.f32 %v1312, %v1349
      %v1376 = vadd.f32 %v1317, %v1349
      %v1377 = vadd.f32 %v1322, %v1349
      %v1378 = vadd.f32 %v1327, %v1349
      %v1379 = vadd.f32 %v1332, %v1349
      %v1380 = vadd.f32 %v1337, %v1349
      %v1381 = vadd.f32 %v1342, %v1349
      %vm1382 = vcmp.gt.f32.partialorder %v1350, 0.0
      %vm1383 = vcmp.gt.f32.partialorder %v1351, 0.0
      %vm1384 = vcmp.gt.f32.partialorder %v1352, 0.0
      %vm1385 = vcmp.gt.f32.partialorder %v1353, 0.0
      %vm1386 = vcmp.gt.f32.partialorder %v1354, 0.0
      %vm1387 = vcmp.gt.f32.partialorder %v1355, 0.0
      %vm1388 = vcmp.gt.f32.partialorder %v1356, 0.0
      %vm1389 = vcmp.gt.f32.partialorder %v1357, 0.0
      %vm1390 = vcmp.gt.f32.partialorder %v1358, 0.0
      %vm1391 = vcmp.gt.f32.partialorder %v1359, 0.0
      %vm1392 = vcmp.gt.f32.partialorder %v1360, 0.0
      %vm1393 = vcmp.gt.f32.partialorder %v1361, 0.0
      %vm1394 = vcmp.gt.f32.partialorder %v1362, 0.0
      %vm1395 = vcmp.gt.f32.partialorder %v1363, 0.0
      %vm1396 = vcmp.gt.f32.partialorder %v1364, 0.0
      %vm1397 = vcmp.gt.f32.partialorder %v1365, 0.0
      %vm1398 = vcmp.gt.f32.partialorder %v1366, 0.0
      %vm1399 = vcmp.gt.f32.partialorder %v1367, 0.0
      %vm1400 = vcmp.gt.f32.partialorder %v1368, 0.0
      %vm1401 = vcmp.gt.f32.partialorder %v1369, 0.0
      %vm1402 = vcmp.gt.f32.partialorder %v1370, 0.0
      %vm1403 = vcmp.gt.f32.partialorder %v1371, 0.0
      %vm1404 = vcmp.gt.f32.partialorder %v1372, 0.0
      %vm1405 = vcmp.gt.f32.partialorder %v1373, 0.0
      %vm1406 = vcmp.gt.f32.partialorder %v1374, 0.0
      %vm1407 = vcmp.gt.f32.partialorder %v1375, 0.0
      %vm1408 = vcmp.gt.f32.partialorder %v1376, 0.0
      %vm1409 = vcmp.gt.f32.partialorder %v1377, 0.0
      %vm1410 = vcmp.gt.f32.partialorder %v1378, 0.0
      %vm1411 = vcmp.gt.f32.partialorder %v1379, 0.0
      %vm1412 = vcmp.gt.f32.partialorder %v1380, 0.0
      %vm1413 = vcmp.gt.f32.partialorder %v1381, 0.0
      %v1414 = vmul.f32 %v1350, 0.01
      %v1415 = vmul.f32 %v1351, 0.01
      %v1416 = vmul.f32 %v1352, 0.01
      %v1417 = vmul.f32 %v1353, 0.01
      %v1418 = vmul.f32 %v1354, 0.01
      %v1419 = vmul.f32 %v1355, 0.01
      %v1420 = vmul.f32 %v1356, 0.01
      %v1421 = vmul.f32 %v1357, 0.01
      %v1422 = vmul.f32 %v1358, 0.01
      %v1423 = vmul.f32 %v1359, 0.01
      %v1424 = vmul.f32 %v1360, 0.01
      %v1425 = vmul.f32 %v1361, 0.01
      %v1426 = vmul.f32 %v1362, 0.01
      %v1427 = vmul.f32 %v1363, 0.01
      %v1428 = vmul.f32 %v1364, 0.01
      %v1429 = vmul.f32 %v1365, 0.01
      %v1430 = vmul.f32 %v1366, 0.01
      %v1431 = vmul.f32 %v1367, 0.01
      %v1432 = vmul.f32 %v1368, 0.01
      %v1433 = vmul.f32 %v1369, 0.01
      %v1434 = vmul.f32 %v1370, 0.01
      %v1435 = vmul.f32 %v1371, 0.01
      %v1436 = vmul.f32 %v1372, 0.01
      %v1437 = vmul.f32 %v1373, 0.01
      %v1438 = vmul.f32 %v1374, 0.01
      %v1439 = vmul.f32 %v1375, 0.01
      %v1440 = vmul.f32 %v1376, 0.01
      %v1441 = vmul.f32 %v1377, 0.01
      %v1442 = vmul.f32 %v1378, 0.01
      %v1443 = vmul.f32 %v1379, 0.01
      %v1444 = vmul.f32 %v1380, 0.01
      %v1445 = vmul.f32 %v1381, 0.01
      %v1446 = vsel %vm1382, %v1350, %v1414
      %v1447 = vsel %vm1383, %v1351, %v1415
      %v1448 = vsel %vm1384, %v1352, %v1416
      %v1449 = vsel %vm1385, %v1353, %v1417
      %v1450 = vsel %vm1386, %v1354, %v1418
      %v1451 = vsel %vm1387, %v1355, %v1419
      %v1452 = vsel %vm1388, %v1356, %v1420
      %v1453 = vsel %vm1389, %v1357, %v1421
      %v1454 = vsel %vm1390, %v1358, %v1422
      %v1455 = vsel %vm1391, %v1359, %v1423
      %v1456 = vsel %vm1392, %v1360, %v1424
      %v1457 = vsel %vm1393, %v1361, %v1425
      %v1458 = vsel %vm1394, %v1362, %v1426
      %v1459 = vsel %vm1395, %v1363, %v1427
      %v1460 = vsel %vm1396, %v1364, %v1428
      %v1461 = vsel %vm1397, %v1365, %v1429
      %v1462 = vsel %vm1398, %v1366, %v1430
      %v1463 = vsel %vm1399, %v1367, %v1431
      %v1464 = vsel %vm1400, %v1368, %v1432
      %v1465 = vsel %vm1401, %v1369, %v1433
      %v1466 = vsel %vm1402, %v1370, %v1434
      %v1467 = vsel %vm1403, %v1371, %v1435
      %v1468 = vsel %vm1404, %v1372, %v1436
      %v1469 = vsel %vm1405, %v1373, %v1437
      %v1470 = vsel %vm1406, %v1374, %v1438
      %v1471 = vsel %vm1407, %v1375, %v1439
      %v1472 = vsel %vm1408, %v1376, %v1440
      %v1473 = vsel %vm1409, %v1377, %v1441
      %v1474 = vsel %vm1410, %v1378, %v1442
      %v1475 = vsel %vm1411, %v1379, %v1443
      %v1476 = vsel %vm1412, %v1380, %v1444
      %v1477 = vsel %vm1413, %v1381, %v1445
      %v1478 = vld [vmem:[%s1 + $0x200] sm:$0xff]
      %v1479 = vld [vmem:[%s1 + $0x208] sm:$0xff]
      %v1480 = vld [vmem:[%s1 + $0x210] sm:$0xff]
      %v1481 = vld [vmem:[%s1 + $0x218] sm:$0xff]
      %v1482 = vld [vmem:[%s1 + $0x220] sm:$0xff]
      %v1483 = vld [vmem:[%s1 + $0x228] sm:$0xff]
      %v1484 = vld [vmem:[%s1 + $0x230] sm:$0xff]
      %v1485 = vld [vmem:[%s1 + $0x238] sm:$0xff]
      %v1486 = vld [vmem:[%s1 + $0x240] sm:$0xff]
      %v1487 = vld [vmem:[%s1 + $0x248] sm:$0xff]
      %v1488 = vld [vmem:[%s1 + $0x250] sm:$0xff]
      %v1489 = vld [vmem:[%s1 + $0x258] sm:$0xff]
      %v1490 = vld [vmem:[%s1 + $0x260] sm:$0xff]
      %v1491 = vld [vmem:[%s1 + $0x268] sm:$0xff]
      %v1492 = vld [vmem:[%s1 + $0x270] sm:$0xff]
      %v1493 = vld [vmem:[%s1 + $0x278] sm:$0xff]
      %v1494 = vld [vmem:[%s1 + $0x283] sm:$0x1]
      %v1495 = vlaneseq
      %v1496 = vshrl.u32 %v1495, 7
      %v1497 = vsub.s32 0, %v1496
      %v1498 = vrot.slane %v1494, %v1497
      %1499 = vmatprep.subr.mxu0 0.0
      %1500 = vmatpush1.msra.mxu0 %v1478
      %1501 = vmatprep.subr.mxu0 0.0
      %1502 = vmatpush1.msra.mxu0 %v1479
      %1503 = vmatprep.subr.mxu0 0.0
      %1504 = vmatpush1.msra.mxu0 %v1480
      %1505 = vmatprep.subr.mxu0 0.0
      %1506 = vmatpush1.msra.mxu0 %v1481
      %1507 = vmatprep.subr.mxu0 0.0
      %1508 = vmatpush1.msra.mxu0 %v1482
      %1509 = vmatprep.subr.mxu0 0.0
      %1510 = vmatpush1.msra.mxu0 %v1483
      %1511 = vmatprep.subr.mxu0 0.0
      %1512 = vmatpush1.msra.mxu0 %v1484
      %1513 = vmatprep.subr.mxu0 0.0
      %1514 = vmatpush1.msra.mxu0 %v1485
      %1515 = vmatprep.subr.mxu0 0.0
      %1516 = vmatpush1.msra.mxu0 %v1486
      %1517 = vmatprep.subr.mxu0 0.0
      %1518 = vmatpush1.msra.mxu0 %v1487
      %1519 = vmatprep.subr.mxu0 0.0
      %1520 = vmatpush1.msra.mxu0 %v1488
      %1521 = vmatprep.subr.mxu0 0.0
      %1522 = vmatpush1.msra.mxu0 %v1489
      %1523 = vmatprep.subr.mxu0 0.0
      %1524 = vmatpush1.msra.mxu0 %v1490
      %1525 = vmatprep.subr.mxu0 0.0
      %1526 = vmatpush1.msra.mxu0 %v1491
      %1527 = vmatprep.subr.mxu0 0.0
      %1528 = vmatpush1.msra.mxu0 %v1492
      %1529 = vmatprep.subr.mxu0 0.0
      %1530 = vmatpush1.msra.mxu0 %v1493
      %1531 = vmatprep.subr.mxu0 0.0
      %1532 = vmatpush1.msra.mxu0 0.0
      %1533 = vmatprep.subr.mxu0 0.0
      %1534 = vmatpush1.msra.mxu0 0.0
      %1535 = vmatprep.subr.mxu0 0.0
      %1536 = vmatpush1.msra.mxu0 0.0
      %1537 = vmatprep.subr.mxu0 0.0
      %1538 = vmatpush1.msra.mxu0 0.0
      %1539 = vmatprep.subr.mxu0 0.0
      %1540 = vmatpush1.msra.mxu0 0.0
      %1541 = vmatprep.subr.mxu0 0.0
      %1542 = vmatpush1.msra.mxu0 0.0
      %1543 = vmatprep.subr.mxu0 0.0
      %1544 = vmatpush1.msra.mxu0 0.0
      %1545 = vmatprep.subr.mxu0 0.0
      %1546 = vmatpush1.msra.mxu0 0.0
      %1547 = vmatprep.subr.mxu0 0.0
      %1548 = vmatpush1.msra.mxu0 0.0
      %1549 = vmatprep.subr.mxu0 0.0
      %1550 = vmatpush1.msra.mxu0 0.0
      %1551 = vmatprep.subr.mxu0 0.0
      %1552 = vmatpush1.msra.mxu0 0.0
      %1553 = vmatprep.subr.mxu0 0.0
      %1554 = vmatpush1.msra.mxu0 0.0
      %1555 = vmatprep.subr.mxu0 0.0
      %1556 = vmatpush1.msra.mxu0 0.0
      %1557 = vmatprep.subr.mxu0 0.0
      %1558 = vmatpush1.msra.mxu0 0.0
      %1559 = vmatprep.subr.mxu0 0.0
      %1560 = vmatpush1.msra.mxu0 0.0
      %1561 = vmatprep.subr.mxu0 0.0
      %1562 = vmatpush1.msra.mxu0 0.0
      %1563 = vmatprep.mubr.f32.mxu0 0.0
      %1564 = vmatmul.mubr.f32.gmra.mrb[0].mxu0 %v1446
      %v1565 = vpop.f32.mrb[0].mxu0
      %v1566 = vadd.f32 %v1498, %v1565
      %v1567 = vpop.f32.mrb[0].mxu0
      %1568 = vmatprep.mubr.f32.mxu0 0.0
      %1569 = vmatmul.mubr.f32.gmra.mrb[0].mxu0 %v1447
      %v1570 = vpop.f32.mrb[0].mxu0
      %v1571 = vadd.f32 %v1498, %v1570
      %v1572 = vpop.f32.mrb[0].mxu0
      %1573 = vmatprep.mubr.f32.mxu0 0.0
      %1574 = vmatmul.mubr.f32.gmra.mrb[0].mxu0 %v1448
      %v1575 = vpop.f32.mrb[0].mxu0
      %v1576 = vadd.f32 %v1498, %v1575
      %v1577 = vpop.f32.mrb[0].mxu0
      %1578 = vmatprep.mubr.f32.mxu0 0.0
      %1579 = vmatmul.mubr.f32.gmra.mrb[0].mxu0 %v1449
      %v1580 = vpop.f32.mrb[0].mxu0
      %v1581 = vadd.f32 %v1498, %v1580
      %v1582 = vpop.f32.mrb[0].mxu0
      %1583 = vmatprep.mubr.f32.mxu0 0.0
      %1584 = vmatmul.mubr.f32.gmra.mrb[0].mxu0 %v1450
      %v1585 = vpop.f32.mrb[0].mxu0
      %v1586 = vadd.f32 %v1498, %v1585
      %v1587 = vpop.f32.mrb[0].mxu0
      %1588 = vmatprep.mubr.f32.mxu0 0.0
      %1589 = vmatmul.mubr.f32.gmra.mrb[0].mxu0 %v1451
      %v1590 = vpop.f32.mrb[0].mxu0
      %v1591 = vadd.f32 %v1498, %v1590
      %v1592 = vpop.f32.mrb[0].mxu0
      %1593 = vmatprep.mubr.f32.mxu0 0.0
      %1594 = vmatmul.mubr.f32.gmra.mrb[0].mxu0 %v1452
      %v1595 = vpop.f32.mrb[0].mxu0
      %v1596 = vadd.f32 %v1498, %v1595
      %v1597 = vpop.f32.mrb[0].mxu0
      %1598 = vmatprep.mubr.f32.mxu0 0.0
      %1599 = vmatmul.mubr.f32.gmra.mrb[0].mxu0 %v1453
      %v1600 = vpop.f32.mrb[0].mxu0
      %v1601 = vadd.f32 %v1498, %v1600
      %v1602 = vpop.f32.mrb[0].mxu0
      %1603 = vmatprep.mubr.f32.mxu0 0.0
      %1604 = vmatmul.mubr.f32.gmra.mrb[0].mxu0 %v1454
      %v1605 = vpop.f32.mrb[0].mxu0
      %v1606 = vadd.f32 %v1498, %v1605
      %v1607 = vpop.f32.mrb[0].mxu0
      %1608 = vmatprep.mubr.f32.mxu0 0.0
      %1609 = vmatmul.mubr.f32.gmra.mrb[0].mxu0 %v1455
      %v1610 = vpop.f32.mrb[0].mxu0
      %v1611 = vadd.f32 %v1498, %v1610
      %v1612 = vpop.f32.mrb[0].mxu0
      %1613 = vmatprep.mubr.f32.mxu0 0.0
      %1614 = vmatmul.mubr.f32.gmra.mrb[0].mxu0 %v1456
      %v1615 = vpop.f32.mrb[0].mxu0
      %v1616 = vadd.f32 %v1498, %v1615
      %v1617 = vpop.f32.mrb[0].mxu0
      %1618 = vmatprep.mubr.f32.mxu0 0.0
      %1619 = vmatmul.mubr.f32.gmra.mrb[0].mxu0 %v1457
      %v1620 = vpop.f32.mrb[0].mxu0
      %v1621 = vadd.f32 %v1498, %v1620
      %v1622 = vpop.f32.mrb[0].mxu0
      %1623 = vmatprep.mubr.f32.mxu0 0.0
      %1624 = vmatmul.mubr.f32.gmra.mrb[0].mxu0 %v1458
      %v1625 = vpop.f32.mrb[0].mxu0
      %v1626 = vadd.f32 %v1498, %v1625
      %v1627 = vpop.f32.mrb[0].mxu0
      %1628 = vmatprep.mubr.f32.mxu0 0.0
      %1629 = vmatmul.mubr.f32.gmra.mrb[0].mxu0 %v1459
      %v1630 = vpop.f32.mrb[0].mxu0
      %v1631 = vadd.f32 %v1498, %v1630
      %v1632 = vpop.f32.mrb[0].mxu0
      %1633 = vmatprep.mubr.f32.mxu0 0.0
      %1634 = vmatmul.mubr.f32.gmra.mrb[0].mxu0 %v1460
      %v1635 = vpop.f32.mrb[0].mxu0
      %v1636 = vadd.f32 %v1498, %v1635
      %v1637 = vpop.f32.mrb[0].mxu0
      %1638 = vmatprep.mubr.f32.mxu0 0.0
      %1639 = vmatmul.mubr.f32.gmra.mrb[0].mxu0 %v1461
      %v1640 = vpop.f32.mrb[0].mxu0
      %v1641 = vadd.f32 %v1498, %v1640
      %v1642 = vpop.f32.mrb[0].mxu0
      %1643 = vmatprep.mubr.f32.mxu0 0.0
      %1644 = vmatmul.mubr.f32.gmra.mrb[0].mxu0 %v1462
      %v1645 = vpop.f32.mrb[0].mxu0
      %v1646 = vadd.f32 %v1498, %v1645
      %v1647 = vpop.f32.mrb[0].mxu0
      %1648 = vmatprep.mubr.f32.mxu0 0.0
      %1649 = vmatmul.mubr.f32.gmra.mrb[0].mxu0 %v1463
      %v1650 = vpop.f32.mrb[0].mxu0
      %v1651 = vadd.f32 %v1498, %v1650
      %v1652 = vpop.f32.mrb[0].mxu0
      %1653 = vmatprep.mubr.f32.mxu0 0.0
      %1654 = vmatmul.mubr.f32.gmra.mrb[0].mxu0 %v1464
      %v1655 = vpop.f32.mrb[0].mxu0
      %v1656 = vadd.f32 %v1498, %v1655
      %v1657 = vpop.f32.mrb[0].mxu0
      %1658 = vmatprep.mubr.f32.mxu0 0.0
      %1659 = vmatmul.mubr.f32.gmra.mrb[0].mxu0 %v1465
      %v1660 = vpop.f32.mrb[0].mxu0
      %v1661 = vadd.f32 %v1498, %v1660
      %v1662 = vpop.f32.mrb[0].mxu0
      %1663 = vmatprep.mubr.f32.mxu0 0.0
      %1664 = vmatmul.mubr.f32.gmra.mrb[0].mxu0 %v1466
      %v1665 = vpop.f32.mrb[0].mxu0
      %v1666 = vadd.f32 %v1498, %v1665
      %v1667 = vpop.f32.mrb[0].mxu0
      %1668 = vmatprep.mubr.f32.mxu0 0.0
      %1669 = vmatmul.mubr.f32.gmra.mrb[0].mxu0 %v1467
      %v1670 = vpop.f32.mrb[0].mxu0
      %v1671 = vadd.f32 %v1498, %v1670
      %v1672 = vpop.f32.mrb[0].mxu0
      %1673 = vmatprep.mubr.f32.mxu0 0.0
      %1674 = vmatmul.mubr.f32.gmra.mrb[0].mxu0 %v1468
      %v1675 = vpop.f32.mrb[0].mxu0
      %v1676 = vadd.f32 %v1498, %v1675
      %v1677 = vpop.f32.mrb[0].mxu0
      %1678 = vmatprep.mubr.f32.mxu0 0.0
      %1679 = vmatmul.mubr.f32.gmra.mrb[0].mxu0 %v1469
      %v1680 = vpop.f32.mrb[0].mxu0
      %v1681 = vadd.f32 %v1498, %v1680
      %v1682 = vpop.f32.mrb[0].mxu0
      %1683 = vmatprep.mubr.f32.mxu0 0.0
      %1684 = vmatmul.mubr.f32.gmra.mrb[0].mxu0 %v1470
      %v1685 = vpop.f32.mrb[0].mxu0
      %v1686 = vadd.f32 %v1498, %v1685
      %v1687 = vpop.f32.mrb[0].mxu0
      %1688 = vmatprep.mubr.f32.mxu0 0.0
      %1689 = vmatmul.mubr.f32.gmra.mrb[0].mxu0 %v1471
      %v1690 = vpop.f32.mrb[0].mxu0
      %v1691 = vadd.f32 %v1498, %v1690
      %v1692 = vpop.f32.mrb[0].mxu0
      %1693 = vmatprep.mubr.f32.mxu0 0.0
      %1694 = vmatmul.mubr.f32.gmra.mrb[0].mxu0 %v1472
      %v1695 = vpop.f32.mrb[0].mxu0
      %v1696 = vadd.f32 %v1498, %v1695
      %v1697 = vpop.f32.mrb[0].mxu0
      %1698 = vmatprep.mubr.f32.mxu0 0.0
      %1699 = vmatmul.mubr.f32.gmra.mrb[0].mxu0 %v1473
      %v1700 = vpop.f32.mrb[0].mxu0
      %v1701 = vadd.f32 %v1498, %v1700
      %v1702 = vpop.f32.mrb[0].mxu0
      %1703 = vmatprep.mubr.f32.mxu0 0.0
      %1704 = vmatmul.mubr.f32.gmra.mrb[0].mxu0 %v1474
      %v1705 = vpop.f32.mrb[0].mxu0
      %v1706 = vadd.f32 %v1498, %v1705
      %v1707 = vpop.f32.mrb[0].mxu0
      %1708 = vmatprep.mubr.f32.mxu0 0.0
      %1709 = vmatmul.mubr.f32.gmra.mrb[0].mxu0 %v1475
      %v1710 = vpop.f32.mrb[0].mxu0
      %v1711 = vadd.f32 %v1498, %v1710
      %v1712 = vpop.f32.mrb[0].mxu0
      %1713 = vmatprep.mubr.f32.mxu0 0.0
      %1714 = vmatmul.mubr.f32.gmra.mrb[0].mxu0 %v1476
      %v1715 = vpop.f32.mrb[0].mxu0
      %v1716 = vadd.f32 %v1498, %v1715
      %v1717 = vpop.f32.mrb[0].mxu0
      %1718 = vmatprep.mubr.f32.mxu0 0.0
      %1719 = vmatmul.mubr.f32.gmra.mrb[0].mxu0 %v1477
      %v1720 = vpop.f32.mrb[0].mxu0
      %v1721 = vadd.f32 %v1498, %v1720
      %v1722 = vpop.f32.mrb[0].mxu0
      %1723 = vdwg.mxu0
      %v1724 = vrot.slane %v1566, 4
      %v1725 = vmax.f32 %v1566, %v1724
      %v1726 = vrot.slane %v1725, 2
      %v1727 = vmax.f32 %v1725, %v1726
      %v1728 = vrot.slane %v1727, 1
      %v1729 = vmax.f32 %v1727, %v1728
      %v1730 = vsub.f32 %v1566, %v1729
      %v1731 = vmul.f32 %v1730, 1.442695
      %v1732 = vpow.pop %v1731
      %v1733 = vrot.slane %v1732, 4
      %v1734 = vadd.f32 %v1732, %v1733
      %v1735 = vrot.slane %v1734, 2
      %v1736 = vadd.f32 %v1734, %v1735
      %v1737 = vrot.slane %v1736, 1
      %v1738 = vadd.f32 %v1736, %v1737
      %v1739 = vrcp.pop %v1738
      %v1740 = vmul.f32 %v1732, %v1739
      %1741 = vst [vmem:[%s145] sm:$0xff] %v1740
      %v1742 = vrot.slane %v1571, 4
      %v1743 = vmax.f32 %v1571, %v1742
      %v1744 = vrot.slane %v1743, 2
      %v1745 = vmax.f32 %v1743, %v1744
      %v1746 = vrot.slane %v1745, 1
      %v1747 = vmax.f32 %v1745, %v1746
      %v1748 = vsub.f32 %v1571, %v1747
      %v1749 = vmul.f32 %v1748, 1.442695
      %v1750 = vpow.pop %v1749
      %v1751 = vrot.slane %v1750, 4
      %v1752 = vadd.f32 %v1750, %v1751
      %v1753 = vrot.slane %v1752, 2
      %v1754 = vadd.f32 %v1752, %v1753
      %v1755 = vrot.slane %v1754, 1
      %v1756 = vadd.f32 %v1754, %v1755
      %v1757 = vrcp.pop %v1756
      %v1758 = vmul.f32 %v1750, %v1757
      %1759 = vst [vmem:[%s145 + $0x8] sm:$0xff] %v1758
      %v1760 = vrot.slane %v1576, 4
      %v1761 = vmax.f32 %v1576, %v1760
      %v1762 = vrot.slane %v1761, 2
      %v1763 = vmax.f32 %v1761, %v1762
      %v1764 = vrot.slane %v1763, 1
      %v1765 = vmax.f32 %v1763, %v1764
      %v1766 = vsub.f32 %v1576, %v1765
      %v1767 = vmul.f32 %v1766, 1.442695
      %v1768 = vpow.pop %v1767
      %v1769 = vrot.slane %v1768, 4
      %v1770 = vadd.f32 %v1768, %v1769
      %v1771 = vrot.slane %v1770, 2
      %v1772 = vadd.f32 %v1770, %v1771
      %v1773 = vrot.slane %v1772, 1
      %v1774 = vadd.f32 %v1772, %v1773
      %v1775 = vrcp.pop %v1774
      %v1776 = vmul.f32 %v1768, %v1775
      %1777 = vst [vmem:[%s145 + $0x10] sm:$0xff] %v1776
      %v1778 = vrot.slane %v1581, 4
      %v1779 = vmax.f32 %v1581, %v1778
      %v1780 = vrot.slane %v1779, 2
      %v1781 = vmax.f32 %v1779, %v1780
      %v1782 = vrot.slane %v1781, 1
      %v1783 = vmax.f32 %v1781, %v1782
      %v1784 = vsub.f32 %v1581, %v1783
      %v1785 = vmul.f32 %v1784, 1.442695
      %v1786 = vpow.pop %v1785
      %v1787 = vrot.slane %v1786, 4
      %v1788 = vadd.f32 %v1786, %v1787
      %v1789 = vrot.slane %v1788, 2
      %v1790 = vadd.f32 %v1788, %v1789
      %v1791 = vrot.slane %v1790, 1
      %v1792 = vadd.f32 %v1790, %v1791
      %v1793 = vrcp.pop %v1792
      %v1794 = vmul.f32 %v1786, %v1793
      %1795 = vst [vmem:[%s145 + $0x18] sm:$0xff] %v1794
      %v1796 = vrot.slane %v1586, 4
      %v1797 = vmax.f32 %v1586, %v1796
      %v1798 = vrot.slane %v1797, 2
      %v1799 = vmax.f32 %v1797, %v1798
      %v1800 = vrot.slane %v1799, 1
      %v1801 = vmax.f32 %v1799, %v1800
      %v1802 = vsub.f32 %v1586, %v1801
      %v1803 = vmul.f32 %v1802, 1.442695
      %v1804 = vpow.pop %v1803
      %v1805 = vrot.slane %v1804, 4
      %v1806 = vadd.f32 %v1804, %v1805
      %v1807 = vrot.slane %v1806, 2
      %v1808 = vadd.f32 %v1806, %v1807
      %v1809 = vrot.slane %v1808, 1
      %v1810 = vadd.f32 %v1808, %v1809
      %v1811 = vrcp.pop %v1810
      %v1812 = vmul.f32 %v1804, %v1811
      %1813 = vst [vmem:[%s145 + $0x20] sm:$0xff] %v1812
      %v1814 = vrot.slane %v1591, 4
      %v1815 = vmax.f32 %v1591, %v1814
      %v1816 = vrot.slane %v1815, 2
      %v1817 = vmax.f32 %v1815, %v1816
      %v1818 = vrot.slane %v1817, 1
      %v1819 = vmax.f32 %v1817, %v1818
      %v1820 = vsub.f32 %v1591, %v1819
      %v1821 = vmul.f32 %v1820, 1.442695
      %v1822 = vpow.pop %v1821
      %v1823 = vrot.slane %v1822, 4
      %v1824 = vadd.f32 %v1822, %v1823
      %v1825 = vrot.slane %v1824, 2
      %v1826 = vadd.f32 %v1824, %v1825
      %v1827 = vrot.slane %v1826, 1
      %v1828 = vadd.f32 %v1826, %v1827
      %v1829 = vrcp.pop %v1828
      %v1830 = vmul.f32 %v1822, %v1829
      %1831 = vst [vmem:[%s145 + $0x28] sm:$0xff] %v1830
      %v1832 = vrot.slane %v1596, 4
      %v1833 = vmax.f32 %v1596, %v1832
      %v1834 = vrot.slane %v1833, 2
      %v1835 = vmax.f32 %v1833, %v1834
      %v1836 = vrot.slane %v1835, 1
      %v1837 = vmax.f32 %v1835, %v1836
      %v1838 = vsub.f32 %v1596, %v1837
      %v1839 = vmul.f32 %v1838, 1.442695
      %v1840 = vpow.pop %v1839
      %v1841 = vrot.slane %v1840, 4
      %v1842 = vadd.f32 %v1840, %v1841
      %v1843 = vrot.slane %v1842, 2
      %v1844 = vadd.f32 %v1842, %v1843
      %v1845 = vrot.slane %v1844, 1
      %v1846 = vadd.f32 %v1844, %v1845
      %v1847 = vrcp.pop %v1846
      %v1848 = vmul.f32 %v1840, %v1847
      %1849 = vst [vmem:[%s145 + $0x30] sm:$0xff] %v1848
      %v1850 = vrot.slane %v1601, 4
      %v1851 = vmax.f32 %v1601, %v1850
      %v1852 = vrot.slane %v1851, 2
      %v1853 = vmax.f32 %v1851, %v1852
      %v1854 = vrot.slane %v1853, 1
      %v1855 = vmax.f32 %v1853, %v1854
      %v1856 = vsub.f32 %v1601, %v1855
      %v1857 = vmul.f32 %v1856, 1.442695
      %v1858 = vpow.pop %v1857
      %v1859 = vrot.slane %v1858, 4
      %v1860 = vadd.f32 %v1858, %v1859
      %v1861 = vrot.slane %v1860, 2
      %v1862 = vadd.f32 %v1860, %v1861
      %v1863 = vrot.slane %v1862, 1
      %v1864 = vadd.f32 %v1862, %v1863
      %v1865 = vrcp.pop %v1864
      %v1866 = vmul.f32 %v1858, %v1865
      %1867 = vst [vmem:[%s145 + $0x38] sm:$0xff] %v1866
      %v1868 = vrot.slane %v1606, 4
      %v1869 = vmax.f32 %v1606, %v1868
      %v1870 = vrot.slane %v1869, 2
      %v1871 = vmax.f32 %v1869, %v1870
      %v1872 = vrot.slane %v1871, 1
      %v1873 = vmax.f32 %v1871, %v1872
      %v1874 = vsub.f32 %v1606, %v1873
      %v1875 = vmul.f32 %v1874, 1.442695
      %v1876 = vpow.pop %v1875
      %v1877 = vrot.slane %v1876, 4
      %v1878 = vadd.f32 %v1876, %v1877
      %v1879 = vrot.slane %v1878, 2
      %v1880 = vadd.f32 %v1878, %v1879
      %v1881 = vrot.slane %v1880, 1
      %v1882 = vadd.f32 %v1880, %v1881
      %v1883 = vrcp.pop %v1882
      %v1884 = vmul.f32 %v1876, %v1883
      %1885 = vst [vmem:[%s145 + $0x40] sm:$0xff] %v1884
      %v1886 = vrot.slane %v1611, 4
      %v1887 = vmax.f32 %v1611, %v1886
      %v1888 = vrot.slane %v1887, 2
      %v1889 = vmax.f32 %v1887, %v1888
      %v1890 = vrot.slane %v1889, 1
      %v1891 = vmax.f32 %v1889, %v1890
      %v1892 = vsub.f32 %v1611, %v1891
      %v1893 = vmul.f32 %v1892, 1.442695
      %v1894 = vpow.pop %v1893
      %v1895 = vrot.slane %v1894, 4
      %v1896 = vadd.f32 %v1894, %v1895
      %v1897 = vrot.slane %v1896, 2
      %v1898 = vadd.f32 %v1896, %v1897
      %v1899 = vrot.slane %v1898, 1
      %v1900 = vadd.f32 %v1898, %v1899
      %v1901 = vrcp.pop %v1900
      %v1902 = vmul.f32 %v1894, %v1901
      %1903 = vst [vmem:[%s145 + $0x48] sm:$0xff] %v1902
      %v1904 = vrot.slane %v1616, 4
      %v1905 = vmax.f32 %v1616, %v1904
      %v1906 = vrot.slane %v1905, 2
      %v1907 = vmax.f32 %v1905, %v1906
      %v1908 = vrot.slane %v1907, 1
      %v1909 = vmax.f32 %v1907, %v1908
      %v1910 = vsub.f32 %v1616, %v1909
      %v1911 = vmul.f32 %v1910, 1.442695
      %v1912 = vpow.pop %v1911
      %v1913 = vrot.slane %v1912, 4
      %v1914 = vadd.f32 %v1912, %v1913
      %v1915 = vrot.slane %v1914, 2
      %v1916 = vadd.f32 %v1914, %v1915
      %v1917 = vrot.slane %v1916, 1
      %v1918 = vadd.f32 %v1916, %v1917
      %v1919 = vrcp.pop %v1918
      %v1920 = vmul.f32 %v1912, %v1919
      %1921 = vst [vmem:[%s145 + $0x50] sm:$0xff] %v1920
      %v1922 = vrot.slane %v1621, 4
      %v1923 = vmax.f32 %v1621, %v1922
      %v1924 = vrot.slane %v1923, 2
      %v1925 = vmax.f32 %v1923, %v1924
      %v1926 = vrot.slane %v1925, 1
      %v1927 = vmax.f32 %v1925, %v1926
      %v1928 = vsub.f32 %v1621, %v1927
      %v1929 = vmul.f32 %v1928, 1.442695
      %v1930 = vpow.pop %v1929
      %v1931 = vrot.slane %v1930, 4
      %v1932 = vadd.f32 %v1930, %v1931
      %v1933 = vrot.slane %v1932, 2
      %v1934 = vadd.f32 %v1932, %v1933
      %v1935 = vrot.slane %v1934, 1
      %v1936 = vadd.f32 %v1934, %v1935
      %v1937 = vrcp.pop %v1936
      %v1938 = vmul.f32 %v1930, %v1937
      %1939 = vst [vmem:[%s145 + $0x58] sm:$0xff] %v1938
      %v1940 = vrot.slane %v1626, 4
      %v1941 = vmax.f32 %v1626, %v1940
      %v1942 = vrot.slane %v1941, 2
      %v1943 = vmax.f32 %v1941, %v1942
      %v1944 = vrot.slane %v1943, 1
      %v1945 = vmax.f32 %v1943, %v1944
      %v1946 = vsub.f32 %v1626, %v1945
      %v1947 = vmul.f32 %v1946, 1.442695
      %v1948 = vpow.pop %v1947
      %v1949 = vrot.slane %v1948, 4
      %v1950 = vadd.f32 %v1948, %v1949
      %v1951 = vrot.slane %v1950, 2
      %v1952 = vadd.f32 %v1950, %v1951
      %v1953 = vrot.slane %v1952, 1
      %v1954 = vadd.f32 %v1952, %v1953
      %v1955 = vrcp.pop %v1954
      %v1956 = vmul.f32 %v1948, %v1955
      %1957 = vst [vmem:[%s145 + $0x60] sm:$0xff] %v1956
      %v1958 = vrot.slane %v1631, 4
      %v1959 = vmax.f32 %v1631, %v1958
      %v1960 = vrot.slane %v1959, 2
      %v1961 = vmax.f32 %v1959, %v1960
      %v1962 = vrot.slane %v1961, 1
      %v1963 = vmax.f32 %v1961, %v1962
      %v1964 = vsub.f32 %v1631, %v1963
      %v1965 = vmul.f32 %v1964, 1.442695
      %v1966 = vpow.pop %v1965
      %v1967 = vrot.slane %v1966, 4
      %v1968 = vadd.f32 %v1966, %v1967
      %v1969 = vrot.slane %v1968, 2
      %v1970 = vadd.f32 %v1968, %v1969
      %v1971 = vrot.slane %v1970, 1
      %v1972 = vadd.f32 %v1970, %v1971
      %v1973 = vrcp.pop %v1972
      %v1974 = vmul.f32 %v1966, %v1973
      %1975 = vst [vmem:[%s145 + $0x68] sm:$0xff] %v1974
      %v1976 = vrot.slane %v1636, 4
      %v1977 = vmax.f32 %v1636, %v1976
      %v1978 = vrot.slane %v1977, 2
      %v1979 = vmax.f32 %v1977, %v1978
      %v1980 = vrot.slane %v1979, 1
      %v1981 = vmax.f32 %v1979, %v1980
      %v1982 = vsub.f32 %v1636, %v1981
      %v1983 = vmul.f32 %v1982, 1.442695
      %v1984 = vpow.pop %v1983
      %v1985 = vrot.slane %v1984, 4
      %v1986 = vadd.f32 %v1984, %v1985
      %v1987 = vrot.slane %v1986, 2
      %v1988 = vadd.f32 %v1986, %v1987
      %v1989 = vrot.slane %v1988, 1
      %v1990 = vadd.f32 %v1988, %v1989
      %v1991 = vrcp.pop %v1990
      %v1992 = vmul.f32 %v1984, %v1991
      %1993 = vst [vmem:[%s145 + $0x70] sm:$0xff] %v1992
      %v1994 = vrot.slane %v1641, 4
      %v1995 = vmax.f32 %v1641, %v1994
      %v1996 = vrot.slane %v1995, 2
      %v1997 = vmax.f32 %v1995, %v1996
      %v1998 = vrot.slane %v1997, 1
      %v1999 = vmax.f32 %v1997, %v1998
      %v2000 = vsub.f32 %v1641, %v1999
      %v2001 = vmul.f32 %v2000, 1.442695
      %v2002 = vpow.pop %v2001
      %v2003 = vrot.slane %v2002, 4
      %v2004 = vadd.f32 %v2002, %v2003
      %v2005 = vrot.slane %v2004, 2
      %v2006 = vadd.f32 %v2004, %v2005
      %v2007 = vrot.slane %v2006, 1
      %v2008 = vadd.f32 %v2006, %v2007
      %v2009 = vrcp.pop %v2008
      %v2010 = vmul.f32 %v2002, %v2009
      %2011 = vst [vmem:[%s145 + $0x78] sm:$0xff] %v2010
      %v2012 = vrot.slane %v1646, 4
      %v2013 = vmax.f32 %v1646, %v2012
      %v2014 = vrot.slane %v2013, 2
      %v2015 = vmax.f32 %v2013, %v2014
      %v2016 = vrot.slane %v2015, 1
      %v2017 = vmax.f32 %v2015, %v2016
      %v2018 = vsub.f32 %v1646, %v2017
      %v2019 = vmul.f32 %v2018, 1.442695
      %v2020 = vpow.pop %v2019
      %v2021 = vrot.slane %v2020, 4
      %v2022 = vadd.f32 %v2020, %v2021
      %v2023 = vrot.slane %v2022, 2
      %v2024 = vadd.f32 %v2022, %v2023
      %v2025 = vrot.slane %v2024, 1
      %v2026 = vadd.f32 %v2024, %v2025
      %v2027 = vrcp.pop %v2026
      %v2028 = vmul.f32 %v2020, %v2027
      %2029 = vst [vmem:[%s145 + $0x80] sm:$0xff] %v2028
      %v2030 = vrot.slane %v1651, 4
      %v2031 = vmax.f32 %v1651, %v2030
      %v2032 = vrot.slane %v2031, 2
      %v2033 = vmax.f32 %v2031, %v2032
      %v2034 = vrot.slane %v2033, 1
      %v2035 = vmax.f32 %v2033, %v2034
      %v2036 = vsub.f32 %v1651, %v2035
      %v2037 = vmul.f32 %v2036, 1.442695
      %v2038 = vpow.pop %v2037
      %v2039 = vrot.slane %v2038, 4
      %v2040 = vadd.f32 %v2038, %v2039
      %v2041 = vrot.slane %v2040, 2
      %v2042 = vadd.f32 %v2040, %v2041
      %v2043 = vrot.slane %v2042, 1
      %v2044 = vadd.f32 %v2042, %v2043
      %v2045 = vrcp.pop %v2044
      %v2046 = vmul.f32 %v2038, %v2045
      %2047 = vst [vmem:[%s145 + $0x88] sm:$0xff] %v2046
      %v2048 = vrot.slane %v1656, 4
      %v2049 = vmax.f32 %v1656, %v2048
      %v2050 = vrot.slane %v2049, 2
      %v2051 = vmax.f32 %v2049, %v2050
      %v2052 = vrot.slane %v2051, 1
      %v2053 = vmax.f32 %v2051, %v2052
      %v2054 = vsub.f32 %v1656, %v2053
      %v2055 = vmul.f32 %v2054, 1.442695
      %v2056 = vpow.pop %v2055
      %v2057 = vrot.slane %v2056, 4
      %v2058 = vadd.f32 %v2056, %v2057
      %v2059 = vrot.slane %v2058, 2
      %v2060 = vadd.f32 %v2058, %v2059
      %v2061 = vrot.slane %v2060, 1
      %v2062 = vadd.f32 %v2060, %v2061
      %v2063 = vrcp.pop %v2062
      %v2064 = vmul.f32 %v2056, %v2063
      %2065 = vst [vmem:[%s145 + $0x90] sm:$0xff] %v2064
      %v2066 = vrot.slane %v1661, 4
      %v2067 = vmax.f32 %v1661, %v2066
      %v2068 = vrot.slane %v2067, 2
      %v2069 = vmax.f32 %v2067, %v2068
      %v2070 = vrot.slane %v2069, 1
      %v2071 = vmax.f32 %v2069, %v2070
      %v2072 = vsub.f32 %v1661, %v2071
      %v2073 = vmul.f32 %v2072, 1.442695
      %v2074 = vpow.pop %v2073
      %v2075 = vrot.slane %v2074, 4
      %v2076 = vadd.f32 %v2074, %v2075
      %v2077 = vrot.slane %v2076, 2
      %v2078 = vadd.f32 %v2076, %v2077
      %v2079 = vrot.slane %v2078, 1
      %v2080 = vadd.f32 %v2078, %v2079
      %v2081 = vrcp.pop %v2080
      %v2082 = vmul.f32 %v2074, %v2081
      %2083 = vst [vmem:[%s145 + $0x98] sm:$0xff] %v2082
      %v2084 = vrot.slane %v1666, 4
      %v2085 = vmax.f32 %v1666, %v2084
      %v2086 = vrot.slane %v2085, 2
      %v2087 = vmax.f32 %v2085, %v2086
      %v2088 = vrot.slane %v2087, 1
      %v2089 = vmax.f32 %v2087, %v2088
      %v2090 = vsub.f32 %v1666, %v2089
      %v2091 = vmul.f32 %v2090, 1.442695
      %v2092 = vpow.pop %v2091
      %v2093 = vrot.slane %v2092, 4
      %v2094 = vadd.f32 %v2092, %v2093
      %v2095 = vrot.slane %v2094, 2
      %v2096 = vadd.f32 %v2094, %v2095
      %v2097 = vrot.slane %v2096, 1
      %v2098 = vadd.f32 %v2096, %v2097
      %v2099 = vrcp.pop %v2098
      %v2100 = vmul.f32 %v2092, %v2099
      %2101 = vst [vmem:[%s145 + $0xa0] sm:$0xff] %v2100
      %v2102 = vrot.slane %v1671, 4
      %v2103 = vmax.f32 %v1671, %v2102
      %v2104 = vrot.slane %v2103, 2
      %v2105 = vmax.f32 %v2103, %v2104
      %v2106 = vrot.slane %v2105, 1
      %v2107 = vmax.f32 %v2105, %v2106
      %v2108 = vsub.f32 %v1671, %v2107
      %v2109 = vmul.f32 %v2108, 1.442695
      %v2110 = vpow.pop %v2109
      %v2111 = vrot.slane %v2110, 4
      %v2112 = vadd.f32 %v2110, %v2111
      %v2113 = vrot.slane %v2112, 2
      %v2114 = vadd.f32 %v2112, %v2113
      %v2115 = vrot.slane %v2114, 1
      %v2116 = vadd.f32 %v2114, %v2115
      %v2117 = vrcp.pop %v2116
      %v2118 = vmul.f32 %v2110, %v2117
      %2119 = vst [vmem:[%s145 + $0xa8] sm:$0xff] %v2118
      %v2120 = vrot.slane %v1676, 4
      %v2121 = vmax.f32 %v1676, %v2120
      %v2122 = vrot.slane %v2121, 2
      %v2123 = vmax.f32 %v2121, %v2122
      %v2124 = vrot.slane %v2123, 1
      %v2125 = vmax.f32 %v2123, %v2124
      %v2126 = vsub.f32 %v1676, %v2125
      %v2127 = vmul.f32 %v2126, 1.442695
      %v2128 = vpow.pop %v2127
      %v2129 = vrot.slane %v2128, 4
      %v2130 = vadd.f32 %v2128, %v2129
      %v2131 = vrot.slane %v2130, 2
      %v2132 = vadd.f32 %v2130, %v2131
      %v2133 = vrot.slane %v2132, 1
      %v2134 = vadd.f32 %v2132, %v2133
      %v2135 = vrcp.pop %v2134
      %v2136 = vmul.f32 %v2128, %v2135
      %2137 = vst [vmem:[%s145 + $0xb0] sm:$0xff] %v2136
      %v2138 = vrot.slane %v1681, 4
      %v2139 = vmax.f32 %v1681, %v2138
      %v2140 = vrot.slane %v2139, 2
      %v2141 = vmax.f32 %v2139, %v2140
      %v2142 = vrot.slane %v2141, 1
      %v2143 = vmax.f32 %v2141, %v2142
      %v2144 = vsub.f32 %v1681, %v2143
      %v2145 = vmul.f32 %v2144, 1.442695
      %v2146 = vpow.pop %v2145
      %v2147 = vrot.slane %v2146, 4
      %v2148 = vadd.f32 %v2146, %v2147
      %v2149 = vrot.slane %v2148, 2
      %v2150 = vadd.f32 %v2148, %v2149
      %v2151 = vrot.slane %v2150, 1
      %v2152 = vadd.f32 %v2150, %v2151
      %v2153 = vrcp.pop %v2152
      %v2154 = vmul.f32 %v2146, %v2153
      %2155 = vst [vmem:[%s145 + $0xb8] sm:$0xff] %v2154
      %v2156 = vrot.slane %v1686, 4
      %v2157 = vmax.f32 %v1686, %v2156
      %v2158 = vrot.slane %v2157, 2
      %v2159 = vmax.f32 %v2157, %v2158
      %v2160 = vrot.slane %v2159, 1
      %v2161 = vmax.f32 %v2159, %v2160
      %v2162 = vsub.f32 %v1686, %v2161
      %v2163 = vmul.f32 %v2162, 1.442695
      %v2164 = vpow.pop %v2163
      %v2165 = vrot.slane %v2164, 4
      %v2166 = vadd.f32 %v2164, %v2165
      %v2167 = vrot.slane %v2166, 2
      %v2168 = vadd.f32 %v2166, %v2167
      %v2169 = vrot.slane %v2168, 1
      %v2170 = vadd.f32 %v2168, %v2169
      %v2171 = vrcp.pop %v2170
      %v2172 = vmul.f32 %v2164, %v2171
      %2173 = vst [vmem:[%s145 + $0xc0] sm:$0xff] %v2172
      %v2174 = vrot.slane %v1691, 4
      %v2175 = vmax.f32 %v1691, %v2174
      %v2176 = vrot.slane %v2175, 2
      %v2177 = vmax.f32 %v2175, %v2176
      %v2178 = vrot.slane %v2177, 1
      %v2179 = vmax.f32 %v2177, %v2178
      %v2180 = vsub.f32 %v1691, %v2179
      %v2181 = vmul.f32 %v2180, 1.442695
      %v2182 = vpow.pop %v2181
      %v2183 = vrot.slane %v2182, 4
      %v2184 = vadd.f32 %v2182, %v2183
      %v2185 = vrot.slane %v2184, 2
      %v2186 = vadd.f32 %v2184, %v2185
      %v2187 = vrot.slane %v2186, 1
      %v2188 = vadd.f32 %v2186, %v2187
      %v2189 = vrcp.pop %v2188
      %v2190 = vmul.f32 %v2182, %v2189
      %2191 = vst [vmem:[%s145 + $0xc8] sm:$0xff] %v2190
      %v2192 = vrot.slane %v1696, 4
      %v2193 = vmax.f32 %v1696, %v2192
      %v2194 = vrot.slane %v2193, 2
      %v2195 = vmax.f32 %v2193, %v2194
      %v2196 = vrot.slane %v2195, 1
      %v2197 = vmax.f32 %v2195, %v2196
      %v2198 = vsub.f32 %v1696, %v2197
      %v2199 = vmul.f32 %v2198, 1.442695
      %v2200 = vpow.pop %v2199
      %v2201 = vrot.slane %v2200, 4
      %v2202 = vadd.f32 %v2200, %v2201
      %v2203 = vrot.slane %v2202, 2
      %v2204 = vadd.f32 %v2202, %v2203
      %v2205 = vrot.slane %v2204, 1
      %v2206 = vadd.f32 %v2204, %v2205
      %v2207 = vrcp.pop %v2206
      %v2208 = vmul.f32 %v2200, %v2207
      %2209 = vst [vmem:[%s145 + $0xd0] sm:$0xff] %v2208
      %v2210 = vrot.slane %v1701, 4
      %v2211 = vmax.f32 %v1701, %v2210
      %v2212 = vrot.slane %v2211, 2
      %v2213 = vmax.f32 %v2211, %v2212
      %v2214 = vrot.slane %v2213, 1
      %v2215 = vmax.f32 %v2213, %v2214
      %v2216 = vsub.f32 %v1701, %v2215
      %v2217 = vmul.f32 %v2216, 1.442695
      %v2218 = vpow.pop %v2217
      %v2219 = vrot.slane %v2218, 4
      %v2220 = vadd.f32 %v2218, %v2219
      %v2221 = vrot.slane %v2220, 2
      %v2222 = vadd.f32 %v2220, %v2221
      %v2223 = vrot.slane %v2222, 1
      %v2224 = vadd.f32 %v2222, %v2223
      %v2225 = vrcp.pop %v2224
      %v2226 = vmul.f32 %v2218, %v2225
      %2227 = vst [vmem:[%s145 + $0xd8] sm:$0xff] %v2226
      %v2228 = vrot.slane %v1706, 4
      %v2229 = vmax.f32 %v1706, %v2228
      %v2230 = vrot.slane %v2229, 2
      %v2231 = vmax.f32 %v2229, %v2230
      %v2232 = vrot.slane %v2231, 1
      %v2233 = vmax.f32 %v2231, %v2232
      %v2234 = vsub.f32 %v1706, %v2233
      %v2235 = vmul.f32 %v2234, 1.442695
      %v2236 = vpow.pop %v2235
      %v2237 = vrot.slane %v2236, 4
      %v2238 = vadd.f32 %v2236, %v2237
      %v2239 = vrot.slane %v2238, 2
      %v2240 = vadd.f32 %v2238, %v2239
      %v2241 = vrot.slane %v2240, 1
      %v2242 = vadd.f32 %v2240, %v2241
      %v2243 = vrcp.pop %v2242
      %v2244 = vmul.f32 %v2236, %v2243
      %2245 = vst [vmem:[%s145 + $0xe0] sm:$0xff] %v2244
      %v2246 = vrot.slane %v1711, 4
      %v2247 = vmax.f32 %v1711, %v2246
      %v2248 = vrot.slane %v2247, 2
      %v2249 = vmax.f32 %v2247, %v2248
      %v2250 = vrot.slane %v2249, 1
      %v2251 = vmax.f32 %v2249, %v2250
      %v2252 = vsub.f32 %v1711, %v2251
      %v2253 = vmul.f32 %v2252, 1.442695
      %v2254 = vpow.pop %v2253
      %v2255 = vrot.slane %v2254, 4
      %v2256 = vadd.f32 %v2254, %v2255
      %v2257 = vrot.slane %v2256, 2
      %v2258 = vadd.f32 %v2256, %v2257
      %v2259 = vrot.slane %v2258, 1
      %v2260 = vadd.f32 %v2258, %v2259
      %v2261 = vrcp.pop %v2260
      %v2262 = vmul.f32 %v2254, %v2261
      %2263 = vst [vmem:[%s145 + $0xe8] sm:$0xff] %v2262
      %v2264 = vrot.slane %v1716, 4
      %v2265 = vmax.f32 %v1716, %v2264
      %v2266 = vrot.slane %v2265, 2
      %v2267 = vmax.f32 %v2265, %v2266
      %v2268 = vrot.slane %v2267, 1
      %v2269 = vmax.f32 %v2267, %v2268
      %v2270 = vsub.f32 %v1716, %v2269
      %v2271 = vmul.f32 %v2270, 1.442695
      %v2272 = vpow.pop %v2271
      %v2273 = vrot.slane %v2272, 4
      %v2274 = vadd.f32 %v2272, %v2273
      %v2275 = vrot.slane %v2274, 2
      %v2276 = vadd.f32 %v2274, %v2275
      %v2277 = vrot.slane %v2276, 1
      %v2278 = vadd.f32 %v2276, %v2277
      %v2279 = vrcp.pop %v2278
      %v2280 = vmul.f32 %v2272, %v2279
      %2281 = vst [vmem:[%s145 + $0xf0] sm:$0xff] %v2280
      %v2282 = vrot.slane %v1721, 4
      %v2283 = vmax.f32 %v1721, %v2282
      %v2284 = vrot.slane %v2283, 2
      %v2285 = vmax.f32 %v2283, %v2284
      %v2286 = vrot.slane %v2285, 1
      %v2287 = vmax.f32 %v2285, %v2286
      %v2288 = vsub.f32 %v1721, %v2287
      %v2289 = vmul.f32 %v2288, 1.442695
      %v2290 = vpow.pop %v2289
      %v2291 = vrot.slane %v2290, 4
      %v2292 = vadd.f32 %v2290, %v2291
      %v2293 = vrot.slane %v2292, 2
      %v2294 = vadd.f32 %v2292, %v2293
      %v2295 = vrot.slane %v2294, 1
      %v2296 = vadd.f32 %v2294, %v2295
      %v2297 = vrcp.pop %v2296
      %v2298 = vmul.f32 %v2290, %v2297
      %2299 = vst [vmem:[%s145 + $0xf8] sm:$0xff] %v2298
      %s2300 = smul.u32 32, %s13
      %p2301 = scmp.lt.s32.totalorder %s2300, 63
      %s2302 = scalar_select %p2301, %s2300, 63
      %s2303 = smul.addr %s2302, 8
      %s2304 = scalar_lea.vmem %s2, %s2303
      // Predicated region
      $region29: #{actor_forward_batched.1} parent=27 // pred_check
        %p2305 = pneg %p78
      $region30: #{actor_forward_batched.1} parent=27 // pred_check_branch
        %2307 = sbr.rel (%p2305) target = $region32
      $region31: #{actor_forward_batched.1} parent=27 // pred_region
        %s2308 = smul.u32 32, %s13
      $region32: #{actor_forward_batched.1} parent=27 // pred_fallthru
        _
    $region28: #{actor_forward_batched.1} parent=5 // pred_fallthru
      _
    %p2309 = scmp.le.s32.totalorder 2, %s8
    // Predicated region
    $region33: #{actor_forward_batched.1} parent=5 // pred_check
      %p2310 = pneg %p2309
    $region34: #{actor_forward_batched.1} parent=5 // pred_check_branch
      %2312 = sbr.rel (%p2310) target = $region36
    $region35: #{actor_forward_batched.1} parent=5 // pred_region
      %s2313 = ssub.s32 %s8, 2
      // Predicated region
      $region37: #{actor_forward_batched.1} parent=35 // pred_check
        %p2314 = pneg %p84
      $region38: #{actor_forward_batched.1} parent=35 // pred_check_branch
        %2316 = sbr.rel (%p2314) target = $region40
      $region39: #{actor_forward_batched.1} parent=35 // pred_region
        %s2317 = smul.u32 32, %s14
        %p2318 = scmp.lt.s32.totalorder %s2317, 63
        %s2319 = scalar_select %p2318, %s2317, 63
        %s2320 = smul.addr %s2319, 8
        %s2321 = scalar_lea.vmem %s2, %s2320
      $region40: #{actor_forward_batched.1} parent=35 // pred_fallthru
        _
    $region36: #{actor_forward_batched.1} parent=5 // pred_fallthru
      _
  $region6: #{actor_forward_batched.1} parent=0 // loop_footer
    %s12 = sadd.s32 1, %s8
  $region7: #{actor_forward_batched.1} parent=0 // loop_footer_branch
    %7 = sbr.rel target = $region3
  $region8: #{actor_forward_batched.1} parent=0 // loop_exit
    _

</llo_original>
